<compile_context>
chip_gen: v6e
topology: v6e:2x2x1
jax: 0.10.0
libtpu: 0.0.40
codegen_flags: <defaults>
</compile_context>

<pallas_src>
import numpy as np
import jax
import jax.numpy as jnp
from jax import lax
from jax.experimental import pallas as pl
from jax.experimental.pallas import tpu as pltpu


_MAX_BLOCK_ROWS = 1024     # ~6.1 MiB per grid step across all streams
_UNROLL_IMAGES = 16        # unroll the per-image loop up to this table size


def _zigzag(v):
    # project_to_correct_range(..., mode='zick_zack'):
    # triangle-wave reflection into [0, 1] (period 2, reflect at 1).
    t = v - 2.0 * jnp.floor(v * 0.5)
    return jnp.where(t > 1.0, 2.0 - t, t)


def _post_correction_kernel(vign_ref,   # SMEM (3,)                  k1,k2,k3
                            tab_ref,    # SMEM (num_images*12,)      [M(9), b(3)] per image
                            rgb_ref,    # VMEM (3, S, 128)
                            x_ref,      # VMEM (S, 128)
                            y_ref,      # VMEM (S, 128)
                            accw_ref,   # VMEM (S, 128)
                            idx_ref,    # VMEM (S, 128) int8/int32   image indices
                            bg_ref,     # VMEM (3, S, 128)
                            out_ref):   # VMEM (3, S, 128)
    num_images = tab_ref.shape[0] // 12

    # ---- Vignetting correction (Horner polynomial) -------------------------
    k1 = vign_ref[0]
    k2 = vign_ref[1]
    k3 = vign_ref[2]
    x = x_ref[...]
    y = y_ref[...]
    r = x * x + y * y
    gain = 1.0 + r * (k1 + r * (k2 + r * k3))

    v0 = _zigzag(rgb_ref[0] * gain)
    v1 = _zigzag(rgb_ref[1] * gain)
    v2 = _zigzag(rgb_ref[2] * gain)

    # ---- Color calibration: per-ray 3x3 matrix * rgb + bias ----------------
    # Per-ray coefficients come from the tiny per-image table in SMEM; rays
    # select their image's result with a predicated select (exactly one image
    # matches per ray, out-of-range indices fall through to 0).
    idx = idx_ref[...].astype(jnp.int32)     # widen the int8 stream once
    zero = jnp.zeros_like(v0)

    if num_images <= _UNROLL_IMAGES:
        acc0, acc1, acc2 = zero, zero, zero
        for i in range(num_images):
            m = idx == i
            b = 12 * i
            t0 = tab_ref[b + 0] * v0 + tab_ref[b + 1] * v1 + tab_ref[b + 2] * v2 + tab_ref[b + 9]
            t1 = tab_ref[b + 3] * v0 + tab_ref[b + 4] * v1 + tab_ref[b + 5] * v2 + tab_ref[b + 10]
            t2 = tab_ref[b + 6] * v0 + tab_ref[b + 7] * v1 + tab_ref[b + 8] * v2 + tab_ref[b + 11]
            acc0 = jnp.where(m, t0, acc0)
            acc1 = jnp.where(m, t1, acc1)
            acc2 = jnp.where(m, t2, acc2)
    else:
        def body(i, accs):
            a0, a1, a2 = accs
            m = idx == i
            b = i * 12
            t0 = tab_ref[b + 0] * v0 + tab_ref[b + 1] * v1 + tab_ref[b + 2] * v2 + tab_ref[b + 9]
            t1 = tab_ref[b + 3] * v0 + tab_ref[b + 4] * v1 + tab_ref[b + 5] * v2 + tab_ref[b + 10]
            t2 = tab_ref[b + 6] * v0 + tab_ref[b + 7] * v1 + tab_ref[b + 8] * v2 + tab_ref[b + 11]
            return (jnp.where(m, t0, a0), jnp.where(m, t1, a1), jnp.where(m, t2, a2))
        acc0, acc1, acc2 = lax.fori_loop(0, num_images, body, (zero, zero, zero))

    # ---- zigzag + background compositing, written per channel row ----------
    w = 1.0 - accw_ref[...]
    out_ref[0] = _zigzag(acc0) + w * bg_ref[0]
    out_ref[1] = _zigzag(acc1) + w * bg_ref[1]
    out_ref[2] = _zigzag(acc2) + w * bg_ref[2]


def post_correction(rgb_p, x_p, y_p, accw_p, idx_p, bg_p, mats, bias, vign, *,
                    block_rows=None):
    """rgb_p / bg_p: (3, R, 128) f32; x_p / y_p / accw_p: (R, 128) f32;
    idx_p: (R, 128) int (int8 preferred); mats: (num_images, 3, 3);
    bias: (num_images, 3, 1); vign: (3,)."""
    C, R, L = rgb_p.shape
    assert C == 3 and L == 128
    num_images = int(mats.shape[0])

    # Tiny flat calibration table in SMEM: 9 row-major matrix coeffs + 3 biases
    # per image.  1-D to avoid 2-D SMEM padding (each 8 rows -> 128 lanes).
    cal_table = jnp.concatenate(
        [mats.reshape(num_images, 9), bias.reshape(num_images, 3)],
        axis=1).reshape(num_images * 12).astype(jnp.float32)

    # Index stream: 1 B/ray when the table is small enough.
    # TODO(synk): callers should hand us int8 indices directly to skip this pass.
    if num_images <= 127 and idx_p.dtype != jnp.int8:
        idx_p = idx_p.astype(jnp.int8)
    elif idx_p.dtype not in (jnp.int8, jnp.int32):
        idx_p = idx_p.astype(jnp.int32)
    idx_bytes = 1 if idx_p.dtype == jnp.int8 else 4

    # ---- tiling -------------------------------------------------------------
    if block_rows is None:
        # Single full-R block for small problems (no per-step overhead on the
        # 1-TC v5e/v6e); 1024-row blocks (~86% of HBM roofline) otherwise.
        block_rows = R if R <= _MAX_BLOCK_ROWS else _MAX_BLOCK_ROWS
    else:
        block_rows = min(block_rows, R)
        if block_rows < R:
            block_rows = max(32, (block_rows // 32) * 32)   # int8 (32,128) tile
    grid = (pl.cdiv(R, block_rows),)

    # Explicit VMEM budget: ~2.5x the per-step footprint (12 f32 "planes" +
    # the index plane), capped at 32 MiB so it also fits v5e scoped defaults
    # and v7x's 64 MiB physical VMEM.
    per_step_bytes = block_rows * L * (12 * 4 + idx_bytes)
    vmem_limit = int(min(32 * 1024 * 1024,
                         max(8 * 1024 * 1024, 2.5 * per_step_bytes)))

    return pl.pallas_call(
        _post_correction_kernel,
        out_shape=jax.ShapeDtypeStruct((C, R, L), jnp.float32),
        grid=grid,
        in_specs=[
            pl.BlockSpec(memory_space=pltpu.MemorySpace.SMEM),        # vignetting (3,)
            pl.BlockSpec(memory_space=pltpu.MemorySpace.SMEM),        # calib table (N*12,)
            pl.BlockSpec((C, block_rows, L), lambda i: (0, i, 0)),    # rgb
            pl.BlockSpec((block_rows, L), lambda i: (i, 0)),          # x
            pl.BlockSpec((block_rows, L), lambda i: (i, 0)),          # y
            pl.BlockSpec((block_rows, L), lambda i: (i, 0)),          # acc_weight
            pl.BlockSpec((block_rows, L), lambda i: (i, 0)),          # image indices
            pl.BlockSpec((C, block_rows, L), lambda i: (0, i, 0)),    # background
        ],
        out_specs=pl.BlockSpec((C, block_rows, L), lambda i: (0, i, 0)),
        compiler_params=pltpu.CompilerParams(
            dimension_semantics=("parallel",),
            vmem_limit_bytes=vmem_limit),
    )(vign, cal_table, rgb_p, x_p, y_p, accw_p, idx_p, bg_p)


# --------------------------- plain numpy reference ---------------------------
def _zz_np(v):
    t = v - 2.0 * np.floor(v * 0.5)
    return np.where(t > 1.0, 2.0 - t, t)


def _reference(rgb, x, y, accw, bg, idx, mats, bias, vign):
    # All numpy, same planar layout: rgb/bg (3,R,L); x/y/accw/idx (R,L).
    k1, k2, k3 = [float(v) for v in vign]
    r = x ** 2 + y ** 2
    off = k1 * r + k2 * r ** 2 + k3 * r ** 3
    v = rgb * (1.0 + off)[None]
    v = _zz_np(v)
    m_g = mats[idx]                    # (R, L, 3, 3)
    b_g = bias[idx][..., 0]            # (R, L, 3)
    cal = np.einsum("rlck,krl->crl", m_g, v) + np.transpose(b_g, (2, 0, 1))
    cal = _zz_np(cal)
    return cal + (1.0 - accw)[None] * bg


if __name__ == "__main__":
    key = jax.random.PRNGKey(0)
    ks = jax.random.split(key, 10)

    num_train_images = 8
    R, L = 64, 128                     # 8192 rays, laid out as (rows, lanes)

    # ---- batch / inputs, generated directly in the kernel's planar layout ---
    rgb = jax.random.uniform(ks[0], (3, R, L), jnp.float32)
    x_coord = jax.random.uniform(ks[1], (R, L), jnp.float32, -1.0, 1.0)
    y_coord = jax.random.uniform(ks[2], (R, L), jnp.float32, -1.0, 1.0)
    accw = jax.random.uniform(ks[3], (R, L), jnp.float32, 0.0, 1.0)
    background = jax.random.uniform(ks[4], (3, R, L), jnp.float32)
    image_indices = jax.random.randint(
        ks[5], (R, L), 0, num_train_images, dtype=jnp.int32).astype(jnp.int8)

    # ---- parameters (per __init__: identity matrices / zero biases + noise) --
    vignetting_parameters = 0.05 * jax.random.normal(ks[6], (3,), jnp.float32)
    imageids_to_full_matrix = (
        jnp.eye(3, dtype=jnp.float32)[None].repeat(num_train_images, axis=0)
        + 0.05 * jax.random.normal(ks[7], (num_train_images, 3, 3), jnp.float32))
    imageids_to_bias = 0.05 * jax.random.normal(
        ks[8], (num_train_images, 3, 1), jnp.float32)

    # default tiling (single full-R block)
    out = post_correction(rgb, x_coord, y_coord, accw, image_indices, background,
                          imageids_to_full_matrix, imageids_to_bias,
                          vignetting_parameters)
    out = jax.block_until_ready(out)

    # multi-step grid path (exercises the index_maps / pipelining)
    out_tiled = post_correction(rgb, x_coord, y_coord, accw, image_indices,
                                background, imageids_to_full_matrix,
                                imageids_to_bias, vignetting_parameters,
                                block_rows=32)
    out_tiled = jax.block_until_ready(out_tiled)

    # returns.add_return('corrected_rgb', rgb) equivalent
    returns = {"corrected_rgb": out}

    ref = _reference(np.asarray(rgb), np.asarray(x_coord), np.asarray(y_coord),
                     np.asarray(accw), np.asarray(background),
                     np.asarray(image_indices),
                     np.asarray(imageids_to_full_matrix),
                     np.asarray(imageids_to_bias),
                     np.asarray(vignetting_parameters))
    err = np.abs(np.asarray(out) - ref).max()
    assert np.allclose(np.asarray(out), ref, rtol=1e-5, atol=1e-5), err
    err_t = np.abs(np.asarray(out_tiled) - ref).max()
    assert np.allclose(np.asarray(out_tiled), ref, rtol=1e-5, atol=1e-5), err_t

    print("KERNEL_OK")
</pallas_src>

<mosaic_0001>
module attributes {stable_mosaic.version = 11 : i64} {
  func.func @_post_correction_kernel(%arg0: i32, %arg1: memref<3xf32, #tpu.memory_space<smem>>, %arg2: memref<96xf32, #tpu.memory_space<smem>>, %arg3: memref<3x64x128xf32, #tpu.memory_space<vmem>>, %arg4: memref<64x128xf32, #tpu.memory_space<vmem>>, %arg5: memref<64x128xf32, #tpu.memory_space<vmem>>, %arg6: memref<64x128xf32, #tpu.memory_space<vmem>>, %arg7: memref<64x128xi8, #tpu.memory_space<vmem>>, %arg8: memref<3x64x128xf32, #tpu.memory_space<vmem>>, %arg9: memref<3x64x128xf32, #tpu.memory_space<vmem>>) attributes {dimension_semantics = [#tpu.dimension_semantics<parallel>], iteration_bounds = array<i64: 1>, scalar_prefetch = 0 : i64, scratch_operands = 0 : i64, tpu.core_type = #tpu.core_type<tc>, window_params = [{transform_indices = @transform_0, window_bounds = array<i64: 3>}, {transform_indices = @transform_1, window_bounds = array<i64: 96>}, {transform_indices = @transform_2, window_bounds = array<i64: 3, 64, 128>}, {transform_indices = @transform_3, window_bounds = array<i64: 64, 128>}, {transform_indices = @transform_4, window_bounds = array<i64: 64, 128>}, {transform_indices = @transform_5, window_bounds = array<i64: 64, 128>}, {transform_indices = @transform_6, window_bounds = array<i64: 64, 128>}, {transform_indices = @transform_7, window_bounds = array<i64: 3, 64, 128>}, {transform_indices = @transform_8, window_bounds = array<i64: 3, 64, 128>}]} {
    %c0 = arith.constant 0 : index
    %0 = memref.load %arg1[%c0] : memref<3xf32, #tpu.memory_space<smem>>
    %c1 = arith.constant 1 : index
    %1 = memref.load %arg1[%c1] : memref<3xf32, #tpu.memory_space<smem>>
    %c2 = arith.constant 2 : index
    %2 = memref.load %arg1[%c2] : memref<3xf32, #tpu.memory_space<smem>>
    %c0_0 = arith.constant 0 : index
    %c0_1 = arith.constant 0 : index
    %3 = vector.load %arg4[%c0_0, %c0_1] : memref<64x128xf32, #tpu.memory_space<vmem>>, vector<64x128xf32>
    %c0_2 = arith.constant 0 : index
    %c0_3 = arith.constant 0 : index
    %4 = vector.load %arg5[%c0_2, %c0_3] : memref<64x128xf32, #tpu.memory_space<vmem>>, vector<64x128xf32>
    %5 = arith.mulf %3, %3 : vector<64x128xf32>
    %6 = arith.mulf %4, %4 : vector<64x128xf32>
    %7 = arith.addf %5, %6 : vector<64x128xf32>
    %8 = vector.broadcast %2 : f32 to vector<64x128xf32>
    %9 = arith.mulf %7, %8 : vector<64x128xf32>
    %10 = vector.broadcast %1 : f32 to vector<64x128xf32>
    %11 = arith.addf %10, %9 : vector<64x128xf32>
    %12 = arith.mulf %7, %11 : vector<64x128xf32>
    %13 = vector.broadcast %0 : f32 to vector<64x128xf32>
    %14 = arith.addf %13, %12 : vector<64x128xf32>
    %15 = arith.mulf %7, %14 : vector<64x128xf32>
    %cst = arith.constant 1.000000e+00 : f32
    %16 = vector.broadcast %cst : f32 to vector<64x128xf32>
    %17 = arith.addf %16, %15 : vector<64x128xf32>
    %c0_4 = arith.constant 0 : index
    %c0_5 = arith.constant 0 : index
    %c0_6 = arith.constant 0 : index
    %18 = vector.load %arg3[%c0_4, %c0_5, %c0_6] : memref<3x64x128xf32, #tpu.memory_space<vmem>>, vector<1x64x128xf32>
    %19 = vector.shape_cast %18 : vector<1x64x128xf32> to vector<64x128xf32>
    %20 = arith.mulf %19, %17 : vector<64x128xf32>
    %cst_7 = arith.constant 5.000000e-01 : f32
    %21 = vector.broadcast %cst_7 : f32 to vector<64x128xf32>
    %22 = arith.mulf %20, %21 : vector<64x128xf32>
    %23 = math.floor %22 : vector<64x128xf32>
    %cst_8 = arith.constant 2.000000e+00 : f32
    %24 = vector.broadcast %cst_8 : f32 to vector<64x128xf32>
    %25 = arith.mulf %24, %23 : vector<64x128xf32>
    %26 = arith.subf %20, %25 : vector<64x128xf32>
    %cst_9 = arith.constant 1.000000e+00 : f32
    %27 = vector.broadcast %cst_9 : f32 to vector<64x128xf32>
    %28 = arith.cmpf ogt, %26, %27 : vector<64x128xf32>
    %cst_10 = arith.constant 2.000000e+00 : f32
    %29 = vector.broadcast %cst_10 : f32 to vector<64x128xf32>
    %30 = arith.subf %29, %26 : vector<64x128xf32>
    %31 = arith.select %28, %30, %26 : vector<64x128xi1>, vector<64x128xf32>
    %c1_11 = arith.constant 1 : index
    %c0_12 = arith.constant 0 : index
    %c0_13 = arith.constant 0 : index
    %32 = vector.load %arg3[%c1_11, %c0_12, %c0_13] : memref<3x64x128xf32, #tpu.memory_space<vmem>>, vector<1x64x128xf32>
    %33 = vector.shape_cast %32 : vector<1x64x128xf32> to vector<64x128xf32>
    %34 = arith.mulf %33, %17 : vector<64x128xf32>
    %cst_14 = arith.constant 5.000000e-01 : f32
    %35 = vector.broadcast %cst_14 : f32 to vector<64x128xf32>
    %36 = arith.mulf %34, %35 : vector<64x128xf32>
    %37 = math.floor %36 : vector<64x128xf32>
    %cst_15 = arith.constant 2.000000e+00 : f32
    %38 = vector.broadcast %cst_15 : f32 to vector<64x128xf32>
    %39 = arith.mulf %38, %37 : vector<64x128xf32>
    %40 = arith.subf %34, %39 : vector<64x128xf32>
    %cst_16 = arith.constant 1.000000e+00 : f32
    %41 = vector.broadcast %cst_16 : f32 to vector<64x128xf32>
    %42 = arith.cmpf ogt, %40, %41 : vector<64x128xf32>
    %cst_17 = arith.constant 2.000000e+00 : f32
    %43 = vector.broadcast %cst_17 : f32 to vector<64x128xf32>
    %44 = arith.subf %43, %40 : vector<64x128xf32>
    %45 = arith.select %42, %44, %40 : vector<64x128xi1>, vector<64x128xf32>
    %c2_18 = arith.constant 2 : index
    %c0_19 = arith.constant 0 : index
    %c0_20 = arith.constant 0 : index
    %46 = vector.load %arg3[%c2_18, %c0_19, %c0_20] : memref<3x64x128xf32, #tpu.memory_space<vmem>>, vector<1x64x128xf32>
    %47 = vector.shape_cast %46 : vector<1x64x128xf32> to vector<64x128xf32>
    %48 = arith.mulf %47, %17 : vector<64x128xf32>
    %cst_21 = arith.constant 5.000000e-01 : f32
    %49 = vector.broadcast %cst_21 : f32 to vector<64x128xf32>
    %50 = arith.mulf %48, %49 : vector<64x128xf32>
    %51 = math.floor %50 : vector<64x128xf32>
    %cst_22 = arith.constant 2.000000e+00 : f32
    %52 = vector.broadcast %cst_22 : f32 to vector<64x128xf32>
    %53 = arith.mulf %52, %51 : vector<64x128xf32>
    %54 = arith.subf %48, %53 : vector<64x128xf32>
    %cst_23 = arith.constant 1.000000e+00 : f32
    %55 = vector.broadcast %cst_23 : f32 to vector<64x128xf32>
    %56 = arith.cmpf ogt, %54, %55 : vector<64x128xf32>
    %cst_24 = arith.constant 2.000000e+00 : f32
    %57 = vector.broadcast %cst_24 : f32 to vector<64x128xf32>
    %58 = arith.subf %57, %54 : vector<64x128xf32>
    %59 = arith.select %56, %58, %54 : vector<64x128xi1>, vector<64x128xf32>
    %c0_25 = arith.constant 0 : index
    %c0_26 = arith.constant 0 : index
    %60 = vector.load %arg7[%c0_25, %c0_26] : memref<64x128xi8, #tpu.memory_space<vmem>>, vector<64x128xi8>
    %61 = arith.extsi %60 : vector<64x128xi8> to vector<64x128xi32>
    %cst_27 = arith.constant 0.000000e+00 : f32
    %62 = vector.broadcast %cst_27 : f32 to vector<64x128xf32>
    %c0_i32 = arith.constant 0 : i32
    %63 = vector.broadcast %c0_i32 : i32 to vector<64x128xi32>
    %64 = arith.cmpi eq, %61, %63 : vector<64x128xi32>
    %c0_28 = arith.constant 0 : index
    %65 = memref.load %arg2[%c0_28] : memref<96xf32, #tpu.memory_space<smem>>
    %66 = vector.broadcast %65 : f32 to vector<64x128xf32>
    %67 = arith.mulf %66, %31 : vector<64x128xf32>
    %c1_29 = arith.constant 1 : index
    %68 = memref.load %arg2[%c1_29] : memref<96xf32, #tpu.memory_space<smem>>
    %69 = vector.broadcast %68 : f32 to vector<64x128xf32>
    %70 = arith.mulf %69, %45 : vector<64x128xf32>
    %71 = arith.addf %67, %70 : vector<64x128xf32>
    %c2_30 = arith.constant 2 : index
    %72 = memref.load %arg2[%c2_30] : memref<96xf32, #tpu.memory_space<smem>>
    %73 = vector.broadcast %72 : f32 to vector<64x128xf32>
    %74 = arith.mulf %73, %59 : vector<64x128xf32>
    %75 = arith.addf %71, %74 : vector<64x128xf32>
    %c9 = arith.constant 9 : index
    %76 = memref.load %arg2[%c9] : memref<96xf32, #tpu.memory_space<smem>>
    %77 = vector.broadcast %76 : f32 to vector<64x128xf32>
    %78 = arith.addf %75, %77 : vector<64x128xf32>
    %c3 = arith.constant 3 : index
    %79 = memref.load %arg2[%c3] : memref<96xf32, #tpu.memory_space<smem>>
    %80 = vector.broadcast %79 : f32 to vector<64x128xf32>
    %81 = arith.mulf %80, %31 : vector<64x128xf32>
    %c4 = arith.constant 4 : index
    %82 = memref.load %arg2[%c4] : memref<96xf32, #tpu.memory_space<smem>>
    %83 = vector.broadcast %82 : f32 to vector<64x128xf32>
    %84 = arith.mulf %83, %45 : vector<64x128xf32>
    %85 = arith.addf %81, %84 : vector<64x128xf32>
    %c5 = arith.constant 5 : index
    %86 = memref.load %arg2[%c5] : memref<96xf32, #tpu.memory_space<smem>>
    %87 = vector.broadcast %86 : f32 to vector<64x128xf32>
    %88 = arith.mulf %87, %59 : vector<64x128xf32>
    %89 = arith.addf %85, %88 : vector<64x128xf32>
    %c10 = arith.constant 10 : index
    %90 = memref.load %arg2[%c10] : memref<96xf32, #tpu.memory_space<smem>>
    %91 = vector.broadcast %90 : f32 to vector<64x128xf32>
    %92 = arith.addf %89, %91 : vector<64x128xf32>
    %c6 = arith.constant 6 : index
    %93 = memref.load %arg2[%c6] : memref<96xf32, #tpu.memory_space<smem>>
    %94 = vector.broadcast %93 : f32 to vector<64x128xf32>
    %95 = arith.mulf %94, %31 : vector<64x128xf32>
    %c7 = arith.constant 7 : index
    %96 = memref.load %arg2[%c7] : memref<96xf32, #tpu.memory_space<smem>>
    %97 = vector.broadcast %96 : f32 to vector<64x128xf32>
    %98 = arith.mulf %97, %45 : vector<64x128xf32>
    %99 = arith.addf %95, %98 : vector<64x128xf32>
    %c8 = arith.constant 8 : index
    %100 = memref.load %arg2[%c8] : memref<96xf32, #tpu.memory_space<smem>>
    %101 = vector.broadcast %100 : f32 to vector<64x128xf32>
    %102 = arith.mulf %101, %59 : vector<64x128xf32>
    %103 = arith.addf %99, %102 : vector<64x128xf32>
    %c11 = arith.constant 11 : index
    %104 = memref.load %arg2[%c11] : memref<96xf32, #tpu.memory_space<smem>>
    %105 = vector.broadcast %104 : f32 to vector<64x128xf32>
    %106 = arith.addf %103, %105 : vector<64x128xf32>
    %107 = arith.select %64, %78, %62 : vector<64x128xi1>, vector<64x128xf32>
    %108 = arith.select %64, %92, %62 : vector<64x128xi1>, vector<64x128xf32>
    %109 = arith.select %64, %106, %62 : vector<64x128xi1>, vector<64x128xf32>
    %c1_i32 = arith.constant 1 : i32
    %110 = vector.broadcast %c1_i32 : i32 to vector<64x128xi32>
    %111 = arith.cmpi eq, %61, %110 : vector<64x128xi32>
    %c12 = arith.constant 12 : index
    %112 = memref.load %arg2[%c12] : memref<96xf32, #tpu.memory_space<smem>>
    %113 = vector.broadcast %112 : f32 to vector<64x128xf32>
    %114 = arith.mulf %113, %31 : vector<64x128xf32>
    %c13 = arith.constant 13 : index
    %115 = memref.load %arg2[%c13] : memref<96xf32, #tpu.memory_space<smem>>
    %116 = vector.broadcast %115 : f32 to vector<64x128xf32>
    %117 = arith.mulf %116, %45 : vector<64x128xf32>
    %118 = arith.addf %114, %117 : vector<64x128xf32>
    %c14 = arith.constant 14 : index
    %119 = memref.load %arg2[%c14] : memref<96xf32, #tpu.memory_space<smem>>
    %120 = vector.broadcast %119 : f32 to vector<64x128xf32>
    %121 = arith.mulf %120, %59 : vector<64x128xf32>
    %122 = arith.addf %118, %121 : vector<64x128xf32>
    %c21 = arith.constant 21 : index
    %123 = memref.load %arg2[%c21] : memref<96xf32, #tpu.memory_space<smem>>
    %124 = vector.broadcast %123 : f32 to vector<64x128xf32>
    %125 = arith.addf %122, %124 : vector<64x128xf32>
    %c15 = arith.constant 15 : index
    %126 = memref.load %arg2[%c15] : memref<96xf32, #tpu.memory_space<smem>>
    %127 = vector.broadcast %126 : f32 to vector<64x128xf32>
    %128 = arith.mulf %127, %31 : vector<64x128xf32>
    %c16 = arith.constant 16 : index
    %129 = memref.load %arg2[%c16] : memref<96xf32, #tpu.memory_space<smem>>
    %130 = vector.broadcast %129 : f32 to vector<64x128xf32>
    %131 = arith.mulf %130, %45 : vector<64x128xf32>
    %132 = arith.addf %128, %131 : vector<64x128xf32>
    %c17 = arith.constant 17 : index
    %133 = memref.load %arg2[%c17] : memref<96xf32, #tpu.memory_space<smem>>
    %134 = vector.broadcast %133 : f32 to vector<64x128xf32>
    %135 = arith.mulf %134, %59 : vector<64x128xf32>
    %136 = arith.addf %132, %135 : vector<64x128xf32>
    %c22 = arith.constant 22 : index
    %137 = memref.load %arg2[%c22] : memref<96xf32, #tpu.memory_space<smem>>
    %138 = vector.broadcast %137 : f32 to vector<64x128xf32>
    %139 = arith.addf %136, %138 : vector<64x128xf32>
    %c18 = arith.constant 18 : index
    %140 = memref.load %arg2[%c18] : memref<96xf32, #tpu.memory_space<smem>>
    %141 = vector.broadcast %140 : f32 to vector<64x128xf32>
    %142 = arith.mulf %141, %31 : vector<64x128xf32>
    %c19 = arith.constant 19 : index
    %143 = memref.load %arg2[%c19] : memref<96xf32, #tpu.memory_space<smem>>
    %144 = vector.broadcast %143 : f32 to vector<64x128xf32>
    %145 = arith.mulf %144, %45 : vector<64x128xf32>
    %146 = arith.addf %142, %145 : vector<64x128xf32>
    %c20 = arith.constant 20 : index
    %147 = memref.load %arg2[%c20] : memref<96xf32, #tpu.memory_space<smem>>
    %148 = vector.broadcast %147 : f32 to vector<64x128xf32>
    %149 = arith.mulf %148, %59 : vector<64x128xf32>
    %150 = arith.addf %146, %149 : vector<64x128xf32>
    %c23 = arith.constant 23 : index
    %151 = memref.load %arg2[%c23] : memref<96xf32, #tpu.memory_space<smem>>
    %152 = vector.broadcast %151 : f32 to vector<64x128xf32>
    %153 = arith.addf %150, %152 : vector<64x128xf32>
    %154 = arith.select %111, %125, %107 : vector<64x128xi1>, vector<64x128xf32>
    %155 = arith.select %111, %139, %108 : vector<64x128xi1>, vector<64x128xf32>
    %156 = arith.select %111, %153, %109 : vector<64x128xi1>, vector<64x128xf32>
    %c2_i32 = arith.constant 2 : i32
    %157 = vector.broadcast %c2_i32 : i32 to vector<64x128xi32>
    %158 = arith.cmpi eq, %61, %157 : vector<64x128xi32>
    %c24 = arith.constant 24 : index
    %159 = memref.load %arg2[%c24] : memref<96xf32, #tpu.memory_space<smem>>
    %160 = vector.broadcast %159 : f32 to vector<64x128xf32>
    %161 = arith.mulf %160, %31 : vector<64x128xf32>
    %c25 = arith.constant 25 : index
    %162 = memref.load %arg2[%c25] : memref<96xf32, #tpu.memory_space<smem>>
    %163 = vector.broadcast %162 : f32 to vector<64x128xf32>
    %164 = arith.mulf %163, %45 : vector<64x128xf32>
    %165 = arith.addf %161, %164 : vector<64x128xf32>
    %c26 = arith.constant 26 : index
    %166 = memref.load %arg2[%c26] : memref<96xf32, #tpu.memory_space<smem>>
    %167 = vector.broadcast %166 : f32 to vector<64x128xf32>
    %168 = arith.mulf %167, %59 : vector<64x128xf32>
    %169 = arith.addf %165, %168 : vector<64x128xf32>
    %c33 = arith.constant 33 : index
    %170 = memref.load %arg2[%c33] : memref<96xf32, #tpu.memory_space<smem>>
    %171 = vector.broadcast %170 : f32 to vector<64x128xf32>
    %172 = arith.addf %169, %171 : vector<64x128xf32>
    %c27 = arith.constant 27 : index
    %173 = memref.load %arg2[%c27] : memref<96xf32, #tpu.memory_space<smem>>
    %174 = vector.broadcast %173 : f32 to vector<64x128xf32>
    %175 = arith.mulf %174, %31 : vector<64x128xf32>
    %c28 = arith.constant 28 : index
    %176 = memref.load %arg2[%c28] : memref<96xf32, #tpu.memory_space<smem>>
    %177 = vector.broadcast %176 : f32 to vector<64x128xf32>
    %178 = arith.mulf %177, %45 : vector<64x128xf32>
    %179 = arith.addf %175, %178 : vector<64x128xf32>
    %c29 = arith.constant 29 : index
    %180 = memref.load %arg2[%c29] : memref<96xf32, #tpu.memory_space<smem>>
    %181 = vector.broadcast %180 : f32 to vector<64x128xf32>
    %182 = arith.mulf %181, %59 : vector<64x128xf32>
    %183 = arith.addf %179, %182 : vector<64x128xf32>
    %c34 = arith.constant 34 : index
    %184 = memref.load %arg2[%c34] : memref<96xf32, #tpu.memory_space<smem>>
    %185 = vector.broadcast %184 : f32 to vector<64x128xf32>
    %186 = arith.addf %183, %185 : vector<64x128xf32>
    %c30 = arith.constant 30 : index
    %187 = memref.load %arg2[%c30] : memref<96xf32, #tpu.memory_space<smem>>
    %188 = vector.broadcast %187 : f32 to vector<64x128xf32>
    %189 = arith.mulf %188, %31 : vector<64x128xf32>
    %c31 = arith.constant 31 : index
    %190 = memref.load %arg2[%c31] : memref<96xf32, #tpu.memory_space<smem>>
    %191 = vector.broadcast %190 : f32 to vector<64x128xf32>
    %192 = arith.mulf %191, %45 : vector<64x128xf32>
    %193 = arith.addf %189, %192 : vector<64x128xf32>
    %c32 = arith.constant 32 : index
    %194 = memref.load %arg2[%c32] : memref<96xf32, #tpu.memory_space<smem>>
    %195 = vector.broadcast %194 : f32 to vector<64x128xf32>
    %196 = arith.mulf %195, %59 : vector<64x128xf32>
    %197 = arith.addf %193, %196 : vector<64x128xf32>
    %c35 = arith.constant 35 : index
    %198 = memref.load %arg2[%c35] : memref<96xf32, #tpu.memory_space<smem>>
    %199 = vector.broadcast %198 : f32 to vector<64x128xf32>
    %200 = arith.addf %197, %199 : vector<64x128xf32>
    %201 = arith.select %158, %172, %154 : vector<64x128xi1>, vector<64x128xf32>
    %202 = arith.select %158, %186, %155 : vector<64x128xi1>, vector<64x128xf32>
    %203 = arith.select %158, %200, %156 : vector<64x128xi1>, vector<64x128xf32>
    %c3_i32 = arith.constant 3 : i32
    %204 = vector.broadcast %c3_i32 : i32 to vector<64x128xi32>
    %205 = arith.cmpi eq, %61, %204 : vector<64x128xi32>
    %c36 = arith.constant 36 : index
    %206 = memref.load %arg2[%c36] : memref<96xf32, #tpu.memory_space<smem>>
    %207 = vector.broadcast %206 : f32 to vector<64x128xf32>
    %208 = arith.mulf %207, %31 : vector<64x128xf32>
    %c37 = arith.constant 37 : index
    %209 = memref.load %arg2[%c37] : memref<96xf32, #tpu.memory_space<smem>>
    %210 = vector.broadcast %209 : f32 to vector<64x128xf32>
    %211 = arith.mulf %210, %45 : vector<64x128xf32>
    %212 = arith.addf %208, %211 : vector<64x128xf32>
    %c38 = arith.constant 38 : index
    %213 = memref.load %arg2[%c38] : memref<96xf32, #tpu.memory_space<smem>>
    %214 = vector.broadcast %213 : f32 to vector<64x128xf32>
    %215 = arith.mulf %214, %59 : vector<64x128xf32>
    %216 = arith.addf %212, %215 : vector<64x128xf32>
    %c45 = arith.constant 45 : index
    %217 = memref.load %arg2[%c45] : memref<96xf32, #tpu.memory_space<smem>>
    %218 = vector.broadcast %217 : f32 to vector<64x128xf32>
    %219 = arith.addf %216, %218 : vector<64x128xf32>
    %c39 = arith.constant 39 : index
    %220 = memref.load %arg2[%c39] : memref<96xf32, #tpu.memory_space<smem>>
    %221 = vector.broadcast %220 : f32 to vector<64x128xf32>
    %222 = arith.mulf %221, %31 : vector<64x128xf32>
    %c40 = arith.constant 40 : index
    %223 = memref.load %arg2[%c40] : memref<96xf32, #tpu.memory_space<smem>>
    %224 = vector.broadcast %223 : f32 to vector<64x128xf32>
    %225 = arith.mulf %224, %45 : vector<64x128xf32>
    %226 = arith.addf %222, %225 : vector<64x128xf32>
    %c41 = arith.constant 41 : index
    %227 = memref.load %arg2[%c41] : memref<96xf32, #tpu.memory_space<smem>>
    %228 = vector.broadcast %227 : f32 to vector<64x128xf32>
    %229 = arith.mulf %228, %59 : vector<64x128xf32>
    %230 = arith.addf %226, %229 : vector<64x128xf32>
    %c46 = arith.constant 46 : index
    %231 = memref.load %arg2[%c46] : memref<96xf32, #tpu.memory_space<smem>>
    %232 = vector.broadcast %231 : f32 to vector<64x128xf32>
    %233 = arith.addf %230, %232 : vector<64x128xf32>
    %c42 = arith.constant 42 : index
    %234 = memref.load %arg2[%c42] : memref<96xf32, #tpu.memory_space<smem>>
    %235 = vector.broadcast %234 : f32 to vector<64x128xf32>
    %236 = arith.mulf %235, %31 : vector<64x128xf32>
    %c43 = arith.constant 43 : index
    %237 = memref.load %arg2[%c43] : memref<96xf32, #tpu.memory_space<smem>>
    %238 = vector.broadcast %237 : f32 to vector<64x128xf32>
    %239 = arith.mulf %238, %45 : vector<64x128xf32>
    %240 = arith.addf %236, %239 : vector<64x128xf32>
    %c44 = arith.constant 44 : index
    %241 = memref.load %arg2[%c44] : memref<96xf32, #tpu.memory_space<smem>>
    %242 = vector.broadcast %241 : f32 to vector<64x128xf32>
    %243 = arith.mulf %242, %59 : vector<64x128xf32>
    %244 = arith.addf %240, %243 : vector<64x128xf32>
    %c47 = arith.constant 47 : index
    %245 = memref.load %arg2[%c47] : memref<96xf32, #tpu.memory_space<smem>>
    %246 = vector.broadcast %245 : f32 to vector<64x128xf32>
    %247 = arith.addf %244, %246 : vector<64x128xf32>
    %248 = arith.select %205, %219, %201 : vector<64x128xi1>, vector<64x128xf32>
    %249 = arith.select %205, %233, %202 : vector<64x128xi1>, vector<64x128xf32>
    %250 = arith.select %205, %247, %203 : vector<64x128xi1>, vector<64x128xf32>
    %c4_i32 = arith.constant 4 : i32
    %251 = vector.broadcast %c4_i32 : i32 to vector<64x128xi32>
    %252 = arith.cmpi eq, %61, %251 : vector<64x128xi32>
    %c48 = arith.constant 48 : index
    %253 = memref.load %arg2[%c48] : memref<96xf32, #tpu.memory_space<smem>>
    %254 = vector.broadcast %253 : f32 to vector<64x128xf32>
    %255 = arith.mulf %254, %31 : vector<64x128xf32>
    %c49 = arith.constant 49 : index
    %256 = memref.load %arg2[%c49] : memref<96xf32, #tpu.memory_space<smem>>
    %257 = vector.broadcast %256 : f32 to vector<64x128xf32>
    %258 = arith.mulf %257, %45 : vector<64x128xf32>
    %259 = arith.addf %255, %258 : vector<64x128xf32>
    %c50 = arith.constant 50 : index
    %260 = memref.load %arg2[%c50] : memref<96xf32, #tpu.memory_space<smem>>
    %261 = vector.broadcast %260 : f32 to vector<64x128xf32>
    %262 = arith.mulf %261, %59 : vector<64x128xf32>
    %263 = arith.addf %259, %262 : vector<64x128xf32>
    %c57 = arith.constant 57 : index
    %264 = memref.load %arg2[%c57] : memref<96xf32, #tpu.memory_space<smem>>
    %265 = vector.broadcast %264 : f32 to vector<64x128xf32>
    %266 = arith.addf %263, %265 : vector<64x128xf32>
    %c51 = arith.constant 51 : index
    %267 = memref.load %arg2[%c51] : memref<96xf32, #tpu.memory_space<smem>>
    %268 = vector.broadcast %267 : f32 to vector<64x128xf32>
    %269 = arith.mulf %268, %31 : vector<64x128xf32>
    %c52 = arith.constant 52 : index
    %270 = memref.load %arg2[%c52] : memref<96xf32, #tpu.memory_space<smem>>
    %271 = vector.broadcast %270 : f32 to vector<64x128xf32>
    %272 = arith.mulf %271, %45 : vector<64x128xf32>
    %273 = arith.addf %269, %272 : vector<64x128xf32>
    %c53 = arith.constant 53 : index
    %274 = memref.load %arg2[%c53] : memref<96xf32, #tpu.memory_space<smem>>
    %275 = vector.broadcast %274 : f32 to vector<64x128xf32>
    %276 = arith.mulf %275, %59 : vector<64x128xf32>
    %277 = arith.addf %273, %276 : vector<64x128xf32>
    %c58 = arith.constant 58 : index
    %278 = memref.load %arg2[%c58] : memref<96xf32, #tpu.memory_space<smem>>
    %279 = vector.broadcast %278 : f32 to vector<64x128xf32>
    %280 = arith.addf %277, %279 : vector<64x128xf32>
    %c54 = arith.constant 54 : index
    %281 = memref.load %arg2[%c54] : memref<96xf32, #tpu.memory_space<smem>>
    %282 = vector.broadcast %281 : f32 to vector<64x128xf32>
    %283 = arith.mulf %282, %31 : vector<64x128xf32>
    %c55 = arith.constant 55 : index
    %284 = memref.load %arg2[%c55] : memref<96xf32, #tpu.memory_space<smem>>
    %285 = vector.broadcast %284 : f32 to vector<64x128xf32>
    %286 = arith.mulf %285, %45 : vector<64x128xf32>
    %287 = arith.addf %283, %286 : vector<64x128xf32>
    %c56 = arith.constant 56 : index
    %288 = memref.load %arg2[%c56] : memref<96xf32, #tpu.memory_space<smem>>
    %289 = vector.broadcast %288 : f32 to vector<64x128xf32>
    %290 = arith.mulf %289, %59 : vector<64x128xf32>
    %291 = arith.addf %287, %290 : vector<64x128xf32>
    %c59 = arith.constant 59 : index
    %292 = memref.load %arg2[%c59] : memref<96xf32, #tpu.memory_space<smem>>
    %293 = vector.broadcast %292 : f32 to vector<64x128xf32>
    %294 = arith.addf %291, %293 : vector<64x128xf32>
    %295 = arith.select %252, %266, %248 : vector<64x128xi1>, vector<64x128xf32>
    %296 = arith.select %252, %280, %249 : vector<64x128xi1>, vector<64x128xf32>
    %297 = arith.select %252, %294, %250 : vector<64x128xi1>, vector<64x128xf32>
    %c5_i32 = arith.constant 5 : i32
    %298 = vector.broadcast %c5_i32 : i32 to vector<64x128xi32>
    %299 = arith.cmpi eq, %61, %298 : vector<64x128xi32>
    %c60 = arith.constant 60 : index
    %300 = memref.load %arg2[%c60] : memref<96xf32, #tpu.memory_space<smem>>
    %301 = vector.broadcast %300 : f32 to vector<64x128xf32>
    %302 = arith.mulf %301, %31 : vector<64x128xf32>
    %c61 = arith.constant 61 : index
    %303 = memref.load %arg2[%c61] : memref<96xf32, #tpu.memory_space<smem>>
    %304 = vector.broadcast %303 : f32 to vector<64x128xf32>
    %305 = arith.mulf %304, %45 : vector<64x128xf32>
    %306 = arith.addf %302, %305 : vector<64x128xf32>
    %c62 = arith.constant 62 : index
    %307 = memref.load %arg2[%c62] : memref<96xf32, #tpu.memory_space<smem>>
    %308 = vector.broadcast %307 : f32 to vector<64x128xf32>
    %309 = arith.mulf %308, %59 : vector<64x128xf32>
    %310 = arith.addf %306, %309 : vector<64x128xf32>
    %c69 = arith.constant 69 : index
    %311 = memref.load %arg2[%c69] : memref<96xf32, #tpu.memory_space<smem>>
    %312 = vector.broadcast %311 : f32 to vector<64x128xf32>
    %313 = arith.addf %310, %312 : vector<64x128xf32>
    %c63 = arith.constant 63 : index
    %314 = memref.load %arg2[%c63] : memref<96xf32, #tpu.memory_space<smem>>
    %315 = vector.broadcast %314 : f32 to vector<64x128xf32>
    %316 = arith.mulf %315, %31 : vector<64x128xf32>
    %c64 = arith.constant 64 : index
    %317 = memref.load %arg2[%c64] : memref<96xf32, #tpu.memory_space<smem>>
    %318 = vector.broadcast %317 : f32 to vector<64x128xf32>
    %319 = arith.mulf %318, %45 : vector<64x128xf32>
    %320 = arith.addf %316, %319 : vector<64x128xf32>
    %c65 = arith.constant 65 : index
    %321 = memref.load %arg2[%c65] : memref<96xf32, #tpu.memory_space<smem>>
    %322 = vector.broadcast %321 : f32 to vector<64x128xf32>
    %323 = arith.mulf %322, %59 : vector<64x128xf32>
    %324 = arith.addf %320, %323 : vector<64x128xf32>
    %c70 = arith.constant 70 : index
    %325 = memref.load %arg2[%c70] : memref<96xf32, #tpu.memory_space<smem>>
    %326 = vector.broadcast %325 : f32 to vector<64x128xf32>
    %327 = arith.addf %324, %326 : vector<64x128xf32>
    %c66 = arith.constant 66 : index
    %328 = memref.load %arg2[%c66] : memref<96xf32, #tpu.memory_space<smem>>
    %329 = vector.broadcast %328 : f32 to vector<64x128xf32>
    %330 = arith.mulf %329, %31 : vector<64x128xf32>
    %c67 = arith.constant 67 : index
    %331 = memref.load %arg2[%c67] : memref<96xf32, #tpu.memory_space<smem>>
    %332 = vector.broadcast %331 : f32 to vector<64x128xf32>
    %333 = arith.mulf %332, %45 : vector<64x128xf32>
    %334 = arith.addf %330, %333 : vector<64x128xf32>
    %c68 = arith.constant 68 : index
    %335 = memref.load %arg2[%c68] : memref<96xf32, #tpu.memory_space<smem>>
    %336 = vector.broadcast %335 : f32 to vector<64x128xf32>
    %337 = arith.mulf %336, %59 : vector<64x128xf32>
    %338 = arith.addf %334, %337 : vector<64x128xf32>
    %c71 = arith.constant 71 : index
    %339 = memref.load %arg2[%c71] : memref<96xf32, #tpu.memory_space<smem>>
    %340 = vector.broadcast %339 : f32 to vector<64x128xf32>
    %341 = arith.addf %338, %340 : vector<64x128xf32>
    %342 = arith.select %299, %313, %295 : vector<64x128xi1>, vector<64x128xf32>
    %343 = arith.select %299, %327, %296 : vector<64x128xi1>, vector<64x128xf32>
    %344 = arith.select %299, %341, %297 : vector<64x128xi1>, vector<64x128xf32>
    %c6_i32 = arith.constant 6 : i32
    %345 = vector.broadcast %c6_i32 : i32 to vector<64x128xi32>
    %346 = arith.cmpi eq, %61, %345 : vector<64x128xi32>
    %c72 = arith.constant 72 : index
    %347 = memref.load %arg2[%c72] : memref<96xf32, #tpu.memory_space<smem>>
    %348 = vector.broadcast %347 : f32 to vector<64x128xf32>
    %349 = arith.mulf %348, %31 : vector<64x128xf32>
    %c73 = arith.constant 73 : index
    %350 = memref.load %arg2[%c73] : memref<96xf32, #tpu.memory_space<smem>>
    %351 = vector.broadcast %350 : f32 to vector<64x128xf32>
    %352 = arith.mulf %351, %45 : vector<64x128xf32>
    %353 = arith.addf %349, %352 : vector<64x128xf32>
    %c74 = arith.constant 74 : index
    %354 = memref.load %arg2[%c74] : memref<96xf32, #tpu.memory_space<smem>>
    %355 = vector.broadcast %354 : f32 to vector<64x128xf32>
    %356 = arith.mulf %355, %59 : vector<64x128xf32>
    %357 = arith.addf %353, %356 : vector<64x128xf32>
    %c81 = arith.constant 81 : index
    %358 = memref.load %arg2[%c81] : memref<96xf32, #tpu.memory_space<smem>>
    %359 = vector.broadcast %358 : f32 to vector<64x128xf32>
    %360 = arith.addf %357, %359 : vector<64x128xf32>
    %c75 = arith.constant 75 : index
    %361 = memref.load %arg2[%c75] : memref<96xf32, #tpu.memory_space<smem>>
    %362 = vector.broadcast %361 : f32 to vector<64x128xf32>
    %363 = arith.mulf %362, %31 : vector<64x128xf32>
    %c76 = arith.constant 76 : index
    %364 = memref.load %arg2[%c76] : memref<96xf32, #tpu.memory_space<smem>>
    %365 = vector.broadcast %364 : f32 to vector<64x128xf32>
    %366 = arith.mulf %365, %45 : vector<64x128xf32>
    %367 = arith.addf %363, %366 : vector<64x128xf32>
    %c77 = arith.constant 77 : index
    %368 = memref.load %arg2[%c77] : memref<96xf32, #tpu.memory_space<smem>>
    %369 = vector.broadcast %368 : f32 to vector<64x128xf32>
    %370 = arith.mulf %369, %59 : vector<64x128xf32>
    %371 = arith.addf %367, %370 : vector<64x128xf32>
    %c82 = arith.constant 82 : index
    %372 = memref.load %arg2[%c82] : memref<96xf32, #tpu.memory_space<smem>>
    %373 = vector.broadcast %372 : f32 to vector<64x128xf32>
    %374 = arith.addf %371, %373 : vector<64x128xf32>
    %c78 = arith.constant 78 : index
    %375 = memref.load %arg2[%c78] : memref<96xf32, #tpu.memory_space<smem>>
    %376 = vector.broadcast %375 : f32 to vector<64x128xf32>
    %377 = arith.mulf %376, %31 : vector<64x128xf32>
    %c79 = arith.constant 79 : index
    %378 = memref.load %arg2[%c79] : memref<96xf32, #tpu.memory_space<smem>>
    %379 = vector.broadcast %378 : f32 to vector<64x128xf32>
    %380 = arith.mulf %379, %45 : vector<64x128xf32>
    %381 = arith.addf %377, %380 : vector<64x128xf32>
    %c80 = arith.constant 80 : index
    %382 = memref.load %arg2[%c80] : memref<96xf32, #tpu.memory_space<smem>>
    %383 = vector.broadcast %382 : f32 to vector<64x128xf32>
    %384 = arith.mulf %383, %59 : vector<64x128xf32>
    %385 = arith.addf %381, %384 : vector<64x128xf32>
    %c83 = arith.constant 83 : index
    %386 = memref.load %arg2[%c83] : memref<96xf32, #tpu.memory_space<smem>>
    %387 = vector.broadcast %386 : f32 to vector<64x128xf32>
    %388 = arith.addf %385, %387 : vector<64x128xf32>
    %389 = arith.select %346, %360, %342 : vector<64x128xi1>, vector<64x128xf32>
    %390 = arith.select %346, %374, %343 : vector<64x128xi1>, vector<64x128xf32>
    %391 = arith.select %346, %388, %344 : vector<64x128xi1>, vector<64x128xf32>
    %c7_i32 = arith.constant 7 : i32
    %392 = vector.broadcast %c7_i32 : i32 to vector<64x128xi32>
    %393 = arith.cmpi eq, %61, %392 : vector<64x128xi32>
    %c84 = arith.constant 84 : index
    %394 = memref.load %arg2[%c84] : memref<96xf32, #tpu.memory_space<smem>>
    %395 = vector.broadcast %394 : f32 to vector<64x128xf32>
    %396 = arith.mulf %395, %31 : vector<64x128xf32>
    %c85 = arith.constant 85 : index
    %397 = memref.load %arg2[%c85] : memref<96xf32, #tpu.memory_space<smem>>
    %398 = vector.broadcast %397 : f32 to vector<64x128xf32>
    %399 = arith.mulf %398, %45 : vector<64x128xf32>
    %400 = arith.addf %396, %399 : vector<64x128xf32>
    %c86 = arith.constant 86 : index
    %401 = memref.load %arg2[%c86] : memref<96xf32, #tpu.memory_space<smem>>
    %402 = vector.broadcast %401 : f32 to vector<64x128xf32>
    %403 = arith.mulf %402, %59 : vector<64x128xf32>
    %404 = arith.addf %400, %403 : vector<64x128xf32>
    %c93 = arith.constant 93 : index
    %405 = memref.load %arg2[%c93] : memref<96xf32, #tpu.memory_space<smem>>
    %406 = vector.broadcast %405 : f32 to vector<64x128xf32>
    %407 = arith.addf %404, %406 : vector<64x128xf32>
    %c87 = arith.constant 87 : index
    %408 = memref.load %arg2[%c87] : memref<96xf32, #tpu.memory_space<smem>>
    %409 = vector.broadcast %408 : f32 to vector<64x128xf32>
    %410 = arith.mulf %409, %31 : vector<64x128xf32>
    %c88 = arith.constant 88 : index
    %411 = memref.load %arg2[%c88] : memref<96xf32, #tpu.memory_space<smem>>
    %412 = vector.broadcast %411 : f32 to vector<64x128xf32>
    %413 = arith.mulf %412, %45 : vector<64x128xf32>
    %414 = arith.addf %410, %413 : vector<64x128xf32>
    %c89 = arith.constant 89 : index
    %415 = memref.load %arg2[%c89] : memref<96xf32, #tpu.memory_space<smem>>
    %416 = vector.broadcast %415 : f32 to vector<64x128xf32>
    %417 = arith.mulf %416, %59 : vector<64x128xf32>
    %418 = arith.addf %414, %417 : vector<64x128xf32>
    %c94 = arith.constant 94 : index
    %419 = memref.load %arg2[%c94] : memref<96xf32, #tpu.memory_space<smem>>
    %420 = vector.broadcast %419 : f32 to vector<64x128xf32>
    %421 = arith.addf %418, %420 : vector<64x128xf32>
    %c90 = arith.constant 90 : index
    %422 = memref.load %arg2[%c90] : memref<96xf32, #tpu.memory_space<smem>>
    %423 = vector.broadcast %422 : f32 to vector<64x128xf32>
    %424 = arith.mulf %423, %31 : vector<64x128xf32>
    %c91 = arith.constant 91 : index
    %425 = memref.load %arg2[%c91] : memref<96xf32, #tpu.memory_space<smem>>
    %426 = vector.broadcast %425 : f32 to vector<64x128xf32>
    %427 = arith.mulf %426, %45 : vector<64x128xf32>
    %428 = arith.addf %424, %427 : vector<64x128xf32>
    %c92 = arith.constant 92 : index
    %429 = memref.load %arg2[%c92] : memref<96xf32, #tpu.memory_space<smem>>
    %430 = vector.broadcast %429 : f32 to vector<64x128xf32>
    %431 = arith.mulf %430, %59 : vector<64x128xf32>
    %432 = arith.addf %428, %431 : vector<64x128xf32>
    %c95 = arith.constant 95 : index
    %433 = memref.load %arg2[%c95] : memref<96xf32, #tpu.memory_space<smem>>
    %434 = vector.broadcast %433 : f32 to vector<64x128xf32>
    %435 = arith.addf %432, %434 : vector<64x128xf32>
    %436 = arith.select %393, %407, %389 : vector<64x128xi1>, vector<64x128xf32>
    %437 = arith.select %393, %421, %390 : vector<64x128xi1>, vector<64x128xf32>
    %438 = arith.select %393, %435, %391 : vector<64x128xi1>, vector<64x128xf32>
    %c0_31 = arith.constant 0 : index
    %c0_32 = arith.constant 0 : index
    %439 = vector.load %arg6[%c0_31, %c0_32] : memref<64x128xf32, #tpu.memory_space<vmem>>, vector<64x128xf32>
    %cst_33 = arith.constant 1.000000e+00 : f32
    %440 = vector.broadcast %cst_33 : f32 to vector<64x128xf32>
    %441 = arith.subf %440, %439 : vector<64x128xf32>
    %cst_34 = arith.constant 5.000000e-01 : f32
    %442 = vector.broadcast %cst_34 : f32 to vector<64x128xf32>
    %443 = arith.mulf %436, %442 : vector<64x128xf32>
    %444 = math.floor %443 : vector<64x128xf32>
    %cst_35 = arith.constant 2.000000e+00 : f32
    %445 = vector.broadcast %cst_35 : f32 to vector<64x128xf32>
    %446 = arith.mulf %445, %444 : vector<64x128xf32>
    %447 = arith.subf %436, %446 : vector<64x128xf32>
    %cst_36 = arith.constant 1.000000e+00 : f32
    %448 = vector.broadcast %cst_36 : f32 to vector<64x128xf32>
    %449 = arith.cmpf ogt, %447, %448 : vector<64x128xf32>
    %cst_37 = arith.constant 2.000000e+00 : f32
    %450 = vector.broadcast %cst_37 : f32 to vector<64x128xf32>
    %451 = arith.subf %450, %447 : vector<64x128xf32>
    %452 = arith.select %449, %451, %447 : vector<64x128xi1>, vector<64x128xf32>
    %c0_38 = arith.constant 0 : index
    %c0_39 = arith.constant 0 : index
    %c0_40 = arith.constant 0 : index
    %453 = vector.load %arg8[%c0_38, %c0_39, %c0_40] : memref<3x64x128xf32, #tpu.memory_space<vmem>>, vector<1x64x128xf32>
    %454 = vector.shape_cast %453 : vector<1x64x128xf32> to vector<64x128xf32>
    %455 = arith.mulf %441, %454 : vector<64x128xf32>
    %456 = arith.addf %452, %455 : vector<64x128xf32>
    %c0_41 = arith.constant 0 : index
    %c0_42 = arith.constant 0 : index
    %c0_43 = arith.constant 0 : index
    %457 = vector.load %arg9[%c0_41, %c0_42, %c0_43] : memref<3x64x128xf32, #tpu.memory_space<vmem>>, vector<1x64x128xf32>
    %458 = vector.shape_cast %457 : vector<1x64x128xf32> to vector<64x128xf32>
    %459 = vector.shape_cast %456 : vector<64x128xf32> to vector<1x64x128xf32>
    tpu.vector_store %arg9[%c0_41, %c0_42, %c0_43], %459 {strides = array<i32>} : memref<3x64x128xf32, #tpu.memory_space<vmem>>, vector<1x64x128xf32>,
    %cst_44 = arith.constant 5.000000e-01 : f32
    %460 = vector.broadcast %cst_44 : f32 to vector<64x128xf32>
    %461 = arith.mulf %437, %460 : vector<64x128xf32>
    %462 = math.floor %461 : vector<64x128xf32>
    %cst_45 = arith.constant 2.000000e+00 : f32
    %463 = vector.broadcast %cst_45 : f32 to vector<64x128xf32>
    %464 = arith.mulf %463, %462 : vector<64x128xf32>
    %465 = arith.subf %437, %464 : vector<64x128xf32>
    %cst_46 = arith.constant 1.000000e+00 : f32
    %466 = vector.broadcast %cst_46 : f32 to vector<64x128xf32>
    %467 = arith.cmpf ogt, %465, %466 : vector<64x128xf32>
    %cst_47 = arith.constant 2.000000e+00 : f32
    %468 = vector.broadcast %cst_47 : f32 to vector<64x128xf32>
    %469 = arith.subf %468, %465 : vector<64x128xf32>
    %470 = arith.select %467, %469, %465 : vector<64x128xi1>, vector<64x128xf32>
    %c1_48 = arith.constant 1 : index
    %c0_49 = arith.constant 0 : index
    %c0_50 = arith.constant 0 : index
    %471 = vector.load %arg8[%c1_48, %c0_49, %c0_50] : memref<3x64x128xf32, #tpu.memory_space<vmem>>, vector<1x64x128xf32>
    %472 = vector.shape_cast %471 : vector<1x64x128xf32> to vector<64x128xf32>
    %473 = arith.mulf %441, %472 : vector<64x128xf32>
    %474 = arith.addf %470, %473 : vector<64x128xf32>
    %c1_51 = arith.constant 1 : index
    %c0_52 = arith.constant 0 : index
    %c0_53 = arith.constant 0 : index
    %475 = vector.load %arg9[%c1_51, %c0_52, %c0_53] : memref<3x64x128xf32, #tpu.memory_space<vmem>>, vector<1x64x128xf32>
    %476 = vector.shape_cast %475 : vector<1x64x128xf32> to vector<64x128xf32>
    %477 = vector.shape_cast %474 : vector<64x128xf32> to vector<1x64x128xf32>
    tpu.vector_store %arg9[%c1_51, %c0_52, %c0_53], %477 {strides = array<i32>} : memref<3x64x128xf32, #tpu.memory_space<vmem>>, vector<1x64x128xf32>,
    %cst_54 = arith.constant 5.000000e-01 : f32
    %478 = vector.broadcast %cst_54 : f32 to vector<64x128xf32>
    %479 = arith.mulf %438, %478 : vector<64x128xf32>
    %480 = math.floor %479 : vector<64x128xf32>
    %cst_55 = arith.constant 2.000000e+00 : f32
    %481 = vector.broadcast %cst_55 : f32 to vector<64x128xf32>
    %482 = arith.mulf %481, %480 : vector<64x128xf32>
    %483 = arith.subf %438, %482 : vector<64x128xf32>
    %cst_56 = arith.constant 1.000000e+00 : f32
    %484 = vector.broadcast %cst_56 : f32 to vector<64x128xf32>
    %485 = arith.cmpf ogt, %483, %484 : vector<64x128xf32>
    %cst_57 = arith.constant 2.000000e+00 : f32
    %486 = vector.broadcast %cst_57 : f32 to vector<64x128xf32>
    %487 = arith.subf %486, %483 : vector<64x128xf32>
    %488 = arith.select %485, %487, %483 : vector<64x128xi1>, vector<64x128xf32>
    %c2_58 = arith.constant 2 : index
    %c0_59 = arith.constant 0 : index
    %c0_60 = arith.constant 0 : index
    %489 = vector.load %arg8[%c2_58, %c0_59, %c0_60] : memref<3x64x128xf32, #tpu.memory_space<vmem>>, vector<1x64x128xf32>
    %490 = vector.shape_cast %489 : vector<1x64x128xf32> to vector<64x128xf32>
    %491 = arith.mulf %441, %490 : vector<64x128xf32>
    %492 = arith.addf %488, %491 : vector<64x128xf32>
    %c2_61 = arith.constant 2 : index
    %c0_62 = arith.constant 0 : index
    %c0_63 = arith.constant 0 : index
    %493 = vector.load %arg9[%c2_61, %c0_62, %c0_63] : memref<3x64x128xf32, #tpu.memory_space<vmem>>, vector<1x64x128xf32>
    %494 = vector.shape_cast %493 : vector<1x64x128xf32> to vector<64x128xf32>
    %495 = vector.shape_cast %492 : vector<64x128xf32> to vector<1x64x128xf32>
    tpu.vector_store %arg9[%c2_61, %c0_62, %c0_63], %495 {strides = array<i32>} : memref<3x64x128xf32, #tpu.memory_space<vmem>>, vector<1x64x128xf32>,
    return
  }
  func.func @transform_0(%arg0: i32) -> i32 {
    %c0_i32 = arith.constant 0 : i32
    %c0_i32_0 = arith.constant 0 : i32
    return %c0_i32 : i32
  }
  func.func @transform_1(%arg0: i32) -> i32 {
    %c0_i32 = arith.constant 0 : i32
    %c0_i32_0 = arith.constant 0 : i32
    return %c0_i32 : i32
  }
  func.func @transform_2(%arg0: i32) -> (i32, i32, i32) {
    %c0_i32 = arith.constant 0 : i32
    %c0_i32_0 = arith.constant 0 : i32
    %c0_i32_1 = arith.constant 0 : i32
    return %c0_i32, %arg0, %c0_i32_0 : i32, i32, i32
  }
  func.func @transform_3(%arg0: i32) -> (i32, i32) {
    %c0_i32 = arith.constant 0 : i32
    %c0_i32_0 = arith.constant 0 : i32
    return %arg0, %c0_i32 : i32, i32
  }
  func.func @transform_4(%arg0: i32) -> (i32, i32) {
    %c0_i32 = arith.constant 0 : i32
    %c0_i32_0 = arith.constant 0 : i32
    return %arg0, %c0_i32 : i32, i32
  }
  func.func @transform_5(%arg0: i32) -> (i32, i32) {
    %c0_i32 = arith.constant 0 : i32
    %c0_i32_0 = arith.constant 0 : i32
    return %arg0, %c0_i32 : i32, i32
  }
  func.func @transform_6(%arg0: i32) -> (i32, i32) {
    %c0_i32 = arith.constant 0 : i32
    %c0_i32_0 = arith.constant 0 : i32
    return %arg0, %c0_i32 : i32, i32
  }
  func.func @transform_7(%arg0: i32) -> (i32, i32, i32) {
    %c0_i32 = arith.constant 0 : i32
    %c0_i32_0 = arith.constant 0 : i32
    %c0_i32_1 = arith.constant 0 : i32
    return %c0_i32, %arg0, %c0_i32_0 : i32, i32, i32
  }
  func.func @transform_8(%arg0: i32) -> (i32, i32, i32) {
    %c0_i32 = arith.constant 0 : i32
    %c0_i32_0 = arith.constant 0 : i32
    %c0_i32_1 = arith.constant 0 : i32
    return %c0_i32, %arg0, %c0_i32_0 : i32, i32, i32
  }
}

</mosaic_0001>

<llo_original>
// kernel: tpu_custom_call.1
$region0: #{tpu_custom_call.1}
  #allocation0 [shape = 'u32[]', space=smem, size = 0x4, offset = 0x4, fixed_abs, tag = 'smem constant byte address 0x4 - core index']
  #allocation1 [shape = 'u32[144,128]{1,0:T(1,128)}', space=vmem, size = 0x12000, scoped, tag = 'internal scratch']
  %s0 = inlined_call_operand.hbm [shape: f32[3], index: 0, kind: input, shape index: {}]
  %s1 = inlined_call_operand.vmem [shape: f32[96], index: 1, kind: input, shape index: {}]
  %s2 = inlined_call_operand.hbm [shape: f32[3,64,128], index: 2, kind: input, shape index: {}]
  %s3 = inlined_call_operand.hbm [shape: f32[64,128], index: 3, kind: input, shape index: {}]
  %s4 = inlined_call_operand.hbm [shape: f32[64,128], index: 4, kind: input, shape index: {}]
  %s5 = inlined_call_operand.hbm [shape: f32[64,128], index: 5, kind: input, shape index: {}]
  %s6 = inlined_call_operand.hbm [shape: s8[64,128], index: 6, kind: input, shape index: {}]
  %s7 = inlined_call_operand.hbm [shape: f32[3,64,128], index: 7, kind: input, shape index: {}]
  %s8 = inlined_call_operand.hbm [shape: f32[3,64,128], index: 8, kind: output, shape index: {}]
  %s9 = sld [smem:[#allocation0]]
  $region74: #{tpu_custom_call.1} parent=0
    _
  %s11 = ssub.s32 1, %s9
  %s12 = scalar_select 0, %s11, %s9
  $region1: #{tpu_custom_call.1} parent=0
    #allocation2 [shape = 'u8[512]{0}', space=smem, size = 0x200, scoped, tag = 'input window, operand 0, single buffered']
    #allocation3 [shape = 's32[1]{0}', space=sflag, size = 0x4, scoped, tag = 'scoped memory for tpu_custom_call.1']
    #allocation4 [shape = 's32[1]{0}', space=sflag, size = 0x4, scoped, tag = 'scoped memory for tpu_custom_call.1']
    #allocation5 [shape = 's32[1]{0}', space=sflag, size = 0x4, scoped, tag = 'scoped memory for tpu_custom_call.1']
    #allocation6 [shape = 's32[1]{0}', space=sflag, size = 0x4, scoped, tag = 'scoped memory for tpu_custom_call.1']
    #allocation7 [shape = 'u8[512]{0}', space=smem, size = 0x200, scoped, tag = 'input window, operand 1, single buffered']
    #allocation8 [shape = 'u8[98304]{0}', space=vmem, size = 0x18000, scoped, tag = 'input window, operand 2, single buffered']
    #allocation9 [shape = 'u8[32768]{0}', space=vmem, size = 0x8000, scoped, tag = 'input window, operand 3, single buffered']
    #allocation10 [shape = 's32[1]{0}', space=sflag, size = 0x4, scoped, tag = 'scoped memory for tpu_custom_call.1']
    #allocation11 [shape = 'u8[32768]{0}', space=vmem, size = 0x8000, scoped, tag = 'input window, operand 4, single buffered']
    #allocation12 [shape = 'u8[32768]{0}', space=vmem, size = 0x8000, scoped, tag = 'input window, operand 5, single buffered']
    #allocation13 [shape = 's32[1]{0}', space=sflag, size = 0x4, scoped, tag = 'scoped memory for tpu_custom_call.1']
    #allocation14 [shape = 'u8[8192]{0}', space=vmem, size = 0x2000, scoped, tag = 'input window, operand 6, single buffered']
    #allocation15 [shape = 'u8[98304]{0}', space=vmem, size = 0x18000, scoped, tag = 'input window, operand 7, single buffered']
    #allocation16 [shape = 's32[1]{0}', space=sflag, size = 0x4, scoped, tag = 'scoped memory for tpu_custom_call.1']
    #allocation17 [shape = 'u8[98304]{0}', space=vmem, size = 0x18000, scoped, tag = 'output window, operand 0, single buffered']
    %13 = vsyncpa [#allocation5], 0
    %14 = vsyncpa [#allocation6], 0
    %15 = vsyncpa [#allocation3], 0
    %16 = vsyncpa [#allocation10], 0
    %17 = vsyncpa [#allocation13], 0
    %18 = vsyncpa [#allocation16], 0
    %19 = vsyncpa [#allocation4], 0
    // Predicated region
    $region2: #{tpu_custom_call.1} parent=1 // pred_check
      _
    $region3: #{tpu_custom_call.1} parent=1 // pred_check_branch
      %21 = sbr.rel (0) target = $region5
    $region4: #{tpu_custom_call.1} parent=1 // pred_region
      %s23 = ssub.s32 16, 16
      %24 = vsyncadd [#allocation5], %s23
      %27 = dma.hbm_to_smem %s0, 16, [#allocation2], [#allocation5]
    $region5: #{tpu_custom_call.1} parent=1 // pred_fallthru
      _
    // Predicated region
    $region6: #{tpu_custom_call.1} parent=1 // pred_check
      _
    $region7: #{tpu_custom_call.1} parent=1 // pred_check_branch
      %29 = sbr.rel (0) target = $region9
    $region8: #{tpu_custom_call.1} parent=1 // pred_region
      %s31 = ssub.s32 16, 16
      %32 = vsyncadd [#allocation6], %s31
      %s34 = sshll.u32 %s1, 4
      %s35 = int_to_ptr.vmem [resolvable:$true] %s34
      %37 = dma.vmem_to_smem %s35, 16, [#allocation7], [#allocation6]
    $region9: #{tpu_custom_call.1} parent=1 // pred_fallthru
      _
    // Predicated region
    $region10: #{tpu_custom_call.1} parent=1 // pred_check
      _
    $region11: #{tpu_custom_call.1} parent=1 // pred_check_branch
      %39 = sbr.rel (0) target = $region13
    $region12: #{tpu_custom_call.1} parent=1 // pred_region
      %s41 = ssub.s32 3072, 3072
      %42 = vsyncadd [#allocation3], %s41
      %s43 = sshll.u32 [#allocation8], 4
      %s44 = int_to_ptr.vmem [resolvable:$true] %s43
      %49 = dma.hbm_to_vmem [thread:$0]  %s2, 3072, %s44, [#allocation3], 128, 128, 8
    $region13: #{tpu_custom_call.1} parent=1 // pred_fallthru
      _
    // Predicated region
    $region14: #{tpu_custom_call.1} parent=1 // pred_check
      _
    $region15: #{tpu_custom_call.1} parent=1 // pred_check_branch
      %51 = sbr.rel (0) target = $region17
    $region16: #{tpu_custom_call.1} parent=1 // pred_region
      %s53 = ssub.s32 1024, 1024
      %54 = vsyncadd [#allocation10], %s53
      %s55 = sshll.u32 [#allocation9], 4
      %s56 = int_to_ptr.vmem [resolvable:$true] %s55
      %61 = dma.hbm_to_vmem [thread:$0]  %s3, 1024, %s56, [#allocation10], 128, 128, 8
    $region17: #{tpu_custom_call.1} parent=1 // pred_fallthru
      _
    // Predicated region
    $region18: #{tpu_custom_call.1} parent=1 // pred_check
      _
    $region19: #{tpu_custom_call.1} parent=1 // pred_check_branch
      %63 = sbr.rel (0) target = $region21
    $region20: #{tpu_custom_call.1} parent=1 // pred_region
      %s65 = ssub.s32 1024, 1024
      %66 = vsyncadd [#allocation10], %s65
      %s67 = sshll.u32 [#allocation11], 4
      %s68 = int_to_ptr.vmem [resolvable:$true] %s67
      %73 = dma.hbm_to_vmem [thread:$0]  %s4, 1024, %s68, [#allocation10], 128, 128, 8
    $region21: #{tpu_custom_call.1} parent=1 // pred_fallthru
      _
    // Predicated region
    $region22: #{tpu_custom_call.1} parent=1 // pred_check
      _
    $region23: #{tpu_custom_call.1} parent=1 // pred_check_branch
      %75 = sbr.rel (0) target = $region25
    $region24: #{tpu_custom_call.1} parent=1 // pred_region
      %s77 = ssub.s32 1024, 1024
      %78 = vsyncadd [#allocation13], %s77
      %s79 = sshll.u32 [#allocation12], 4
      %s80 = int_to_ptr.vmem [resolvable:$true] %s79
      %85 = dma.hbm_to_vmem [thread:$0]  %s5, 1024, %s80, [#allocation13], 128, 128, 8
    $region25: #{tpu_custom_call.1} parent=1 // pred_fallthru
      _
    // Predicated region
    $region26: #{tpu_custom_call.1} parent=1 // pred_check
      _
    $region27: #{tpu_custom_call.1} parent=1 // pred_check_branch
      %87 = sbr.rel (0) target = $region29
    $region28: #{tpu_custom_call.1} parent=1 // pred_region
      %s89 = ssub.s32 256, 256
      %90 = vsyncadd [#allocation13], %s89
      %s91 = sshll.u32 [#allocation14], 4
      %s92 = int_to_ptr.vmem [resolvable:$true] %s91
      %97 = dma.hbm_to_vmem [thread:$0]  %s6, 256, %s92, [#allocation13], 128, 128, 8
    $region29: #{tpu_custom_call.1} parent=1 // pred_fallthru
      _
    // Predicated region
    $region30: #{tpu_custom_call.1} parent=1 // pred_check
      _
    $region31: #{tpu_custom_call.1} parent=1 // pred_check_branch
      %99 = sbr.rel (0) target = $region33
    $region32: #{tpu_custom_call.1} parent=1 // pred_region
      %s101 = ssub.s32 3072, 3072
      %102 = vsyncadd [#allocation16], %s101
      %s103 = sshll.u32 [#allocation15], 4
      %s104 = int_to_ptr.vmem [resolvable:$true] %s103
      %109 = dma.hbm_to_vmem [thread:$0]  %s7, 3072, %s104, [#allocation16], 128, 128, 8
    $region33: #{tpu_custom_call.1} parent=1 // pred_fallthru
      _
    // Predicated region
    $region34: #{tpu_custom_call.1} parent=1 // pred_check
      _
    $region35: #{tpu_custom_call.1} parent=1 // pred_check_branch
      %111 = sbr.rel (0) target = $region37
    $region36: #{tpu_custom_call.1} parent=1 // pred_region
      %112 = dma.done [#allocation5], 16
    $region37: #{tpu_custom_call.1} parent=1 // pred_fallthru
      _
    // Predicated region
    $region38: #{tpu_custom_call.1} parent=1 // pred_check
      _
    $region39: #{tpu_custom_call.1} parent=1 // pred_check_branch
      %114 = sbr.rel (0) target = $region41
    $region40: #{tpu_custom_call.1} parent=1 // pred_region
      %115 = dma.done [#allocation6], 16
    $region41: #{tpu_custom_call.1} parent=1 // pred_fallthru
      _
    // Predicated region
    $region42: #{tpu_custom_call.1} parent=1 // pred_check
      _
    $region43: #{tpu_custom_call.1} parent=1 // pred_check_branch
      %117 = sbr.rel (0) target = $region45
    $region44: #{tpu_custom_call.1} parent=1 // pred_region
      %118 = dma.done [#allocation3], 3072
    $region45: #{tpu_custom_call.1} parent=1 // pred_fallthru
      _
    // Predicated region
    $region46: #{tpu_custom_call.1} parent=1 // pred_check
      _
    $region47: #{tpu_custom_call.1} parent=1 // pred_check_branch
      %120 = sbr.rel (0) target = $region49
    $region48: #{tpu_custom_call.1} parent=1 // pred_region
      %121 = dma.done [#allocation10], 1024
    $region49: #{tpu_custom_call.1} parent=1 // pred_fallthru
      _
    // Predicated region
    $region50: #{tpu_custom_call.1} parent=1 // pred_check
      _
    $region51: #{tpu_custom_call.1} parent=1 // pred_check_branch
      %123 = sbr.rel (0) target = $region53
    $region52: #{tpu_custom_call.1} parent=1 // pred_region
      %124 = dma.done [#allocation10], 1024
    $region53: #{tpu_custom_call.1} parent=1 // pred_fallthru
      _
    // Predicated region
    $region54: #{tpu_custom_call.1} parent=1 // pred_check
      _
    $region55: #{tpu_custom_call.1} parent=1 // pred_check_branch
      %126 = sbr.rel (0) target = $region57
    $region56: #{tpu_custom_call.1} parent=1 // pred_region
      %127 = dma.done [#allocation13], 1024
    $region57: #{tpu_custom_call.1} parent=1 // pred_fallthru
      _
    // Predicated region
    $region58: #{tpu_custom_call.1} parent=1 // pred_check
      _
    $region59: #{tpu_custom_call.1} parent=1 // pred_check_branch
      %129 = sbr.rel (0) target = $region61
    $region60: #{tpu_custom_call.1} parent=1 // pred_region
      %130 = dma.done [#allocation13], 256
    $region61: #{tpu_custom_call.1} parent=1 // pred_fallthru
      _
    // Predicated region
    $region62: #{tpu_custom_call.1} parent=1 // pred_check
      _
    $region63: #{tpu_custom_call.1} parent=1 // pred_check_branch
      %132 = sbr.rel (0) target = $region65
    $region64: #{tpu_custom_call.1} parent=1 // pred_region
      %133 = dma.done [#allocation16], 3072
    $region65: #{tpu_custom_call.1} parent=1 // pred_fallthru
      _
    %134 = sfence
    %s135 = sld [smem:[#allocation2]]
    %s136 = sld [smem:[#allocation2 + $0x1]]
    %s137 = sld [smem:[#allocation2 + $0x2]]
    %v138 = vld [vmem:[#allocation9] sm:$0xff]
    %v139 = vld [vmem:[#allocation9 + $0x8] sm:$0xff]
    %v140 = vld [vmem:[#allocation9 + $0x10] sm:$0xff]
    %v141 = vld [vmem:[#allocation9 + $0x18] sm:$0xff]
    %v142 = vld [vmem:[#allocation9 + $0x20] sm:$0xff]
    %v143 = vld [vmem:[#allocation9 + $0x28] sm:$0xff]
    %v144 = vld [vmem:[#allocation9 + $0x30] sm:$0xff]
    %v145 = vld [vmem:[#allocation9 + $0x38] sm:$0xff]
    %v146 = vld [vmem:[#allocation11] sm:$0xff]
    %v147 = vld [vmem:[#allocation11 + $0x8] sm:$0xff]
    %v148 = vld [vmem:[#allocation11 + $0x10] sm:$0xff]
    %v149 = vld [vmem:[#allocation11 + $0x18] sm:$0xff]
    %v150 = vld [vmem:[#allocation11 + $0x20] sm:$0xff]
    %v151 = vld [vmem:[#allocation11 + $0x28] sm:$0xff]
    %v152 = vld [vmem:[#allocation11 + $0x30] sm:$0xff]
    %v153 = vld [vmem:[#allocation11 + $0x38] sm:$0xff]
    %v154 = vmul.f32 %v138, %v138
    %v155 = vmul.f32 %v139, %v139
    %v156 = vmul.f32 %v140, %v140
    %v157 = vmul.f32 %v141, %v141
    %v158 = vmul.f32 %v142, %v142
    %v159 = vmul.f32 %v143, %v143
    %v160 = vmul.f32 %v144, %v144
    %v161 = vmul.f32 %v145, %v145
    %v162 = vmul.f32 %v146, %v146
    %v163 = vmul.f32 %v147, %v147
    %v164 = vmul.f32 %v148, %v148
    %v165 = vmul.f32 %v149, %v149
    %v166 = vmul.f32 %v150, %v150
    %v167 = vmul.f32 %v151, %v151
    %v168 = vmul.f32 %v152, %v152
    %v169 = vmul.f32 %v153, %v153
    %v170 = vadd.f32 %v154, %v162
    %v171 = vadd.f32 %v155, %v163
    %v172 = vadd.f32 %v156, %v164
    %v173 = vadd.f32 %v157, %v165
    %v174 = vadd.f32 %v158, %v166
    %v175 = vadd.f32 %v159, %v167
    %v176 = vadd.f32 %v160, %v168
    %v177 = vadd.f32 %v161, %v169
    %v178 = vstv %s137
    %v179 = vmul.f32 %v170, %v178
    %v180 = vmul.f32 %v171, %v178
    %v181 = vmul.f32 %v172, %v178
    %v182 = vmul.f32 %v173, %v178
    %v183 = vmul.f32 %v174, %v178
    %v184 = vmul.f32 %v175, %v178
    %v185 = vmul.f32 %v176, %v178
    %v186 = vmul.f32 %v177, %v178
    %v187 = vstv %s136
    %v188 = vadd.f32 %v187, %v179
    %v189 = vadd.f32 %v187, %v180
    %v190 = vadd.f32 %v187, %v181
    %v191 = vadd.f32 %v187, %v182
    %v192 = vadd.f32 %v187, %v183
    %v193 = vadd.f32 %v187, %v184
    %v194 = vadd.f32 %v187, %v185
    %v195 = vadd.f32 %v187, %v186
    %v196 = vmul.f32 %v170, %v188
    %v197 = vmul.f32 %v171, %v189
    %v198 = vmul.f32 %v172, %v190
    %v199 = vmul.f32 %v173, %v191
    %v200 = vmul.f32 %v174, %v192
    %v201 = vmul.f32 %v175, %v193
    %v202 = vmul.f32 %v176, %v194
    %v203 = vmul.f32 %v177, %v195
    %v204 = vstv %s135
    %v205 = vadd.f32 %v204, %v196
    %v206 = vadd.f32 %v204, %v197
    %v207 = vadd.f32 %v204, %v198
    %v208 = vadd.f32 %v204, %v199
    %v209 = vadd.f32 %v204, %v200
    %v210 = vadd.f32 %v204, %v201
    %v211 = vadd.f32 %v204, %v202
    %v212 = vadd.f32 %v204, %v203
    %v213 = vmul.f32 %v170, %v205
    %v214 = vmul.f32 %v171, %v206
    %v215 = vmul.f32 %v172, %v207
    %v216 = vmul.f32 %v173, %v208
    %v217 = vmul.f32 %v174, %v209
    %v218 = vmul.f32 %v175, %v210
    %v219 = vmul.f32 %v176, %v211
    %v220 = vmul.f32 %v177, %v212
    %v221 = vadd.f32 %v213, 1.0
    %v222 = vadd.f32 %v214, 1.0
    %v223 = vadd.f32 %v215, 1.0
    %v224 = vadd.f32 %v216, 1.0
    %v225 = vadd.f32 %v217, 1.0
    %v226 = vadd.f32 %v218, 1.0
    %v227 = vadd.f32 %v219, 1.0
    %v228 = vadd.f32 %v220, 1.0
    %v229 = vld [vmem:[#allocation8] sm:$0xff]
    %v230 = vld [vmem:[#allocation8 + $0x8] sm:$0xff]
    %v231 = vld [vmem:[#allocation8 + $0x10] sm:$0xff]
    %v232 = vld [vmem:[#allocation8 + $0x18] sm:$0xff]
    %v233 = vld [vmem:[#allocation8 + $0x20] sm:$0xff]
    %v234 = vld [vmem:[#allocation8 + $0x28] sm:$0xff]
    %v235 = vld [vmem:[#allocation8 + $0x30] sm:$0xff]
    %v236 = vld [vmem:[#allocation8 + $0x38] sm:$0xff]
    %v237 = vmul.f32 %v229, %v221
    %v238 = vmul.f32 %v230, %v222
    %v239 = vmul.f32 %v231, %v223
    %v240 = vmul.f32 %v232, %v224
    %v241 = vmul.f32 %v233, %v225
    %v242 = vmul.f32 %v234, %v226
    %v243 = vmul.f32 %v235, %v227
    %v244 = vmul.f32 %v236, %v228
    %v245 = vmul.f32 %v237, 0.5
    %v246 = vmul.f32 %v238, 0.5
    %v247 = vmul.f32 %v239, 0.5
    %v248 = vmul.f32 %v240, 0.5
    %v249 = vmul.f32 %v241, 0.5
    %v250 = vmul.f32 %v242, 0.5
    %v251 = vmul.f32 %v243, 0.5
    %v252 = vmul.f32 %v244, 0.5
    %v253 = vfloor.f32 %v245
    %v254 = vfloor.f32 %v246
    %v255 = vfloor.f32 %v247
    %v256 = vfloor.f32 %v248
    %v257 = vfloor.f32 %v249
    %v258 = vfloor.f32 %v250
    %v259 = vfloor.f32 %v251
    %v260 = vfloor.f32 %v252
    %v261 = vmul.f32 %v253, 2.0
    %v262 = vmul.f32 %v254, 2.0
    %v263 = vmul.f32 %v255, 2.0
    %v264 = vmul.f32 %v256, 2.0
    %v265 = vmul.f32 %v257, 2.0
    %v266 = vmul.f32 %v258, 2.0
    %v267 = vmul.f32 %v259, 2.0
    %v268 = vmul.f32 %v260, 2.0
    %v269 = vsub.f32 %v237, %v261
    %v270 = vsub.f32 %v238, %v262
    %v271 = vsub.f32 %v239, %v263
    %v272 = vsub.f32 %v240, %v264
    %v273 = vsub.f32 %v241, %v265
    %v274 = vsub.f32 %v242, %v266
    %v275 = vsub.f32 %v243, %v267
    %v276 = vsub.f32 %v244, %v268
    %vm277 = vcmp.gt.f32.partialorder %v269, 1.0
    %vm278 = vcmp.gt.f32.partialorder %v270, 1.0
    %vm279 = vcmp.gt.f32.partialorder %v271, 1.0
    %vm280 = vcmp.gt.f32.partialorder %v272, 1.0
    %vm281 = vcmp.gt.f32.partialorder %v273, 1.0
    %vm282 = vcmp.gt.f32.partialorder %v274, 1.0
    %vm283 = vcmp.gt.f32.partialorder %v275, 1.0
    %vm284 = vcmp.gt.f32.partialorder %v276, 1.0
    %v285 = vsub.f32 2.0, %v269
    %v286 = vsub.f32 2.0, %v270
    %v287 = vsub.f32 2.0, %v271
    %v288 = vsub.f32 2.0, %v272
    %v289 = vsub.f32 2.0, %v273
    %v290 = vsub.f32 2.0, %v274
    %v291 = vsub.f32 2.0, %v275
    %v292 = vsub.f32 2.0, %v276
    %v293 = vsel %vm277, %v285, %v269
    %v294 = vsel %vm278, %v286, %v270
    %v295 = vsel %vm279, %v287, %v271
    %v296 = vsel %vm280, %v288, %v272
    %v297 = vsel %vm281, %v289, %v273
    %v298 = vsel %vm282, %v290, %v274
    %v299 = vsel %vm283, %v291, %v275
    %v300 = vsel %vm284, %v292, %v276
    %s301 = scalar_lea.vmem [#allocation8], 64
    %v302 = vld [vmem:[%s301] sm:$0xff]
    %v303 = vld [vmem:[%s301 + $0x8] sm:$0xff]
    %v304 = vld [vmem:[%s301 + $0x10] sm:$0xff]
    %v305 = vld [vmem:[%s301 + $0x18] sm:$0xff]
    %v306 = vld [vmem:[%s301 + $0x20] sm:$0xff]
    %v307 = vld [vmem:[%s301 + $0x28] sm:$0xff]
    %v308 = vld [vmem:[%s301 + $0x30] sm:$0xff]
    %v309 = vld [vmem:[%s301 + $0x38] sm:$0xff]
    %v310 = vmul.f32 %v302, %v221
    %v311 = vmul.f32 %v303, %v222
    %v312 = vmul.f32 %v304, %v223
    %v313 = vmul.f32 %v305, %v224
    %v314 = vmul.f32 %v306, %v225
    %v315 = vmul.f32 %v307, %v226
    %v316 = vmul.f32 %v308, %v227
    %v317 = vmul.f32 %v309, %v228
    %v318 = vmul.f32 %v310, 0.5
    %v319 = vmul.f32 %v311, 0.5
    %v320 = vmul.f32 %v312, 0.5
    %v321 = vmul.f32 %v313, 0.5
    %v322 = vmul.f32 %v314, 0.5
    %v323 = vmul.f32 %v315, 0.5
    %v324 = vmul.f32 %v316, 0.5
    %v325 = vmul.f32 %v317, 0.5
    %v326 = vfloor.f32 %v318
    %v327 = vfloor.f32 %v319
    %v328 = vfloor.f32 %v320
    %v329 = vfloor.f32 %v321
    %v330 = vfloor.f32 %v322
    %v331 = vfloor.f32 %v323
    %v332 = vfloor.f32 %v324
    %v333 = vfloor.f32 %v325
    %v334 = vmul.f32 %v326, 2.0
    %v335 = vmul.f32 %v327, 2.0
    %v336 = vmul.f32 %v328, 2.0
    %v337 = vmul.f32 %v329, 2.0
    %v338 = vmul.f32 %v330, 2.0
    %v339 = vmul.f32 %v331, 2.0
    %v340 = vmul.f32 %v332, 2.0
    %v341 = vmul.f32 %v333, 2.0
    %v342 = vsub.f32 %v310, %v334
    %v343 = vsub.f32 %v311, %v335
    %v344 = vsub.f32 %v312, %v336
    %v345 = vsub.f32 %v313, %v337
    %v346 = vsub.f32 %v314, %v338
    %v347 = vsub.f32 %v315, %v339
    %v348 = vsub.f32 %v316, %v340
    %v349 = vsub.f32 %v317, %v341
    %vm350 = vcmp.gt.f32.partialorder %v342, 1.0
    %vm351 = vcmp.gt.f32.partialorder %v343, 1.0
    %vm352 = vcmp.gt.f32.partialorder %v344, 1.0
    %vm353 = vcmp.gt.f32.partialorder %v345, 1.0
    %vm354 = vcmp.gt.f32.partialorder %v346, 1.0
    %vm355 = vcmp.gt.f32.partialorder %v347, 1.0
    %vm356 = vcmp.gt.f32.partialorder %v348, 1.0
    %vm357 = vcmp.gt.f32.partialorder %v349, 1.0
    %v358 = vsub.f32 2.0, %v342
    %v359 = vsub.f32 2.0, %v343
    %v360 = vsub.f32 2.0, %v344
    %v361 = vsub.f32 2.0, %v345
    %v362 = vsub.f32 2.0, %v346
    %v363 = vsub.f32 2.0, %v347
    %v364 = vsub.f32 2.0, %v348
    %v365 = vsub.f32 2.0, %v349
    %v366 = vsel %vm350, %v358, %v342
    %v367 = vsel %vm351, %v359, %v343
    %v368 = vsel %vm352, %v360, %v344
    %v369 = vsel %vm353, %v361, %v345
    %v370 = vsel %vm354, %v362, %v346
    %v371 = vsel %vm355, %v363, %v347
    %v372 = vsel %vm356, %v364, %v348
    %v373 = vsel %vm357, %v365, %v349
    %s374 = scalar_lea.vmem [#allocation8], 128
    %v375 = vld [vmem:[%s374] sm:$0xff]
    %v376 = vld [vmem:[%s374 + $0x8] sm:$0xff]
    %v377 = vld [vmem:[%s374 + $0x10] sm:$0xff]
    %v378 = vld [vmem:[%s374 + $0x18] sm:$0xff]
    %v379 = vld [vmem:[%s374 + $0x20] sm:$0xff]
    %v380 = vld [vmem:[%s374 + $0x28] sm:$0xff]
    %v381 = vld [vmem:[%s374 + $0x30] sm:$0xff]
    %v382 = vld [vmem:[%s374 + $0x38] sm:$0xff]
    %v383 = vmul.f32 %v375, %v221
    %v384 = vmul.f32 %v376, %v222
    %v385 = vmul.f32 %v377, %v223
    %v386 = vmul.f32 %v378, %v224
    %v387 = vmul.f32 %v379, %v225
    %v388 = vmul.f32 %v380, %v226
    %v389 = vmul.f32 %v381, %v227
    %v390 = vmul.f32 %v382, %v228
    %v391 = vmul.f32 %v383, 0.5
    %v392 = vmul.f32 %v384, 0.5
    %v393 = vmul.f32 %v385, 0.5
    %v394 = vmul.f32 %v386, 0.5
    %v395 = vmul.f32 %v387, 0.5
    %v396 = vmul.f32 %v388, 0.5
    %v397 = vmul.f32 %v389, 0.5
    %v398 = vmul.f32 %v390, 0.5
    %v399 = vfloor.f32 %v391
    %v400 = vfloor.f32 %v392
    %v401 = vfloor.f32 %v393
    %v402 = vfloor.f32 %v394
    %v403 = vfloor.f32 %v395
    %v404 = vfloor.f32 %v396
    %v405 = vfloor.f32 %v397
    %v406 = vfloor.f32 %v398
    %v407 = vmul.f32 %v399, 2.0
    %v408 = vmul.f32 %v400, 2.0
    %v409 = vmul.f32 %v401, 2.0
    %v410 = vmul.f32 %v402, 2.0
    %v411 = vmul.f32 %v403, 2.0
    %v412 = vmul.f32 %v404, 2.0
    %v413 = vmul.f32 %v405, 2.0
    %v414 = vmul.f32 %v406, 2.0
    %v415 = vsub.f32 %v383, %v407
    %v416 = vsub.f32 %v384, %v408
    %v417 = vsub.f32 %v385, %v409
    %v418 = vsub.f32 %v386, %v410
    %v419 = vsub.f32 %v387, %v411
    %v420 = vsub.f32 %v388, %v412
    %v421 = vsub.f32 %v389, %v413
    %v422 = vsub.f32 %v390, %v414
    %vm423 = vcmp.gt.f32.partialorder %v415, 1.0
    %vm424 = vcmp.gt.f32.partialorder %v416, 1.0
    %vm425 = vcmp.gt.f32.partialorder %v417, 1.0
    %vm426 = vcmp.gt.f32.partialorder %v418, 1.0
    %vm427 = vcmp.gt.f32.partialorder %v419, 1.0
    %vm428 = vcmp.gt.f32.partialorder %v420, 1.0
    %vm429 = vcmp.gt.f32.partialorder %v421, 1.0
    %vm430 = vcmp.gt.f32.partialorder %v422, 1.0
    %v431 = vsub.f32 2.0, %v415
    %v432 = vsub.f32 2.0, %v416
    %v433 = vsub.f32 2.0, %v417
    %v434 = vsub.f32 2.0, %v418
    %v435 = vsub.f32 2.0, %v419
    %v436 = vsub.f32 2.0, %v420
    %v437 = vsub.f32 2.0, %v421
    %v438 = vsub.f32 2.0, %v422
    %v439 = vsel %vm423, %v431, %v415
    %v440 = vsel %vm424, %v432, %v416
    %v441 = vsel %vm425, %v433, %v417
    %v442 = vsel %vm426, %v434, %v418
    %v443 = vsel %vm427, %v435, %v419
    %v444 = vsel %vm428, %v436, %v420
    %v445 = vsel %vm429, %v437, %v421
    %v446 = vsel %vm430, %v438, %v422
    %v447 = vld [vmem:[#allocation14] sm:$0xff]
    %v448 = vld [vmem:[#allocation14 + $0x8] sm:$0xff]
    %v449 = vunpack.c.0.s8 %v447
    %v450 = vunpack.c.1.s8 %v447
    %v451 = vunpack.c.2.s8 %v447
    %v452 = vunpack.c.3.s8 %v447
    %v453 = vunpack.c.0.s8 %v448
    %v454 = vunpack.c.1.s8 %v448
    %v455 = vunpack.c.2.s8 %v448
    %v456 = vunpack.c.3.s8 %v448
    %vm457 = vcmp.eq.s32.totalorder %v449, 0
    %vm458 = vcmp.eq.s32.totalorder %v450, 0
    %vm459 = vcmp.eq.s32.totalorder %v451, 0
    %vm460 = vcmp.eq.s32.totalorder %v452, 0
    %vm461 = vcmp.eq.s32.totalorder %v453, 0
    %vm462 = vcmp.eq.s32.totalorder %v454, 0
    %vm463 = vcmp.eq.s32.totalorder %v455, 0
    %vm464 = vcmp.eq.s32.totalorder %v456, 0
    %s465 = sld [smem:[#allocation7]]
    %v466 = vstv %s465
    %v467 = vmul.f32 %v466, %v293
    %v468 = vmul.f32 %v466, %v294
    %v469 = vmul.f32 %v466, %v295
    %v470 = vmul.f32 %v466, %v296
    %v471 = vmul.f32 %v466, %v297
    %v472 = vmul.f32 %v466, %v298
    %v473 = vmul.f32 %v466, %v299
    %v474 = vmul.f32 %v466, %v300
    %s475 = sld [smem:[#allocation7 + $0x1]]
    %v476 = vstv %s475
    %v477 = vmul.f32 %v476, %v366
    %v478 = vmul.f32 %v476, %v367
    %v479 = vmul.f32 %v476, %v368
    %v480 = vmul.f32 %v476, %v369
    %v481 = vmul.f32 %v476, %v370
    %v482 = vmul.f32 %v476, %v371
    %v483 = vmul.f32 %v476, %v372
    %v484 = vmul.f32 %v476, %v373
    %v485 = vadd.f32 %v467, %v477
    %v486 = vadd.f32 %v468, %v478
    %v487 = vadd.f32 %v469, %v479
    %v488 = vadd.f32 %v470, %v480
    %v489 = vadd.f32 %v471, %v481
    %v490 = vadd.f32 %v472, %v482
    %v491 = vadd.f32 %v473, %v483
    %v492 = vadd.f32 %v474, %v484
    %s493 = sld [smem:[#allocation7 + $0x2]]
    %v494 = vstv %s493
    %v495 = vmul.f32 %v494, %v439
    %v496 = vmul.f32 %v494, %v440
    %v497 = vmul.f32 %v494, %v441
    %v498 = vmul.f32 %v494, %v442
    %v499 = vmul.f32 %v494, %v443
    %v500 = vmul.f32 %v494, %v444
    %v501 = vmul.f32 %v494, %v445
    %v502 = vmul.f32 %v494, %v446
    %v503 = vadd.f32 %v485, %v495
    %v504 = vadd.f32 %v486, %v496
    %v505 = vadd.f32 %v487, %v497
    %v506 = vadd.f32 %v488, %v498
    %v507 = vadd.f32 %v489, %v499
    %v508 = vadd.f32 %v490, %v500
    %v509 = vadd.f32 %v491, %v501
    %v510 = vadd.f32 %v492, %v502
    %s511 = sld [smem:[#allocation7 + $0x9]]
    %v512 = vstv %s511
    %v513 = vadd.f32 %v503, %v512
    %v514 = vadd.f32 %v504, %v512
    %v515 = vadd.f32 %v505, %v512
    %v516 = vadd.f32 %v506, %v512
    %v517 = vadd.f32 %v507, %v512
    %v518 = vadd.f32 %v508, %v512
    %v519 = vadd.f32 %v509, %v512
    %v520 = vadd.f32 %v510, %v512
    %s521 = sld [smem:[#allocation7 + $0x3]]
    %v522 = vstv %s521
    %v523 = vmul.f32 %v522, %v293
    %v524 = vmul.f32 %v522, %v294
    %v525 = vmul.f32 %v522, %v295
    %v526 = vmul.f32 %v522, %v296
    %v527 = vmul.f32 %v522, %v297
    %v528 = vmul.f32 %v522, %v298
    %v529 = vmul.f32 %v522, %v299
    %v530 = vmul.f32 %v522, %v300
    %s531 = sld [smem:[#allocation7 + $0x4]]
    %v532 = vstv %s531
    %v533 = vmul.f32 %v532, %v366
    %v534 = vmul.f32 %v532, %v367
    %v535 = vmul.f32 %v532, %v368
    %v536 = vmul.f32 %v532, %v369
    %v537 = vmul.f32 %v532, %v370
    %v538 = vmul.f32 %v532, %v371
    %v539 = vmul.f32 %v532, %v372
    %v540 = vmul.f32 %v532, %v373
    %v541 = vadd.f32 %v523, %v533
    %v542 = vadd.f32 %v524, %v534
    %v543 = vadd.f32 %v525, %v535
    %v544 = vadd.f32 %v526, %v536
    %v545 = vadd.f32 %v527, %v537
    %v546 = vadd.f32 %v528, %v538
    %v547 = vadd.f32 %v529, %v539
    %v548 = vadd.f32 %v530, %v540
    %s549 = sld [smem:[#allocation7 + $0x5]]
    %v550 = vstv %s549
    %v551 = vmul.f32 %v550, %v439
    %v552 = vmul.f32 %v550, %v440
    %v553 = vmul.f32 %v550, %v441
    %v554 = vmul.f32 %v550, %v442
    %v555 = vmul.f32 %v550, %v443
    %v556 = vmul.f32 %v550, %v444
    %v557 = vmul.f32 %v550, %v445
    %v558 = vmul.f32 %v550, %v446
    %v559 = vadd.f32 %v541, %v551
    %v560 = vadd.f32 %v542, %v552
    %v561 = vadd.f32 %v543, %v553
    %v562 = vadd.f32 %v544, %v554
    %v563 = vadd.f32 %v545, %v555
    %v564 = vadd.f32 %v546, %v556
    %v565 = vadd.f32 %v547, %v557
    %v566 = vadd.f32 %v548, %v558
    %s567 = sld [smem:[#allocation7 + $0xa]]
    %v568 = vstv %s567
    %v569 = vadd.f32 %v559, %v568
    %v570 = vadd.f32 %v560, %v568
    %v571 = vadd.f32 %v561, %v568
    %v572 = vadd.f32 %v562, %v568
    %v573 = vadd.f32 %v563, %v568
    %v574 = vadd.f32 %v564, %v568
    %v575 = vadd.f32 %v565, %v568
    %v576 = vadd.f32 %v566, %v568
    %s577 = sld [smem:[#allocation7 + $0x6]]
    %v578 = vstv %s577
    %v579 = vmul.f32 %v578, %v293
    %v580 = vmul.f32 %v578, %v294
    %v581 = vmul.f32 %v578, %v295
    %v582 = vmul.f32 %v578, %v296
    %v583 = vmul.f32 %v578, %v297
    %v584 = vmul.f32 %v578, %v298
    %v585 = vmul.f32 %v578, %v299
    %v586 = vmul.f32 %v578, %v300
    %s587 = sld [smem:[#allocation7 + $0x7]]
    %v588 = vstv %s587
    %v589 = vmul.f32 %v588, %v366
    %v590 = vmul.f32 %v588, %v367
    %v591 = vmul.f32 %v588, %v368
    %v592 = vmul.f32 %v588, %v369
    %v593 = vmul.f32 %v588, %v370
    %v594 = vmul.f32 %v588, %v371
    %v595 = vmul.f32 %v588, %v372
    %v596 = vmul.f32 %v588, %v373
    %v597 = vadd.f32 %v579, %v589
    %v598 = vadd.f32 %v580, %v590
    %v599 = vadd.f32 %v581, %v591
    %v600 = vadd.f32 %v582, %v592
    %v601 = vadd.f32 %v583, %v593
    %v602 = vadd.f32 %v584, %v594
    %v603 = vadd.f32 %v585, %v595
    %v604 = vadd.f32 %v586, %v596
    %s605 = sld [smem:[#allocation7 + $0x8]]
    %v606 = vstv %s605
    %v607 = vmul.f32 %v606, %v439
    %v608 = vmul.f32 %v606, %v440
    %v609 = vmul.f32 %v606, %v441
    %v610 = vmul.f32 %v606, %v442
    %v611 = vmul.f32 %v606, %v443
    %v612 = vmul.f32 %v606, %v444
    %v613 = vmul.f32 %v606, %v445
    %v614 = vmul.f32 %v606, %v446
    %v615 = vadd.f32 %v597, %v607
    %v616 = vadd.f32 %v598, %v608
    %v617 = vadd.f32 %v599, %v609
    %v618 = vadd.f32 %v600, %v610
    %v619 = vadd.f32 %v601, %v611
    %v620 = vadd.f32 %v602, %v612
    %v621 = vadd.f32 %v603, %v613
    %v622 = vadd.f32 %v604, %v614
    %s623 = sld [smem:[#allocation7 + $0xb]]
    %v624 = vstv %s623
    %v625 = vadd.f32 %v615, %v624
    %v626 = vadd.f32 %v616, %v624
    %v627 = vadd.f32 %v617, %v624
    %v628 = vadd.f32 %v618, %v624
    %v629 = vadd.f32 %v619, %v624
    %v630 = vadd.f32 %v620, %v624
    %v631 = vadd.f32 %v621, %v624
    %v632 = vadd.f32 %v622, %v624
    %v633 = vsel %vm457, %v513, 0.0
    %v634 = vsel %vm458, %v514, 0.0
    %v635 = vsel %vm459, %v515, 0.0
    %v636 = vsel %vm460, %v516, 0.0
    %v637 = vsel %vm461, %v517, 0.0
    %v638 = vsel %vm462, %v518, 0.0
    %v639 = vsel %vm463, %v519, 0.0
    %v640 = vsel %vm464, %v520, 0.0
    %v641 = vsel %vm457, %v569, 0.0
    %v642 = vsel %vm458, %v570, 0.0
    %v643 = vsel %vm459, %v571, 0.0
    %v644 = vsel %vm460, %v572, 0.0
    %v645 = vsel %vm461, %v573, 0.0
    %v646 = vsel %vm462, %v574, 0.0
    %v647 = vsel %vm463, %v575, 0.0
    %v648 = vsel %vm464, %v576, 0.0
    %v649 = vsel %vm457, %v625, 0.0
    %v650 = vsel %vm458, %v626, 0.0
    %v651 = vsel %vm459, %v627, 0.0
    %v652 = vsel %vm460, %v628, 0.0
    %v653 = vsel %vm461, %v629, 0.0
    %v654 = vsel %vm462, %v630, 0.0
    %v655 = vsel %vm463, %v631, 0.0
    %v656 = vsel %vm464, %v632, 0.0
    %vm657 = vcmp.eq.s32.totalorder %v449, 1
    %vm658 = vcmp.eq.s32.totalorder %v450, 1
    %vm659 = vcmp.eq.s32.totalorder %v451, 1
    %vm660 = vcmp.eq.s32.totalorder %v452, 1
    %vm661 = vcmp.eq.s32.totalorder %v453, 1
    %vm662 = vcmp.eq.s32.totalorder %v454, 1
    %vm663 = vcmp.eq.s32.totalorder %v455, 1
    %vm664 = vcmp.eq.s32.totalorder %v456, 1
    %s665 = sld [smem:[#allocation7 + $0xc]]
    %v666 = vstv %s665
    %v667 = vmul.f32 %v666, %v293
    %v668 = vmul.f32 %v666, %v294
    %v669 = vmul.f32 %v666, %v295
    %v670 = vmul.f32 %v666, %v296
    %v671 = vmul.f32 %v666, %v297
    %v672 = vmul.f32 %v666, %v298
    %v673 = vmul.f32 %v666, %v299
    %v674 = vmul.f32 %v666, %v300
    %s675 = sld [smem:[#allocation7 + $0xd]]
    %v676 = vstv %s675
    %v677 = vmul.f32 %v676, %v366
    %v678 = vmul.f32 %v676, %v367
    %v679 = vmul.f32 %v676, %v368
    %v680 = vmul.f32 %v676, %v369
    %v681 = vmul.f32 %v676, %v370
    %v682 = vmul.f32 %v676, %v371
    %v683 = vmul.f32 %v676, %v372
    %v684 = vmul.f32 %v676, %v373
    %v685 = vadd.f32 %v667, %v677
    %v686 = vadd.f32 %v668, %v678
    %v687 = vadd.f32 %v669, %v679
    %v688 = vadd.f32 %v670, %v680
    %v689 = vadd.f32 %v671, %v681
    %v690 = vadd.f32 %v672, %v682
    %v691 = vadd.f32 %v673, %v683
    %v692 = vadd.f32 %v674, %v684
    %s693 = sld [smem:[#allocation7 + $0xe]]
    %v694 = vstv %s693
    %v695 = vmul.f32 %v694, %v439
    %v696 = vmul.f32 %v694, %v440
    %v697 = vmul.f32 %v694, %v441
    %v698 = vmul.f32 %v694, %v442
    %v699 = vmul.f32 %v694, %v443
    %v700 = vmul.f32 %v694, %v444
    %v701 = vmul.f32 %v694, %v445
    %v702 = vmul.f32 %v694, %v446
    %v703 = vadd.f32 %v685, %v695
    %v704 = vadd.f32 %v686, %v696
    %v705 = vadd.f32 %v687, %v697
    %v706 = vadd.f32 %v688, %v698
    %v707 = vadd.f32 %v689, %v699
    %v708 = vadd.f32 %v690, %v700
    %v709 = vadd.f32 %v691, %v701
    %v710 = vadd.f32 %v692, %v702
    %s711 = sld [smem:[#allocation7 + $0x15]]
    %v712 = vstv %s711
    %v713 = vadd.f32 %v703, %v712
    %v714 = vadd.f32 %v704, %v712
    %v715 = vadd.f32 %v705, %v712
    %v716 = vadd.f32 %v706, %v712
    %v717 = vadd.f32 %v707, %v712
    %v718 = vadd.f32 %v708, %v712
    %v719 = vadd.f32 %v709, %v712
    %v720 = vadd.f32 %v710, %v712
    %s721 = sld [smem:[#allocation7 + $0xf]]
    %v722 = vstv %s721
    %v723 = vmul.f32 %v722, %v293
    %v724 = vmul.f32 %v722, %v294
    %v725 = vmul.f32 %v722, %v295
    %v726 = vmul.f32 %v722, %v296
    %v727 = vmul.f32 %v722, %v297
    %v728 = vmul.f32 %v722, %v298
    %v729 = vmul.f32 %v722, %v299
    %v730 = vmul.f32 %v722, %v300
    %s731 = sld [smem:[#allocation7 + $0x10]]
    %v732 = vstv %s731
    %v733 = vmul.f32 %v732, %v366
    %v734 = vmul.f32 %v732, %v367
    %v735 = vmul.f32 %v732, %v368
    %v736 = vmul.f32 %v732, %v369
    %v737 = vmul.f32 %v732, %v370
    %v738 = vmul.f32 %v732, %v371
    %v739 = vmul.f32 %v732, %v372
    %v740 = vmul.f32 %v732, %v373
    %v741 = vadd.f32 %v723, %v733
    %v742 = vadd.f32 %v724, %v734
    %v743 = vadd.f32 %v725, %v735
    %v744 = vadd.f32 %v726, %v736
    %v745 = vadd.f32 %v727, %v737
    %v746 = vadd.f32 %v728, %v738
    %v747 = vadd.f32 %v729, %v739
    %v748 = vadd.f32 %v730, %v740
    %s749 = sld [smem:[#allocation7 + $0x11]]
    %v750 = vstv %s749
    %v751 = vmul.f32 %v750, %v439
    %v752 = vmul.f32 %v750, %v440
    %v753 = vmul.f32 %v750, %v441
    %v754 = vmul.f32 %v750, %v442
    %v755 = vmul.f32 %v750, %v443
    %v756 = vmul.f32 %v750, %v444
    %v757 = vmul.f32 %v750, %v445
    %v758 = vmul.f32 %v750, %v446
    %v759 = vadd.f32 %v741, %v751
    %v760 = vadd.f32 %v742, %v752
    %v761 = vadd.f32 %v743, %v753
    %v762 = vadd.f32 %v744, %v754
    %v763 = vadd.f32 %v745, %v755
    %v764 = vadd.f32 %v746, %v756
    %v765 = vadd.f32 %v747, %v757
    %v766 = vadd.f32 %v748, %v758
    %s767 = sld [smem:[#allocation7 + $0x16]]
    %v768 = vstv %s767
    %v769 = vadd.f32 %v759, %v768
    %v770 = vadd.f32 %v760, %v768
    %v771 = vadd.f32 %v761, %v768
    %v772 = vadd.f32 %v762, %v768
    %v773 = vadd.f32 %v763, %v768
    %v774 = vadd.f32 %v764, %v768
    %v775 = vadd.f32 %v765, %v768
    %v776 = vadd.f32 %v766, %v768
    %s777 = sld [smem:[#allocation7 + $0x12]]
    %v778 = vstv %s777
    %v779 = vmul.f32 %v778, %v293
    %v780 = vmul.f32 %v778, %v294
    %v781 = vmul.f32 %v778, %v295
    %v782 = vmul.f32 %v778, %v296
    %v783 = vmul.f32 %v778, %v297
    %v784 = vmul.f32 %v778, %v298
    %v785 = vmul.f32 %v778, %v299
    %v786 = vmul.f32 %v778, %v300
    %s787 = sld [smem:[#allocation7 + $0x13]]
    %v788 = vstv %s787
    %v789 = vmul.f32 %v788, %v366
    %v790 = vmul.f32 %v788, %v367
    %v791 = vmul.f32 %v788, %v368
    %v792 = vmul.f32 %v788, %v369
    %v793 = vmul.f32 %v788, %v370
    %v794 = vmul.f32 %v788, %v371
    %v795 = vmul.f32 %v788, %v372
    %v796 = vmul.f32 %v788, %v373
    %v797 = vadd.f32 %v779, %v789
    %v798 = vadd.f32 %v780, %v790
    %v799 = vadd.f32 %v781, %v791
    %v800 = vadd.f32 %v782, %v792
    %v801 = vadd.f32 %v783, %v793
    %v802 = vadd.f32 %v784, %v794
    %v803 = vadd.f32 %v785, %v795
    %v804 = vadd.f32 %v786, %v796
    %s805 = sld [smem:[#allocation7 + $0x14]]
    %v806 = vstv %s805
    %v807 = vmul.f32 %v806, %v439
    %v808 = vmul.f32 %v806, %v440
    %v809 = vmul.f32 %v806, %v441
    %v810 = vmul.f32 %v806, %v442
    %v811 = vmul.f32 %v806, %v443
    %v812 = vmul.f32 %v806, %v444
    %v813 = vmul.f32 %v806, %v445
    %v814 = vmul.f32 %v806, %v446
    %v815 = vadd.f32 %v797, %v807
    %v816 = vadd.f32 %v798, %v808
    %v817 = vadd.f32 %v799, %v809
    %v818 = vadd.f32 %v800, %v810
    %v819 = vadd.f32 %v801, %v811
    %v820 = vadd.f32 %v802, %v812
    %v821 = vadd.f32 %v803, %v813
    %v822 = vadd.f32 %v804, %v814
    %s823 = sld [smem:[#allocation7 + $0x17]]
    %v824 = vstv %s823
    %v825 = vadd.f32 %v815, %v824
    %v826 = vadd.f32 %v816, %v824
    %v827 = vadd.f32 %v817, %v824
    %v828 = vadd.f32 %v818, %v824
    %v829 = vadd.f32 %v819, %v824
    %v830 = vadd.f32 %v820, %v824
    %v831 = vadd.f32 %v821, %v824
    %v832 = vadd.f32 %v822, %v824
    %v833 = vsel %vm657, %v713, %v633
    %v834 = vsel %vm658, %v714, %v634
    %v835 = vsel %vm659, %v715, %v635
    %v836 = vsel %vm660, %v716, %v636
    %v837 = vsel %vm661, %v717, %v637
    %v838 = vsel %vm662, %v718, %v638
    %v839 = vsel %vm663, %v719, %v639
    %v840 = vsel %vm664, %v720, %v640
    %v841 = vsel %vm657, %v769, %v641
    %v842 = vsel %vm658, %v770, %v642
    %v843 = vsel %vm659, %v771, %v643
    %v844 = vsel %vm660, %v772, %v644
    %v845 = vsel %vm661, %v773, %v645
    %v846 = vsel %vm662, %v774, %v646
    %v847 = vsel %vm663, %v775, %v647
    %v848 = vsel %vm664, %v776, %v648
    %v849 = vsel %vm657, %v825, %v649
    %v850 = vsel %vm658, %v826, %v650
    %v851 = vsel %vm659, %v827, %v651
    %v852 = vsel %vm660, %v828, %v652
    %v853 = vsel %vm661, %v829, %v653
    %v854 = vsel %vm662, %v830, %v654
    %v855 = vsel %vm663, %v831, %v655
    %v856 = vsel %vm664, %v832, %v656
    %vm857 = vcmp.eq.s32.totalorder %v449, 2
    %vm858 = vcmp.eq.s32.totalorder %v450, 2
    %vm859 = vcmp.eq.s32.totalorder %v451, 2
    %vm860 = vcmp.eq.s32.totalorder %v452, 2
    %vm861 = vcmp.eq.s32.totalorder %v453, 2
    %vm862 = vcmp.eq.s32.totalorder %v454, 2
    %vm863 = vcmp.eq.s32.totalorder %v455, 2
    %vm864 = vcmp.eq.s32.totalorder %v456, 2
    %s865 = sld [smem:[#allocation7 + $0x18]]
    %v866 = vstv %s865
    %v867 = vmul.f32 %v866, %v293
    %v868 = vmul.f32 %v866, %v294
    %v869 = vmul.f32 %v866, %v295
    %v870 = vmul.f32 %v866, %v296
    %v871 = vmul.f32 %v866, %v297
    %v872 = vmul.f32 %v866, %v298
    %v873 = vmul.f32 %v866, %v299
    %v874 = vmul.f32 %v866, %v300
    %s875 = sld [smem:[#allocation7 + $0x19]]
    %v876 = vstv %s875
    %v877 = vmul.f32 %v876, %v366
    %v878 = vmul.f32 %v876, %v367
    %v879 = vmul.f32 %v876, %v368
    %v880 = vmul.f32 %v876, %v369
    %v881 = vmul.f32 %v876, %v370
    %v882 = vmul.f32 %v876, %v371
    %v883 = vmul.f32 %v876, %v372
    %v884 = vmul.f32 %v876, %v373
    %v885 = vadd.f32 %v867, %v877
    %v886 = vadd.f32 %v868, %v878
    %v887 = vadd.f32 %v869, %v879
    %v888 = vadd.f32 %v870, %v880
    %v889 = vadd.f32 %v871, %v881
    %v890 = vadd.f32 %v872, %v882
    %v891 = vadd.f32 %v873, %v883
    %v892 = vadd.f32 %v874, %v884
    %s893 = sld [smem:[#allocation7 + $0x1a]]
    %v894 = vstv %s893
    %v895 = vmul.f32 %v894, %v439
    %v896 = vmul.f32 %v894, %v440
    %v897 = vmul.f32 %v894, %v441
    %v898 = vmul.f32 %v894, %v442
    %v899 = vmul.f32 %v894, %v443
    %v900 = vmul.f32 %v894, %v444
    %v901 = vmul.f32 %v894, %v445
    %v902 = vmul.f32 %v894, %v446
    %v903 = vadd.f32 %v885, %v895
    %v904 = vadd.f32 %v886, %v896
    %v905 = vadd.f32 %v887, %v897
    %v906 = vadd.f32 %v888, %v898
    %v907 = vadd.f32 %v889, %v899
    %v908 = vadd.f32 %v890, %v900
    %v909 = vadd.f32 %v891, %v901
    %v910 = vadd.f32 %v892, %v902
    %s911 = sld [smem:[#allocation7 + $0x21]]
    %v912 = vstv %s911
    %v913 = vadd.f32 %v903, %v912
    %v914 = vadd.f32 %v904, %v912
    %v915 = vadd.f32 %v905, %v912
    %v916 = vadd.f32 %v906, %v912
    %v917 = vadd.f32 %v907, %v912
    %v918 = vadd.f32 %v908, %v912
    %v919 = vadd.f32 %v909, %v912
    %v920 = vadd.f32 %v910, %v912
    %s921 = sld [smem:[#allocation7 + $0x1b]]
    %v922 = vstv %s921
    %v923 = vmul.f32 %v922, %v293
    %v924 = vmul.f32 %v922, %v294
    %v925 = vmul.f32 %v922, %v295
    %v926 = vmul.f32 %v922, %v296
    %v927 = vmul.f32 %v922, %v297
    %v928 = vmul.f32 %v922, %v298
    %v929 = vmul.f32 %v922, %v299
    %v930 = vmul.f32 %v922, %v300
    %s931 = sld [smem:[#allocation7 + $0x1c]]
    %v932 = vstv %s931
    %v933 = vmul.f32 %v932, %v366
    %v934 = vmul.f32 %v932, %v367
    %v935 = vmul.f32 %v932, %v368
    %v936 = vmul.f32 %v932, %v369
    %v937 = vmul.f32 %v932, %v370
    %v938 = vmul.f32 %v932, %v371
    %v939 = vmul.f32 %v932, %v372
    %v940 = vmul.f32 %v932, %v373
    %v941 = vadd.f32 %v923, %v933
    %v942 = vadd.f32 %v924, %v934
    %v943 = vadd.f32 %v925, %v935
    %v944 = vadd.f32 %v926, %v936
    %v945 = vadd.f32 %v927, %v937
    %v946 = vadd.f32 %v928, %v938
    %v947 = vadd.f32 %v929, %v939
    %v948 = vadd.f32 %v930, %v940
    %s949 = sld [smem:[#allocation7 + $0x1d]]
    %v950 = vstv %s949
    %v951 = vmul.f32 %v950, %v439
    %v952 = vmul.f32 %v950, %v440
    %v953 = vmul.f32 %v950, %v441
    %v954 = vmul.f32 %v950, %v442
    %v955 = vmul.f32 %v950, %v443
    %v956 = vmul.f32 %v950, %v444
    %v957 = vmul.f32 %v950, %v445
    %v958 = vmul.f32 %v950, %v446
    %v959 = vadd.f32 %v941, %v951
    %v960 = vadd.f32 %v942, %v952
    %v961 = vadd.f32 %v943, %v953
    %v962 = vadd.f32 %v944, %v954
    %v963 = vadd.f32 %v945, %v955
    %v964 = vadd.f32 %v946, %v956
    %v965 = vadd.f32 %v947, %v957
    %v966 = vadd.f32 %v948, %v958
    %s967 = sld [smem:[#allocation7 + $0x22]]
    %v968 = vstv %s967
    %v969 = vadd.f32 %v959, %v968
    %v970 = vadd.f32 %v960, %v968
    %v971 = vadd.f32 %v961, %v968
    %v972 = vadd.f32 %v962, %v968
    %v973 = vadd.f32 %v963, %v968
    %v974 = vadd.f32 %v964, %v968
    %v975 = vadd.f32 %v965, %v968
    %v976 = vadd.f32 %v966, %v968
    %s977 = sld [smem:[#allocation7 + $0x1e]]
    %v978 = vstv %s977
    %v979 = vmul.f32 %v978, %v293
    %v980 = vmul.f32 %v978, %v294
    %v981 = vmul.f32 %v978, %v295
    %v982 = vmul.f32 %v978, %v296
    %v983 = vmul.f32 %v978, %v297
    %v984 = vmul.f32 %v978, %v298
    %v985 = vmul.f32 %v978, %v299
    %v986 = vmul.f32 %v978, %v300
    %s987 = sld [smem:[#allocation7 + $0x1f]]
    %v988 = vstv %s987
    %v989 = vmul.f32 %v988, %v366
    %v990 = vmul.f32 %v988, %v367
    %v991 = vmul.f32 %v988, %v368
    %v992 = vmul.f32 %v988, %v369
    %v993 = vmul.f32 %v988, %v370
    %v994 = vmul.f32 %v988, %v371
    %v995 = vmul.f32 %v988, %v372
    %v996 = vmul.f32 %v988, %v373
    %v997 = vadd.f32 %v979, %v989
    %v998 = vadd.f32 %v980, %v990
    %v999 = vadd.f32 %v981, %v991
    %v1000 = vadd.f32 %v982, %v992
    %v1001 = vadd.f32 %v983, %v993
    %v1002 = vadd.f32 %v984, %v994
    %v1003 = vadd.f32 %v985, %v995
    %v1004 = vadd.f32 %v986, %v996
    %s1005 = sld [smem:[#allocation7 + $0x20]]
    %v1006 = vstv %s1005
    %v1007 = vmul.f32 %v1006, %v439
    %v1008 = vmul.f32 %v1006, %v440
    %v1009 = vmul.f32 %v1006, %v441
    %v1010 = vmul.f32 %v1006, %v442
    %v1011 = vmul.f32 %v1006, %v443
    %v1012 = vmul.f32 %v1006, %v444
    %v1013 = vmul.f32 %v1006, %v445
    %v1014 = vmul.f32 %v1006, %v446
    %v1015 = vadd.f32 %v997, %v1007
    %v1016 = vadd.f32 %v998, %v1008
    %v1017 = vadd.f32 %v999, %v1009
    %v1018 = vadd.f32 %v1000, %v1010
    %v1019 = vadd.f32 %v1001, %v1011
    %v1020 = vadd.f32 %v1002, %v1012
    %v1021 = vadd.f32 %v1003, %v1013
    %v1022 = vadd.f32 %v1004, %v1014
    %s1023 = sld [smem:[#allocation7 + $0x23]]
    %v1024 = vstv %s1023
    %v1025 = vadd.f32 %v1015, %v1024
    %v1026 = vadd.f32 %v1016, %v1024
    %v1027 = vadd.f32 %v1017, %v1024
    %v1028 = vadd.f32 %v1018, %v1024
    %v1029 = vadd.f32 %v1019, %v1024
    %v1030 = vadd.f32 %v1020, %v1024
    %v1031 = vadd.f32 %v1021, %v1024
    %v1032 = vadd.f32 %v1022, %v1024
    %v1033 = vsel %vm857, %v913, %v833
    %v1034 = vsel %vm858, %v914, %v834
    %v1035 = vsel %vm859, %v915, %v835
    %v1036 = vsel %vm860, %v916, %v836
    %v1037 = vsel %vm861, %v917, %v837
    %v1038 = vsel %vm862, %v918, %v838
    %v1039 = vsel %vm863, %v919, %v839
    %v1040 = vsel %vm864, %v920, %v840
    %v1041 = vsel %vm857, %v969, %v841
    %v1042 = vsel %vm858, %v970, %v842
    %v1043 = vsel %vm859, %v971, %v843
    %v1044 = vsel %vm860, %v972, %v844
    %v1045 = vsel %vm861, %v973, %v845
    %v1046 = vsel %vm862, %v974, %v846
    %v1047 = vsel %vm863, %v975, %v847
    %v1048 = vsel %vm864, %v976, %v848
    %v1049 = vsel %vm857, %v1025, %v849
    %v1050 = vsel %vm858, %v1026, %v850
    %v1051 = vsel %vm859, %v1027, %v851
    %v1052 = vsel %vm860, %v1028, %v852
    %v1053 = vsel %vm861, %v1029, %v853
    %v1054 = vsel %vm862, %v1030, %v854
    %v1055 = vsel %vm863, %v1031, %v855
    %v1056 = vsel %vm864, %v1032, %v856
    %vm1057 = vcmp.eq.s32.totalorder %v449, 3
    %vm1058 = vcmp.eq.s32.totalorder %v450, 3
    %vm1059 = vcmp.eq.s32.totalorder %v451, 3
    %vm1060 = vcmp.eq.s32.totalorder %v452, 3
    %vm1061 = vcmp.eq.s32.totalorder %v453, 3
    %vm1062 = vcmp.eq.s32.totalorder %v454, 3
    %vm1063 = vcmp.eq.s32.totalorder %v455, 3
    %vm1064 = vcmp.eq.s32.totalorder %v456, 3
    %s1065 = sld [smem:[#allocation7 + $0x24]]
    %v1066 = vstv %s1065
    %v1067 = vmul.f32 %v1066, %v293
    %v1068 = vmul.f32 %v1066, %v294
    %v1069 = vmul.f32 %v1066, %v295
    %v1070 = vmul.f32 %v1066, %v296
    %v1071 = vmul.f32 %v1066, %v297
    %v1072 = vmul.f32 %v1066, %v298
    %v1073 = vmul.f32 %v1066, %v299
    %v1074 = vmul.f32 %v1066, %v300
    %s1075 = sld [smem:[#allocation7 + $0x25]]
    %v1076 = vstv %s1075
    %v1077 = vmul.f32 %v1076, %v366
    %v1078 = vmul.f32 %v1076, %v367
    %v1079 = vmul.f32 %v1076, %v368
    %v1080 = vmul.f32 %v1076, %v369
    %v1081 = vmul.f32 %v1076, %v370
    %v1082 = vmul.f32 %v1076, %v371
    %v1083 = vmul.f32 %v1076, %v372
    %v1084 = vmul.f32 %v1076, %v373
    %v1085 = vadd.f32 %v1067, %v1077
    %v1086 = vadd.f32 %v1068, %v1078
    %v1087 = vadd.f32 %v1069, %v1079
    %v1088 = vadd.f32 %v1070, %v1080
    %v1089 = vadd.f32 %v1071, %v1081
    %v1090 = vadd.f32 %v1072, %v1082
    %v1091 = vadd.f32 %v1073, %v1083
    %v1092 = vadd.f32 %v1074, %v1084
    %s1093 = sld [smem:[#allocation7 + $0x26]]
    %v1094 = vstv %s1093
    %v1095 = vmul.f32 %v1094, %v439
    %v1096 = vmul.f32 %v1094, %v440
    %v1097 = vmul.f32 %v1094, %v441
    %v1098 = vmul.f32 %v1094, %v442
    %v1099 = vmul.f32 %v1094, %v443
    %v1100 = vmul.f32 %v1094, %v444
    %v1101 = vmul.f32 %v1094, %v445
    %v1102 = vmul.f32 %v1094, %v446
    %v1103 = vadd.f32 %v1085, %v1095
    %v1104 = vadd.f32 %v1086, %v1096
    %v1105 = vadd.f32 %v1087, %v1097
    %v1106 = vadd.f32 %v1088, %v1098
    %v1107 = vadd.f32 %v1089, %v1099
    %v1108 = vadd.f32 %v1090, %v1100
    %v1109 = vadd.f32 %v1091, %v1101
    %v1110 = vadd.f32 %v1092, %v1102
    %s1111 = sld [smem:[#allocation7 + $0x2d]]
    %v1112 = vstv %s1111
    %v1113 = vadd.f32 %v1103, %v1112
    %v1114 = vadd.f32 %v1104, %v1112
    %v1115 = vadd.f32 %v1105, %v1112
    %v1116 = vadd.f32 %v1106, %v1112
    %v1117 = vadd.f32 %v1107, %v1112
    %v1118 = vadd.f32 %v1108, %v1112
    %v1119 = vadd.f32 %v1109, %v1112
    %v1120 = vadd.f32 %v1110, %v1112
    %s1121 = sld [smem:[#allocation7 + $0x27]]
    %v1122 = vstv %s1121
    %v1123 = vmul.f32 %v1122, %v293
    %v1124 = vmul.f32 %v1122, %v294
    %v1125 = vmul.f32 %v1122, %v295
    %v1126 = vmul.f32 %v1122, %v296
    %v1127 = vmul.f32 %v1122, %v297
    %v1128 = vmul.f32 %v1122, %v298
    %v1129 = vmul.f32 %v1122, %v299
    %v1130 = vmul.f32 %v1122, %v300
    %s1131 = sld [smem:[#allocation7 + $0x28]]
    %v1132 = vstv %s1131
    %v1133 = vmul.f32 %v1132, %v366
    %v1134 = vmul.f32 %v1132, %v367
    %v1135 = vmul.f32 %v1132, %v368
    %v1136 = vmul.f32 %v1132, %v369
    %v1137 = vmul.f32 %v1132, %v370
    %v1138 = vmul.f32 %v1132, %v371
    %v1139 = vmul.f32 %v1132, %v372
    %v1140 = vmul.f32 %v1132, %v373
    %v1141 = vadd.f32 %v1123, %v1133
    %v1142 = vadd.f32 %v1124, %v1134
    %v1143 = vadd.f32 %v1125, %v1135
    %v1144 = vadd.f32 %v1126, %v1136
    %v1145 = vadd.f32 %v1127, %v1137
    %v1146 = vadd.f32 %v1128, %v1138
    %v1147 = vadd.f32 %v1129, %v1139
    %v1148 = vadd.f32 %v1130, %v1140
    %s1149 = sld [smem:[#allocation7 + $0x29]]
    %v1150 = vstv %s1149
    %v1151 = vmul.f32 %v1150, %v439
    %v1152 = vmul.f32 %v1150, %v440
    %v1153 = vmul.f32 %v1150, %v441
    %v1154 = vmul.f32 %v1150, %v442
    %v1155 = vmul.f32 %v1150, %v443
    %v1156 = vmul.f32 %v1150, %v444
    %v1157 = vmul.f32 %v1150, %v445
    %v1158 = vmul.f32 %v1150, %v446
    %v1159 = vadd.f32 %v1141, %v1151
    %v1160 = vadd.f32 %v1142, %v1152
    %v1161 = vadd.f32 %v1143, %v1153
    %v1162 = vadd.f32 %v1144, %v1154
    %v1163 = vadd.f32 %v1145, %v1155
    %v1164 = vadd.f32 %v1146, %v1156
    %v1165 = vadd.f32 %v1147, %v1157
    %v1166 = vadd.f32 %v1148, %v1158
    %s1167 = sld [smem:[#allocation7 + $0x2e]]
    %v1168 = vstv %s1167
    %v1169 = vadd.f32 %v1159, %v1168
    %v1170 = vadd.f32 %v1160, %v1168
    %v1171 = vadd.f32 %v1161, %v1168
    %v1172 = vadd.f32 %v1162, %v1168
    %v1173 = vadd.f32 %v1163, %v1168
    %v1174 = vadd.f32 %v1164, %v1168
    %v1175 = vadd.f32 %v1165, %v1168
    %v1176 = vadd.f32 %v1166, %v1168
    %s1177 = sld [smem:[#allocation7 + $0x2a]]
    %v1178 = vstv %s1177
    %v1179 = vmul.f32 %v1178, %v293
    %v1180 = vmul.f32 %v1178, %v294
    %v1181 = vmul.f32 %v1178, %v295
    %v1182 = vmul.f32 %v1178, %v296
    %v1183 = vmul.f32 %v1178, %v297
    %v1184 = vmul.f32 %v1178, %v298
    %v1185 = vmul.f32 %v1178, %v299
    %v1186 = vmul.f32 %v1178, %v300
    %s1187 = sld [smem:[#allocation7 + $0x2b]]
    %v1188 = vstv %s1187
    %v1189 = vmul.f32 %v1188, %v366
    %v1190 = vmul.f32 %v1188, %v367
    %v1191 = vmul.f32 %v1188, %v368
    %v1192 = vmul.f32 %v1188, %v369
    %v1193 = vmul.f32 %v1188, %v370
    %v1194 = vmul.f32 %v1188, %v371
    %v1195 = vmul.f32 %v1188, %v372
    %v1196 = vmul.f32 %v1188, %v373
    %v1197 = vadd.f32 %v1179, %v1189
    %v1198 = vadd.f32 %v1180, %v1190
    %v1199 = vadd.f32 %v1181, %v1191
    %v1200 = vadd.f32 %v1182, %v1192
    %v1201 = vadd.f32 %v1183, %v1193
    %v1202 = vadd.f32 %v1184, %v1194
    %v1203 = vadd.f32 %v1185, %v1195
    %v1204 = vadd.f32 %v1186, %v1196
    %s1205 = sld [smem:[#allocation7 + $0x2c]]
    %v1206 = vstv %s1205
    %v1207 = vmul.f32 %v1206, %v439
    %v1208 = vmul.f32 %v1206, %v440
    %v1209 = vmul.f32 %v1206, %v441
    %v1210 = vmul.f32 %v1206, %v442
    %v1211 = vmul.f32 %v1206, %v443
    %v1212 = vmul.f32 %v1206, %v444
    %v1213 = vmul.f32 %v1206, %v445
    %v1214 = vmul.f32 %v1206, %v446
    %v1215 = vadd.f32 %v1197, %v1207
    %v1216 = vadd.f32 %v1198, %v1208
    %v1217 = vadd.f32 %v1199, %v1209
    %v1218 = vadd.f32 %v1200, %v1210
    %v1219 = vadd.f32 %v1201, %v1211
    %v1220 = vadd.f32 %v1202, %v1212
    %v1221 = vadd.f32 %v1203, %v1213
    %v1222 = vadd.f32 %v1204, %v1214
    %s1223 = sld [smem:[#allocation7 + $0x2f]]
    %v1224 = vstv %s1223
    %v1225 = vadd.f32 %v1215, %v1224
    %v1226 = vadd.f32 %v1216, %v1224
    %v1227 = vadd.f32 %v1217, %v1224
    %v1228 = vadd.f32 %v1218, %v1224
    %v1229 = vadd.f32 %v1219, %v1224
    %v1230 = vadd.f32 %v1220, %v1224
    %v1231 = vadd.f32 %v1221, %v1224
    %v1232 = vadd.f32 %v1222, %v1224
    %v1233 = vsel %vm1057, %v1113, %v1033
    %v1234 = vsel %vm1058, %v1114, %v1034
    %v1235 = vsel %vm1059, %v1115, %v1035
    %v1236 = vsel %vm1060, %v1116, %v1036
    %v1237 = vsel %vm1061, %v1117, %v1037
    %v1238 = vsel %vm1062, %v1118, %v1038
    %v1239 = vsel %vm1063, %v1119, %v1039
    %v1240 = vsel %vm1064, %v1120, %v1040
    %v1241 = vsel %vm1057, %v1169, %v1041
    %v1242 = vsel %vm1058, %v1170, %v1042
    %v1243 = vsel %vm1059, %v1171, %v1043
    %v1244 = vsel %vm1060, %v1172, %v1044
    %v1245 = vsel %vm1061, %v1173, %v1045
    %v1246 = vsel %vm1062, %v1174, %v1046
    %v1247 = vsel %vm1063, %v1175, %v1047
    %v1248 = vsel %vm1064, %v1176, %v1048
    %v1249 = vsel %vm1057, %v1225, %v1049
    %v1250 = vsel %vm1058, %v1226, %v1050
    %v1251 = vsel %vm1059, %v1227, %v1051
    %v1252 = vsel %vm1060, %v1228, %v1052
    %v1253 = vsel %vm1061, %v1229, %v1053
    %v1254 = vsel %vm1062, %v1230, %v1054
    %v1255 = vsel %vm1063, %v1231, %v1055
    %v1256 = vsel %vm1064, %v1232, %v1056
    %vm1257 = vcmp.eq.s32.totalorder %v449, 4
    %vm1258 = vcmp.eq.s32.totalorder %v450, 4
    %vm1259 = vcmp.eq.s32.totalorder %v451, 4
    %vm1260 = vcmp.eq.s32.totalorder %v452, 4
    %vm1261 = vcmp.eq.s32.totalorder %v453, 4
    %vm1262 = vcmp.eq.s32.totalorder %v454, 4
    %vm1263 = vcmp.eq.s32.totalorder %v455, 4
    %vm1264 = vcmp.eq.s32.totalorder %v456, 4
    %s1265 = sld [smem:[#allocation7 + $0x30]]
    %v1266 = vstv %s1265
    %v1267 = vmul.f32 %v1266, %v293
    %v1268 = vmul.f32 %v1266, %v294
    %v1269 = vmul.f32 %v1266, %v295
    %v1270 = vmul.f32 %v1266, %v296
    %v1271 = vmul.f32 %v1266, %v297
    %v1272 = vmul.f32 %v1266, %v298
    %v1273 = vmul.f32 %v1266, %v299
    %v1274 = vmul.f32 %v1266, %v300
    %s1275 = sld [smem:[#allocation7 + $0x31]]
    %v1276 = vstv %s1275
    %v1277 = vmul.f32 %v1276, %v366
    %v1278 = vmul.f32 %v1276, %v367
    %v1279 = vmul.f32 %v1276, %v368
    %v1280 = vmul.f32 %v1276, %v369
    %v1281 = vmul.f32 %v1276, %v370
    %v1282 = vmul.f32 %v1276, %v371
    %v1283 = vmul.f32 %v1276, %v372
    %v1284 = vmul.f32 %v1276, %v373
    %v1285 = vadd.f32 %v1267, %v1277
    %v1286 = vadd.f32 %v1268, %v1278
    %v1287 = vadd.f32 %v1269, %v1279
    %v1288 = vadd.f32 %v1270, %v1280
    %v1289 = vadd.f32 %v1271, %v1281
    %v1290 = vadd.f32 %v1272, %v1282
    %v1291 = vadd.f32 %v1273, %v1283
    %v1292 = vadd.f32 %v1274, %v1284
    %s1293 = sld [smem:[#allocation7 + $0x32]]
    %v1294 = vstv %s1293
    %v1295 = vmul.f32 %v1294, %v439
    %v1296 = vmul.f32 %v1294, %v440
    %v1297 = vmul.f32 %v1294, %v441
    %v1298 = vmul.f32 %v1294, %v442
    %v1299 = vmul.f32 %v1294, %v443
    %v1300 = vmul.f32 %v1294, %v444
    %v1301 = vmul.f32 %v1294, %v445
    %v1302 = vmul.f32 %v1294, %v446
    %v1303 = vadd.f32 %v1285, %v1295
    %v1304 = vadd.f32 %v1286, %v1296
    %v1305 = vadd.f32 %v1287, %v1297
    %v1306 = vadd.f32 %v1288, %v1298
    %v1307 = vadd.f32 %v1289, %v1299
    %v1308 = vadd.f32 %v1290, %v1300
    %v1309 = vadd.f32 %v1291, %v1301
    %v1310 = vadd.f32 %v1292, %v1302
    %s1311 = sld [smem:[#allocation7 + $0x39]]
    %v1312 = vstv %s1311
    %v1313 = vadd.f32 %v1303, %v1312
    %v1314 = vadd.f32 %v1304, %v1312
    %v1315 = vadd.f32 %v1305, %v1312
    %v1316 = vadd.f32 %v1306, %v1312
    %v1317 = vadd.f32 %v1307, %v1312
    %v1318 = vadd.f32 %v1308, %v1312
    %v1319 = vadd.f32 %v1309, %v1312
    %v1320 = vadd.f32 %v1310, %v1312
    %s1321 = sld [smem:[#allocation7 + $0x33]]
    %v1322 = vstv %s1321
    %v1323 = vmul.f32 %v1322, %v293
    %v1324 = vmul.f32 %v1322, %v294
    %v1325 = vmul.f32 %v1322, %v295
    %v1326 = vmul.f32 %v1322, %v296
    %v1327 = vmul.f32 %v1322, %v297
    %v1328 = vmul.f32 %v1322, %v298
    %v1329 = vmul.f32 %v1322, %v299
    %v1330 = vmul.f32 %v1322, %v300
    %s1331 = sld [smem:[#allocation7 + $0x34]]
    %v1332 = vstv %s1331
    %v1333 = vmul.f32 %v1332, %v366
    %v1334 = vmul.f32 %v1332, %v367
    %v1335 = vmul.f32 %v1332, %v368
    %v1336 = vmul.f32 %v1332, %v369
    %v1337 = vmul.f32 %v1332, %v370
    %v1338 = vmul.f32 %v1332, %v371
    %v1339 = vmul.f32 %v1332, %v372
    %v1340 = vmul.f32 %v1332, %v373
    %v1341 = vadd.f32 %v1323, %v1333
    %v1342 = vadd.f32 %v1324, %v1334
    %v1343 = vadd.f32 %v1325, %v1335
    %v1344 = vadd.f32 %v1326, %v1336
    %v1345 = vadd.f32 %v1327, %v1337
    %v1346 = vadd.f32 %v1328, %v1338
    %v1347 = vadd.f32 %v1329, %v1339
    %v1348 = vadd.f32 %v1330, %v1340
    %s1349 = sld [smem:[#allocation7 + $0x35]]
    %v1350 = vstv %s1349
    %v1351 = vmul.f32 %v1350, %v439
    %v1352 = vmul.f32 %v1350, %v440
    %v1353 = vmul.f32 %v1350, %v441
    %v1354 = vmul.f32 %v1350, %v442
    %v1355 = vmul.f32 %v1350, %v443
    %v1356 = vmul.f32 %v1350, %v444
    %v1357 = vmul.f32 %v1350, %v445
    %v1358 = vmul.f32 %v1350, %v446
    %v1359 = vadd.f32 %v1341, %v1351
    %v1360 = vadd.f32 %v1342, %v1352
    %v1361 = vadd.f32 %v1343, %v1353
    %v1362 = vadd.f32 %v1344, %v1354
    %v1363 = vadd.f32 %v1345, %v1355
    %v1364 = vadd.f32 %v1346, %v1356
    %v1365 = vadd.f32 %v1347, %v1357
    %v1366 = vadd.f32 %v1348, %v1358
    %s1367 = sld [smem:[#allocation7 + $0x3a]]
    %v1368 = vstv %s1367
    %v1369 = vadd.f32 %v1359, %v1368
    %v1370 = vadd.f32 %v1360, %v1368
    %v1371 = vadd.f32 %v1361, %v1368
    %v1372 = vadd.f32 %v1362, %v1368
    %v1373 = vadd.f32 %v1363, %v1368
    %v1374 = vadd.f32 %v1364, %v1368
    %v1375 = vadd.f32 %v1365, %v1368
    %v1376 = vadd.f32 %v1366, %v1368
    %s1377 = sld [smem:[#allocation7 + $0x36]]
    %v1378 = vstv %s1377
    %v1379 = vmul.f32 %v1378, %v293
    %v1380 = vmul.f32 %v1378, %v294
    %v1381 = vmul.f32 %v1378, %v295
    %v1382 = vmul.f32 %v1378, %v296
    %v1383 = vmul.f32 %v1378, %v297
    %v1384 = vmul.f32 %v1378, %v298
    %v1385 = vmul.f32 %v1378, %v299
    %v1386 = vmul.f32 %v1378, %v300
    %s1387 = sld [smem:[#allocation7 + $0x37]]
    %v1388 = vstv %s1387
    %v1389 = vmul.f32 %v1388, %v366
    %v1390 = vmul.f32 %v1388, %v367
    %v1391 = vmul.f32 %v1388, %v368
    %v1392 = vmul.f32 %v1388, %v369
    %v1393 = vmul.f32 %v1388, %v370
    %v1394 = vmul.f32 %v1388, %v371
    %v1395 = vmul.f32 %v1388, %v372
    %v1396 = vmul.f32 %v1388, %v373
    %v1397 = vadd.f32 %v1379, %v1389
    %v1398 = vadd.f32 %v1380, %v1390
    %v1399 = vadd.f32 %v1381, %v1391
    %v1400 = vadd.f32 %v1382, %v1392
    %v1401 = vadd.f32 %v1383, %v1393
    %v1402 = vadd.f32 %v1384, %v1394
    %v1403 = vadd.f32 %v1385, %v1395
    %v1404 = vadd.f32 %v1386, %v1396
    %s1405 = sld [smem:[#allocation7 + $0x38]]
    %v1406 = vstv %s1405
    %v1407 = vmul.f32 %v1406, %v439
    %v1408 = vmul.f32 %v1406, %v440
    %v1409 = vmul.f32 %v1406, %v441
    %v1410 = vmul.f32 %v1406, %v442
    %v1411 = vmul.f32 %v1406, %v443
    %v1412 = vmul.f32 %v1406, %v444
    %v1413 = vmul.f32 %v1406, %v445
    %v1414 = vmul.f32 %v1406, %v446
    %v1415 = vadd.f32 %v1397, %v1407
    %v1416 = vadd.f32 %v1398, %v1408
    %v1417 = vadd.f32 %v1399, %v1409
    %v1418 = vadd.f32 %v1400, %v1410
    %v1419 = vadd.f32 %v1401, %v1411
    %v1420 = vadd.f32 %v1402, %v1412
    %v1421 = vadd.f32 %v1403, %v1413
    %v1422 = vadd.f32 %v1404, %v1414
    %s1423 = sld [smem:[#allocation7 + $0x3b]]
    %v1424 = vstv %s1423
    %v1425 = vadd.f32 %v1415, %v1424
    %v1426 = vadd.f32 %v1416, %v1424
    %v1427 = vadd.f32 %v1417, %v1424
    %v1428 = vadd.f32 %v1418, %v1424
    %v1429 = vadd.f32 %v1419, %v1424
    %v1430 = vadd.f32 %v1420, %v1424
    %v1431 = vadd.f32 %v1421, %v1424
    %v1432 = vadd.f32 %v1422, %v1424
    %v1433 = vsel %vm1257, %v1313, %v1233
    %v1434 = vsel %vm1258, %v1314, %v1234
    %v1435 = vsel %vm1259, %v1315, %v1235
    %v1436 = vsel %vm1260, %v1316, %v1236
    %v1437 = vsel %vm1261, %v1317, %v1237
    %v1438 = vsel %vm1262, %v1318, %v1238
    %v1439 = vsel %vm1263, %v1319, %v1239
    %v1440 = vsel %vm1264, %v1320, %v1240
    %v1441 = vsel %vm1257, %v1369, %v1241
    %v1442 = vsel %vm1258, %v1370, %v1242
    %v1443 = vsel %vm1259, %v1371, %v1243
    %v1444 = vsel %vm1260, %v1372, %v1244
    %v1445 = vsel %vm1261, %v1373, %v1245
    %v1446 = vsel %vm1262, %v1374, %v1246
    %v1447 = vsel %vm1263, %v1375, %v1247
    %v1448 = vsel %vm1264, %v1376, %v1248
    %v1449 = vsel %vm1257, %v1425, %v1249
    %v1450 = vsel %vm1258, %v1426, %v1250
    %v1451 = vsel %vm1259, %v1427, %v1251
    %v1452 = vsel %vm1260, %v1428, %v1252
    %v1453 = vsel %vm1261, %v1429, %v1253
    %v1454 = vsel %vm1262, %v1430, %v1254
    %v1455 = vsel %vm1263, %v1431, %v1255
    %v1456 = vsel %vm1264, %v1432, %v1256
    %vm1457 = vcmp.eq.s32.totalorder %v449, 5
    %vm1458 = vcmp.eq.s32.totalorder %v450, 5
    %vm1459 = vcmp.eq.s32.totalorder %v451, 5
    %vm1460 = vcmp.eq.s32.totalorder %v452, 5
    %vm1461 = vcmp.eq.s32.totalorder %v453, 5
    %vm1462 = vcmp.eq.s32.totalorder %v454, 5
    %vm1463 = vcmp.eq.s32.totalorder %v455, 5
    %vm1464 = vcmp.eq.s32.totalorder %v456, 5
    %s1465 = sld [smem:[#allocation7 + $0x3c]]
    %v1466 = vstv %s1465
    %v1467 = vmul.f32 %v1466, %v293
    %v1468 = vmul.f32 %v1466, %v294
    %v1469 = vmul.f32 %v1466, %v295
    %v1470 = vmul.f32 %v1466, %v296
    %v1471 = vmul.f32 %v1466, %v297
    %v1472 = vmul.f32 %v1466, %v298
    %v1473 = vmul.f32 %v1466, %v299
    %v1474 = vmul.f32 %v1466, %v300
    %s1475 = sld [smem:[#allocation7 + $0x3d]]
    %v1476 = vstv %s1475
    %v1477 = vmul.f32 %v1476, %v366
    %v1478 = vmul.f32 %v1476, %v367
    %v1479 = vmul.f32 %v1476, %v368
    %v1480 = vmul.f32 %v1476, %v369
    %v1481 = vmul.f32 %v1476, %v370
    %v1482 = vmul.f32 %v1476, %v371
    %v1483 = vmul.f32 %v1476, %v372
    %v1484 = vmul.f32 %v1476, %v373
    %v1485 = vadd.f32 %v1467, %v1477
    %v1486 = vadd.f32 %v1468, %v1478
    %v1487 = vadd.f32 %v1469, %v1479
    %v1488 = vadd.f32 %v1470, %v1480
    %v1489 = vadd.f32 %v1471, %v1481
    %v1490 = vadd.f32 %v1472, %v1482
    %v1491 = vadd.f32 %v1473, %v1483
    %v1492 = vadd.f32 %v1474, %v1484
    %s1493 = sld [smem:[#allocation7 + $0x3e]]
    %v1494 = vstv %s1493
    %v1495 = vmul.f32 %v1494, %v439
    %v1496 = vmul.f32 %v1494, %v440
    %v1497 = vmul.f32 %v1494, %v441
    %v1498 = vmul.f32 %v1494, %v442
    %v1499 = vmul.f32 %v1494, %v443
    %v1500 = vmul.f32 %v1494, %v444
    %v1501 = vmul.f32 %v1494, %v445
    %v1502 = vmul.f32 %v1494, %v446
    %v1503 = vadd.f32 %v1485, %v1495
    %v1504 = vadd.f32 %v1486, %v1496
    %v1505 = vadd.f32 %v1487, %v1497
    %v1506 = vadd.f32 %v1488, %v1498
    %v1507 = vadd.f32 %v1489, %v1499
    %v1508 = vadd.f32 %v1490, %v1500
    %v1509 = vadd.f32 %v1491, %v1501
    %v1510 = vadd.f32 %v1492, %v1502
    %s1511 = sld [smem:[#allocation7 + $0x45]]
    %v1512 = vstv %s1511
    %v1513 = vadd.f32 %v1503, %v1512
    %v1514 = vadd.f32 %v1504, %v1512
    %v1515 = vadd.f32 %v1505, %v1512
    %v1516 = vadd.f32 %v1506, %v1512
    %v1517 = vadd.f32 %v1507, %v1512
    %v1518 = vadd.f32 %v1508, %v1512
    %v1519 = vadd.f32 %v1509, %v1512
    %v1520 = vadd.f32 %v1510, %v1512
    %s1521 = sld [smem:[#allocation7 + $0x3f]]
    %v1522 = vstv %s1521
    %v1523 = vmul.f32 %v1522, %v293
    %v1524 = vmul.f32 %v1522, %v294
    %v1525 = vmul.f32 %v1522, %v295
    %v1526 = vmul.f32 %v1522, %v296
    %v1527 = vmul.f32 %v1522, %v297
    %v1528 = vmul.f32 %v1522, %v298
    %v1529 = vmul.f32 %v1522, %v299
    %v1530 = vmul.f32 %v1522, %v300
    %s1531 = sld [smem:[#allocation7 + $0x40]]
    %v1532 = vstv %s1531
    %v1533 = vmul.f32 %v1532, %v366
    %v1534 = vmul.f32 %v1532, %v367
    %v1535 = vmul.f32 %v1532, %v368
    %v1536 = vmul.f32 %v1532, %v369
    %v1537 = vmul.f32 %v1532, %v370
    %v1538 = vmul.f32 %v1532, %v371
    %v1539 = vmul.f32 %v1532, %v372
    %v1540 = vmul.f32 %v1532, %v373
    %v1541 = vadd.f32 %v1523, %v1533
    %v1542 = vadd.f32 %v1524, %v1534
    %v1543 = vadd.f32 %v1525, %v1535
    %v1544 = vadd.f32 %v1526, %v1536
    %v1545 = vadd.f32 %v1527, %v1537
    %v1546 = vadd.f32 %v1528, %v1538
    %v1547 = vadd.f32 %v1529, %v1539
    %v1548 = vadd.f32 %v1530, %v1540
    %s1549 = sld [smem:[#allocation7 + $0x41]]
    %v1550 = vstv %s1549
    %v1551 = vmul.f32 %v1550, %v439
    %v1552 = vmul.f32 %v1550, %v440
    %v1553 = vmul.f32 %v1550, %v441
    %v1554 = vmul.f32 %v1550, %v442
    %v1555 = vmul.f32 %v1550, %v443
    %v1556 = vmul.f32 %v1550, %v444
    %v1557 = vmul.f32 %v1550, %v445
    %v1558 = vmul.f32 %v1550, %v446
    %v1559 = vadd.f32 %v1541, %v1551
    %v1560 = vadd.f32 %v1542, %v1552
    %v1561 = vadd.f32 %v1543, %v1553
    %v1562 = vadd.f32 %v1544, %v1554
    %v1563 = vadd.f32 %v1545, %v1555
    %v1564 = vadd.f32 %v1546, %v1556
    %v1565 = vadd.f32 %v1547, %v1557
    %v1566 = vadd.f32 %v1548, %v1558
    %s1567 = sld [smem:[#allocation7 + $0x46]]
    %v1568 = vstv %s1567
    %v1569 = vadd.f32 %v1559, %v1568
    %v1570 = vadd.f32 %v1560, %v1568
    %v1571 = vadd.f32 %v1561, %v1568
    %v1572 = vadd.f32 %v1562, %v1568
    %v1573 = vadd.f32 %v1563, %v1568
    %v1574 = vadd.f32 %v1564, %v1568
    %v1575 = vadd.f32 %v1565, %v1568
    %v1576 = vadd.f32 %v1566, %v1568
    %s1577 = sld [smem:[#allocation7 + $0x42]]
    %v1578 = vstv %s1577
    %v1579 = vmul.f32 %v1578, %v293
    %v1580 = vmul.f32 %v1578, %v294
    %v1581 = vmul.f32 %v1578, %v295
    %v1582 = vmul.f32 %v1578, %v296
    %v1583 = vmul.f32 %v1578, %v297
    %v1584 = vmul.f32 %v1578, %v298
    %v1585 = vmul.f32 %v1578, %v299
    %v1586 = vmul.f32 %v1578, %v300
    %s1587 = sld [smem:[#allocation7 + $0x43]]
    %v1588 = vstv %s1587
    %v1589 = vmul.f32 %v1588, %v366
    %v1590 = vmul.f32 %v1588, %v367
    %v1591 = vmul.f32 %v1588, %v368
    %v1592 = vmul.f32 %v1588, %v369
    %v1593 = vmul.f32 %v1588, %v370
    %v1594 = vmul.f32 %v1588, %v371
    %v1595 = vmul.f32 %v1588, %v372
    %v1596 = vmul.f32 %v1588, %v373
    %v1597 = vadd.f32 %v1579, %v1589
    %v1598 = vadd.f32 %v1580, %v1590
    %v1599 = vadd.f32 %v1581, %v1591
    %v1600 = vadd.f32 %v1582, %v1592
    %v1601 = vadd.f32 %v1583, %v1593
    %v1602 = vadd.f32 %v1584, %v1594
    %v1603 = vadd.f32 %v1585, %v1595
    %v1604 = vadd.f32 %v1586, %v1596
    %s1605 = sld [smem:[#allocation7 + $0x44]]
    %v1606 = vstv %s1605
    %v1607 = vmul.f32 %v1606, %v439
    %v1608 = vmul.f32 %v1606, %v440
    %v1609 = vmul.f32 %v1606, %v441
    %v1610 = vmul.f32 %v1606, %v442
    %v1611 = vmul.f32 %v1606, %v443
    %v1612 = vmul.f32 %v1606, %v444
    %v1613 = vmul.f32 %v1606, %v445
    %v1614 = vmul.f32 %v1606, %v446
    %v1615 = vadd.f32 %v1597, %v1607
    %v1616 = vadd.f32 %v1598, %v1608
    %v1617 = vadd.f32 %v1599, %v1609
    %v1618 = vadd.f32 %v1600, %v1610
    %v1619 = vadd.f32 %v1601, %v1611
    %v1620 = vadd.f32 %v1602, %v1612
    %v1621 = vadd.f32 %v1603, %v1613
    %v1622 = vadd.f32 %v1604, %v1614
    %s1623 = sld [smem:[#allocation7 + $0x47]]
    %v1624 = vstv %s1623
    %v1625 = vadd.f32 %v1615, %v1624
    %v1626 = vadd.f32 %v1616, %v1624
    %v1627 = vadd.f32 %v1617, %v1624
    %v1628 = vadd.f32 %v1618, %v1624
    %v1629 = vadd.f32 %v1619, %v1624
    %v1630 = vadd.f32 %v1620, %v1624
    %v1631 = vadd.f32 %v1621, %v1624
    %v1632 = vadd.f32 %v1622, %v1624
    %v1633 = vsel %vm1457, %v1513, %v1433
    %v1634 = vsel %vm1458, %v1514, %v1434
    %v1635 = vsel %vm1459, %v1515, %v1435
    %v1636 = vsel %vm1460, %v1516, %v1436
    %v1637 = vsel %vm1461, %v1517, %v1437
    %v1638 = vsel %vm1462, %v1518, %v1438
    %v1639 = vsel %vm1463, %v1519, %v1439
    %v1640 = vsel %vm1464, %v1520, %v1440
    %v1641 = vsel %vm1457, %v1569, %v1441
    %v1642 = vsel %vm1458, %v1570, %v1442
    %v1643 = vsel %vm1459, %v1571, %v1443
    %v1644 = vsel %vm1460, %v1572, %v1444
    %v1645 = vsel %vm1461, %v1573, %v1445
    %v1646 = vsel %vm1462, %v1574, %v1446
    %v1647 = vsel %vm1463, %v1575, %v1447
    %v1648 = vsel %vm1464, %v1576, %v1448
    %v1649 = vsel %vm1457, %v1625, %v1449
    %v1650 = vsel %vm1458, %v1626, %v1450
    %v1651 = vsel %vm1459, %v1627, %v1451
    %v1652 = vsel %vm1460, %v1628, %v1452
    %v1653 = vsel %vm1461, %v1629, %v1453
    %v1654 = vsel %vm1462, %v1630, %v1454
    %v1655 = vsel %vm1463, %v1631, %v1455
    %v1656 = vsel %vm1464, %v1632, %v1456
    %vm1657 = vcmp.eq.s32.totalorder %v449, 6
    %vm1658 = vcmp.eq.s32.totalorder %v450, 6
    %vm1659 = vcmp.eq.s32.totalorder %v451, 6
    %vm1660 = vcmp.eq.s32.totalorder %v452, 6
    %vm1661 = vcmp.eq.s32.totalorder %v453, 6
    %vm1662 = vcmp.eq.s32.totalorder %v454, 6
    %vm1663 = vcmp.eq.s32.totalorder %v455, 6
    %vm1664 = vcmp.eq.s32.totalorder %v456, 6
    %s1665 = sld [smem:[#allocation7 + $0x48]]
    %v1666 = vstv %s1665
    %v1667 = vmul.f32 %v1666, %v293
    %v1668 = vmul.f32 %v1666, %v294
    %v1669 = vmul.f32 %v1666, %v295
    %v1670 = vmul.f32 %v1666, %v296
    %v1671 = vmul.f32 %v1666, %v297
    %v1672 = vmul.f32 %v1666, %v298
    %v1673 = vmul.f32 %v1666, %v299
    %v1674 = vmul.f32 %v1666, %v300
    %s1675 = sld [smem:[#allocation7 + $0x49]]
    %v1676 = vstv %s1675
    %v1677 = vmul.f32 %v1676, %v366
    %v1678 = vmul.f32 %v1676, %v367
    %v1679 = vmul.f32 %v1676, %v368
    %v1680 = vmul.f32 %v1676, %v369
    %v1681 = vmul.f32 %v1676, %v370
    %v1682 = vmul.f32 %v1676, %v371
    %v1683 = vmul.f32 %v1676, %v372
    %v1684 = vmul.f32 %v1676, %v373
    %v1685 = vadd.f32 %v1667, %v1677
    %v1686 = vadd.f32 %v1668, %v1678
    %v1687 = vadd.f32 %v1669, %v1679
    %v1688 = vadd.f32 %v1670, %v1680
    %v1689 = vadd.f32 %v1671, %v1681
    %v1690 = vadd.f32 %v1672, %v1682
    %v1691 = vadd.f32 %v1673, %v1683
    %v1692 = vadd.f32 %v1674, %v1684
    %s1693 = sld [smem:[#allocation7 + $0x4a]]
    %v1694 = vstv %s1693
    %v1695 = vmul.f32 %v1694, %v439
    %v1696 = vmul.f32 %v1694, %v440
    %v1697 = vmul.f32 %v1694, %v441
    %v1698 = vmul.f32 %v1694, %v442
    %v1699 = vmul.f32 %v1694, %v443
    %v1700 = vmul.f32 %v1694, %v444
    %v1701 = vmul.f32 %v1694, %v445
    %v1702 = vmul.f32 %v1694, %v446
    %v1703 = vadd.f32 %v1685, %v1695
    %v1704 = vadd.f32 %v1686, %v1696
    %v1705 = vadd.f32 %v1687, %v1697
    %v1706 = vadd.f32 %v1688, %v1698
    %v1707 = vadd.f32 %v1689, %v1699
    %v1708 = vadd.f32 %v1690, %v1700
    %v1709 = vadd.f32 %v1691, %v1701
    %v1710 = vadd.f32 %v1692, %v1702
    %s1711 = sld [smem:[#allocation7 + $0x51]]
    %v1712 = vstv %s1711
    %v1713 = vadd.f32 %v1703, %v1712
    %v1714 = vadd.f32 %v1704, %v1712
    %v1715 = vadd.f32 %v1705, %v1712
    %v1716 = vadd.f32 %v1706, %v1712
    %v1717 = vadd.f32 %v1707, %v1712
    %v1718 = vadd.f32 %v1708, %v1712
    %v1719 = vadd.f32 %v1709, %v1712
    %v1720 = vadd.f32 %v1710, %v1712
    %s1721 = sld [smem:[#allocation7 + $0x4b]]
    %v1722 = vstv %s1721
    %v1723 = vmul.f32 %v1722, %v293
    %v1724 = vmul.f32 %v1722, %v294
    %v1725 = vmul.f32 %v1722, %v295
    %v1726 = vmul.f32 %v1722, %v296
    %v1727 = vmul.f32 %v1722, %v297
    %v1728 = vmul.f32 %v1722, %v298
    %v1729 = vmul.f32 %v1722, %v299
    %v1730 = vmul.f32 %v1722, %v300
    %s1731 = sld [smem:[#allocation7 + $0x4c]]
    %v1732 = vstv %s1731
    %v1733 = vmul.f32 %v1732, %v366
    %v1734 = vmul.f32 %v1732, %v367
    %v1735 = vmul.f32 %v1732, %v368
    %v1736 = vmul.f32 %v1732, %v369
    %v1737 = vmul.f32 %v1732, %v370
    %v1738 = vmul.f32 %v1732, %v371
    %v1739 = vmul.f32 %v1732, %v372
    %v1740 = vmul.f32 %v1732, %v373
    %v1741 = vadd.f32 %v1723, %v1733
    %v1742 = vadd.f32 %v1724, %v1734
    %v1743 = vadd.f32 %v1725, %v1735
    %v1744 = vadd.f32 %v1726, %v1736
    %v1745 = vadd.f32 %v1727, %v1737
    %v1746 = vadd.f32 %v1728, %v1738
    %v1747 = vadd.f32 %v1729, %v1739
    %v1748 = vadd.f32 %v1730, %v1740
    %s1749 = sld [smem:[#allocation7 + $0x4d]]
    %v1750 = vstv %s1749
    %v1751 = vmul.f32 %v1750, %v439
    %v1752 = vmul.f32 %v1750, %v440
    %v1753 = vmul.f32 %v1750, %v441
    %v1754 = vmul.f32 %v1750, %v442
    %v1755 = vmul.f32 %v1750, %v443
    %v1756 = vmul.f32 %v1750, %v444
    %v1757 = vmul.f32 %v1750, %v445
    %v1758 = vmul.f32 %v1750, %v446
    %v1759 = vadd.f32 %v1741, %v1751
    %v1760 = vadd.f32 %v1742, %v1752
    %v1761 = vadd.f32 %v1743, %v1753
    %v1762 = vadd.f32 %v1744, %v1754
    %v1763 = vadd.f32 %v1745, %v1755
    %v1764 = vadd.f32 %v1746, %v1756
    %v1765 = vadd.f32 %v1747, %v1757
    %v1766 = vadd.f32 %v1748, %v1758
    %s1767 = sld [smem:[#allocation7 + $0x52]]
    %v1768 = vstv %s1767
    %v1769 = vadd.f32 %v1759, %v1768
    %v1770 = vadd.f32 %v1760, %v1768
    %v1771 = vadd.f32 %v1761, %v1768
    %v1772 = vadd.f32 %v1762, %v1768
    %v1773 = vadd.f32 %v1763, %v1768
    %v1774 = vadd.f32 %v1764, %v1768
    %v1775 = vadd.f32 %v1765, %v1768
    %v1776 = vadd.f32 %v1766, %v1768
    %s1777 = sld [smem:[#allocation7 + $0x4e]]
    %v1778 = vstv %s1777
    %v1779 = vmul.f32 %v1778, %v293
    %v1780 = vmul.f32 %v1778, %v294
    %v1781 = vmul.f32 %v1778, %v295
    %v1782 = vmul.f32 %v1778, %v296
    %v1783 = vmul.f32 %v1778, %v297
    %v1784 = vmul.f32 %v1778, %v298
    %v1785 = vmul.f32 %v1778, %v299
    %v1786 = vmul.f32 %v1778, %v300
    %s1787 = sld [smem:[#allocation7 + $0x4f]]
    %v1788 = vstv %s1787
    %v1789 = vmul.f32 %v1788, %v366
    %v1790 = vmul.f32 %v1788, %v367
    %v1791 = vmul.f32 %v1788, %v368
    %v1792 = vmul.f32 %v1788, %v369
    %v1793 = vmul.f32 %v1788, %v370
    %v1794 = vmul.f32 %v1788, %v371
    %v1795 = vmul.f32 %v1788, %v372
    %v1796 = vmul.f32 %v1788, %v373
    %v1797 = vadd.f32 %v1779, %v1789
    %v1798 = vadd.f32 %v1780, %v1790
    %v1799 = vadd.f32 %v1781, %v1791
    %v1800 = vadd.f32 %v1782, %v1792
    %v1801 = vadd.f32 %v1783, %v1793
    %v1802 = vadd.f32 %v1784, %v1794
    %v1803 = vadd.f32 %v1785, %v1795
    %v1804 = vadd.f32 %v1786, %v1796
    %s1805 = sld [smem:[#allocation7 + $0x50]]
    %v1806 = vstv %s1805
    %v1807 = vmul.f32 %v1806, %v439
    %v1808 = vmul.f32 %v1806, %v440
    %v1809 = vmul.f32 %v1806, %v441
    %v1810 = vmul.f32 %v1806, %v442
    %v1811 = vmul.f32 %v1806, %v443
    %v1812 = vmul.f32 %v1806, %v444
    %v1813 = vmul.f32 %v1806, %v445
    %v1814 = vmul.f32 %v1806, %v446
    %v1815 = vadd.f32 %v1797, %v1807
    %v1816 = vadd.f32 %v1798, %v1808
    %v1817 = vadd.f32 %v1799, %v1809
    %v1818 = vadd.f32 %v1800, %v1810
    %v1819 = vadd.f32 %v1801, %v1811
    %v1820 = vadd.f32 %v1802, %v1812
    %v1821 = vadd.f32 %v1803, %v1813
    %v1822 = vadd.f32 %v1804, %v1814
    %s1823 = sld [smem:[#allocation7 + $0x53]]
    %v1824 = vstv %s1823
    %v1825 = vadd.f32 %v1815, %v1824
    %v1826 = vadd.f32 %v1816, %v1824
    %v1827 = vadd.f32 %v1817, %v1824
    %v1828 = vadd.f32 %v1818, %v1824
    %v1829 = vadd.f32 %v1819, %v1824
    %v1830 = vadd.f32 %v1820, %v1824
    %v1831 = vadd.f32 %v1821, %v1824
    %v1832 = vadd.f32 %v1822, %v1824
    %v1833 = vsel %vm1657, %v1713, %v1633
    %v1834 = vsel %vm1658, %v1714, %v1634
    %v1835 = vsel %vm1659, %v1715, %v1635
    %v1836 = vsel %vm1660, %v1716, %v1636
    %v1837 = vsel %vm1661, %v1717, %v1637
    %v1838 = vsel %vm1662, %v1718, %v1638
    %v1839 = vsel %vm1663, %v1719, %v1639
    %v1840 = vsel %vm1664, %v1720, %v1640
    %v1841 = vsel %vm1657, %v1769, %v1641
    %v1842 = vsel %vm1658, %v1770, %v1642
    %v1843 = vsel %vm1659, %v1771, %v1643
    %v1844 = vsel %vm1660, %v1772, %v1644
    %v1845 = vsel %vm1661, %v1773, %v1645
    %v1846 = vsel %vm1662, %v1774, %v1646
    %v1847 = vsel %vm1663, %v1775, %v1647
    %v1848 = vsel %vm1664, %v1776, %v1648
    %v1849 = vsel %vm1657, %v1825, %v1649
    %v1850 = vsel %vm1658, %v1826, %v1650
    %v1851 = vsel %vm1659, %v1827, %v1651
    %v1852 = vsel %vm1660, %v1828, %v1652
    %v1853 = vsel %vm1661, %v1829, %v1653
    %v1854 = vsel %vm1662, %v1830, %v1654
    %v1855 = vsel %vm1663, %v1831, %v1655
    %v1856 = vsel %vm1664, %v1832, %v1656
    %vm1857 = vcmp.eq.s32.totalorder %v449, 7
    %vm1858 = vcmp.eq.s32.totalorder %v450, 7
    %vm1859 = vcmp.eq.s32.totalorder %v451, 7
    %vm1860 = vcmp.eq.s32.totalorder %v452, 7
    %vm1861 = vcmp.eq.s32.totalorder %v453, 7
    %vm1862 = vcmp.eq.s32.totalorder %v454, 7
    %vm1863 = vcmp.eq.s32.totalorder %v455, 7
    %vm1864 = vcmp.eq.s32.totalorder %v456, 7
    %s1865 = sld [smem:[#allocation7 + $0x54]]
    %v1866 = vstv %s1865
    %v1867 = vmul.f32 %v1866, %v293
    %v1868 = vmul.f32 %v1866, %v294
    %v1869 = vmul.f32 %v1866, %v295
    %v1870 = vmul.f32 %v1866, %v296
    %v1871 = vmul.f32 %v1866, %v297
    %v1872 = vmul.f32 %v1866, %v298
    %v1873 = vmul.f32 %v1866, %v299
    %v1874 = vmul.f32 %v1866, %v300
    %s1875 = sld [smem:[#allocation7 + $0x55]]
    %v1876 = vstv %s1875
    %v1877 = vmul.f32 %v1876, %v366
    %v1878 = vmul.f32 %v1876, %v367
    %v1879 = vmul.f32 %v1876, %v368
    %v1880 = vmul.f32 %v1876, %v369
    %v1881 = vmul.f32 %v1876, %v370
    %v1882 = vmul.f32 %v1876, %v371
    %v1883 = vmul.f32 %v1876, %v372
    %v1884 = vmul.f32 %v1876, %v373
    %v1885 = vadd.f32 %v1867, %v1877
    %v1886 = vadd.f32 %v1868, %v1878
    %v1887 = vadd.f32 %v1869, %v1879
    %v1888 = vadd.f32 %v1870, %v1880
    %v1889 = vadd.f32 %v1871, %v1881
    %v1890 = vadd.f32 %v1872, %v1882
    %v1891 = vadd.f32 %v1873, %v1883
    %v1892 = vadd.f32 %v1874, %v1884
    %s1893 = sld [smem:[#allocation7 + $0x56]]
    %v1894 = vstv %s1893
    %v1895 = vmul.f32 %v1894, %v439
    %v1896 = vmul.f32 %v1894, %v440
    %v1897 = vmul.f32 %v1894, %v441
    %v1898 = vmul.f32 %v1894, %v442
    %v1899 = vmul.f32 %v1894, %v443
    %v1900 = vmul.f32 %v1894, %v444
    %v1901 = vmul.f32 %v1894, %v445
    %v1902 = vmul.f32 %v1894, %v446
    %v1903 = vadd.f32 %v1885, %v1895
    %v1904 = vadd.f32 %v1886, %v1896
    %v1905 = vadd.f32 %v1887, %v1897
    %v1906 = vadd.f32 %v1888, %v1898
    %v1907 = vadd.f32 %v1889, %v1899
    %v1908 = vadd.f32 %v1890, %v1900
    %v1909 = vadd.f32 %v1891, %v1901
    %v1910 = vadd.f32 %v1892, %v1902
    %s1911 = sld [smem:[#allocation7 + $0x5d]]
    %v1912 = vstv %s1911
    %v1913 = vadd.f32 %v1903, %v1912
    %v1914 = vadd.f32 %v1904, %v1912
    %v1915 = vadd.f32 %v1905, %v1912
    %v1916 = vadd.f32 %v1906, %v1912
    %v1917 = vadd.f32 %v1907, %v1912
    %v1918 = vadd.f32 %v1908, %v1912
    %v1919 = vadd.f32 %v1909, %v1912
    %v1920 = vadd.f32 %v1910, %v1912
    %s1921 = sld [smem:[#allocation7 + $0x57]]
    %v1922 = vstv %s1921
    %v1923 = vmul.f32 %v1922, %v293
    %v1924 = vmul.f32 %v1922, %v294
    %v1925 = vmul.f32 %v1922, %v295
    %v1926 = vmul.f32 %v1922, %v296
    %v1927 = vmul.f32 %v1922, %v297
    %v1928 = vmul.f32 %v1922, %v298
    %v1929 = vmul.f32 %v1922, %v299
    %v1930 = vmul.f32 %v1922, %v300
    %s1931 = sld [smem:[#allocation7 + $0x58]]
    %v1932 = vstv %s1931
    %v1933 = vmul.f32 %v1932, %v366
    %v1934 = vmul.f32 %v1932, %v367
    %v1935 = vmul.f32 %v1932, %v368
    %v1936 = vmul.f32 %v1932, %v369
    %v1937 = vmul.f32 %v1932, %v370
    %v1938 = vmul.f32 %v1932, %v371
    %v1939 = vmul.f32 %v1932, %v372
    %v1940 = vmul.f32 %v1932, %v373
    %v1941 = vadd.f32 %v1923, %v1933
    %v1942 = vadd.f32 %v1924, %v1934
    %v1943 = vadd.f32 %v1925, %v1935
    %v1944 = vadd.f32 %v1926, %v1936
    %v1945 = vadd.f32 %v1927, %v1937
    %v1946 = vadd.f32 %v1928, %v1938
    %v1947 = vadd.f32 %v1929, %v1939
    %v1948 = vadd.f32 %v1930, %v1940
    %s1949 = sld [smem:[#allocation7 + $0x59]]
    %v1950 = vstv %s1949
    %v1951 = vmul.f32 %v1950, %v439
    %v1952 = vmul.f32 %v1950, %v440
    %v1953 = vmul.f32 %v1950, %v441
    %v1954 = vmul.f32 %v1950, %v442
    %v1955 = vmul.f32 %v1950, %v443
    %v1956 = vmul.f32 %v1950, %v444
    %v1957 = vmul.f32 %v1950, %v445
    %v1958 = vmul.f32 %v1950, %v446
    %v1959 = vadd.f32 %v1941, %v1951
    %v1960 = vadd.f32 %v1942, %v1952
    %v1961 = vadd.f32 %v1943, %v1953
    %v1962 = vadd.f32 %v1944, %v1954
    %v1963 = vadd.f32 %v1945, %v1955
    %v1964 = vadd.f32 %v1946, %v1956
    %v1965 = vadd.f32 %v1947, %v1957
    %v1966 = vadd.f32 %v1948, %v1958
    %s1967 = sld [smem:[#allocation7 + $0x5e]]
    %v1968 = vstv %s1967
    %v1969 = vadd.f32 %v1959, %v1968
    %v1970 = vadd.f32 %v1960, %v1968
    %v1971 = vadd.f32 %v1961, %v1968
    %v1972 = vadd.f32 %v1962, %v1968
    %v1973 = vadd.f32 %v1963, %v1968
    %v1974 = vadd.f32 %v1964, %v1968
    %v1975 = vadd.f32 %v1965, %v1968
    %v1976 = vadd.f32 %v1966, %v1968
    %s1977 = sld [smem:[#allocation7 + $0x5a]]
    %v1978 = vstv %s1977
    %v1979 = vmul.f32 %v1978, %v293
    %v1980 = vmul.f32 %v1978, %v294
    %v1981 = vmul.f32 %v1978, %v295
    %v1982 = vmul.f32 %v1978, %v296
    %v1983 = vmul.f32 %v1978, %v297
    %v1984 = vmul.f32 %v1978, %v298
    %v1985 = vmul.f32 %v1978, %v299
    %v1986 = vmul.f32 %v1978, %v300
    %s1987 = sld [smem:[#allocation7 + $0x5b]]
    %v1988 = vstv %s1987
    %v1989 = vmul.f32 %v1988, %v366
    %v1990 = vmul.f32 %v1988, %v367
    %v1991 = vmul.f32 %v1988, %v368
    %v1992 = vmul.f32 %v1988, %v369
    %v1993 = vmul.f32 %v1988, %v370
    %v1994 = vmul.f32 %v1988, %v371
    %v1995 = vmul.f32 %v1988, %v372
    %v1996 = vmul.f32 %v1988, %v373
    %v1997 = vadd.f32 %v1979, %v1989
    %v1998 = vadd.f32 %v1980, %v1990
    %v1999 = vadd.f32 %v1981, %v1991
    %v2000 = vadd.f32 %v1982, %v1992
    %v2001 = vadd.f32 %v1983, %v1993
    %v2002 = vadd.f32 %v1984, %v1994
    %v2003 = vadd.f32 %v1985, %v1995
    %v2004 = vadd.f32 %v1986, %v1996
    %s2005 = sld [smem:[#allocation7 + $0x5c]]
    %v2006 = vstv %s2005
    %v2007 = vmul.f32 %v2006, %v439
    %v2008 = vmul.f32 %v2006, %v440
    %v2009 = vmul.f32 %v2006, %v441
    %v2010 = vmul.f32 %v2006, %v442
    %v2011 = vmul.f32 %v2006, %v443
    %v2012 = vmul.f32 %v2006, %v444
    %v2013 = vmul.f32 %v2006, %v445
    %v2014 = vmul.f32 %v2006, %v446
    %v2015 = vadd.f32 %v1997, %v2007
    %v2016 = vadd.f32 %v1998, %v2008
    %v2017 = vadd.f32 %v1999, %v2009
    %v2018 = vadd.f32 %v2000, %v2010
    %v2019 = vadd.f32 %v2001, %v2011
    %v2020 = vadd.f32 %v2002, %v2012
    %v2021 = vadd.f32 %v2003, %v2013
    %v2022 = vadd.f32 %v2004, %v2014
    %s2023 = sld [smem:[#allocation7 + $0x5f]]
    %v2024 = vstv %s2023
    %v2025 = vadd.f32 %v2015, %v2024
    %v2026 = vadd.f32 %v2016, %v2024
    %v2027 = vadd.f32 %v2017, %v2024
    %v2028 = vadd.f32 %v2018, %v2024
    %v2029 = vadd.f32 %v2019, %v2024
    %v2030 = vadd.f32 %v2020, %v2024
    %v2031 = vadd.f32 %v2021, %v2024
    %v2032 = vadd.f32 %v2022, %v2024
    %v2033 = vsel %vm1857, %v1913, %v1833
    %v2034 = vsel %vm1858, %v1914, %v1834
    %v2035 = vsel %vm1859, %v1915, %v1835
    %v2036 = vsel %vm1860, %v1916, %v1836
    %v2037 = vsel %vm1861, %v1917, %v1837
    %v2038 = vsel %vm1862, %v1918, %v1838
    %v2039 = vsel %vm1863, %v1919, %v1839
    %v2040 = vsel %vm1864, %v1920, %v1840
    %v2041 = vsel %vm1857, %v1969, %v1841
    %v2042 = vsel %vm1858, %v1970, %v1842
    %v2043 = vsel %vm1859, %v1971, %v1843
    %v2044 = vsel %vm1860, %v1972, %v1844
    %v2045 = vsel %vm1861, %v1973, %v1845
    %v2046 = vsel %vm1862, %v1974, %v1846
    %v2047 = vsel %vm1863, %v1975, %v1847
    %v2048 = vsel %vm1864, %v1976, %v1848
    %v2049 = vsel %vm1857, %v2025, %v1849
    %v2050 = vsel %vm1858, %v2026, %v1850
    %v2051 = vsel %vm1859, %v2027, %v1851
    %v2052 = vsel %vm1860, %v2028, %v1852
    %v2053 = vsel %vm1861, %v2029, %v1853
    %v2054 = vsel %vm1862, %v2030, %v1854
    %v2055 = vsel %vm1863, %v2031, %v1855
    %v2056 = vsel %vm1864, %v2032, %v1856
    %v2057 = vld [vmem:[#allocation12] sm:$0xff]
    %v2058 = vld [vmem:[#allocation12 + $0x8] sm:$0xff]
    %v2059 = vld [vmem:[#allocation12 + $0x10] sm:$0xff]
    %v2060 = vld [vmem:[#allocation12 + $0x18] sm:$0xff]
    %v2061 = vld [vmem:[#allocation12 + $0x20] sm:$0xff]
    %v2062 = vld [vmem:[#allocation12 + $0x28] sm:$0xff]
    %v2063 = vld [vmem:[#allocation12 + $0x30] sm:$0xff]
    %v2064 = vld [vmem:[#allocation12 + $0x38] sm:$0xff]
    %v2065 = vsub.f32 1.0, %v2057
    %v2066 = vsub.f32 1.0, %v2058
    %v2067 = vsub.f32 1.0, %v2059
    %v2068 = vsub.f32 1.0, %v2060
    %v2069 = vsub.f32 1.0, %v2061
    %v2070 = vsub.f32 1.0, %v2062
    %v2071 = vsub.f32 1.0, %v2063
    %v2072 = vsub.f32 1.0, %v2064
    %v2073 = vmul.f32 %v2033, 0.5
    %v2074 = vmul.f32 %v2034, 0.5
    %v2075 = vmul.f32 %v2035, 0.5
    %v2076 = vmul.f32 %v2036, 0.5
    %v2077 = vmul.f32 %v2037, 0.5
    %v2078 = vmul.f32 %v2038, 0.5
    %v2079 = vmul.f32 %v2039, 0.5
    %v2080 = vmul.f32 %v2040, 0.5
    %v2081 = vfloor.f32 %v2073
    %v2082 = vfloor.f32 %v2074
    %v2083 = vfloor.f32 %v2075
    %v2084 = vfloor.f32 %v2076
    %v2085 = vfloor.f32 %v2077
    %v2086 = vfloor.f32 %v2078
    %v2087 = vfloor.f32 %v2079
    %v2088 = vfloor.f32 %v2080
    %v2089 = vmul.f32 %v2081, 2.0
    %v2090 = vmul.f32 %v2082, 2.0
    %v2091 = vmul.f32 %v2083, 2.0
    %v2092 = vmul.f32 %v2084, 2.0
    %v2093 = vmul.f32 %v2085, 2.0
    %v2094 = vmul.f32 %v2086, 2.0
    %v2095 = vmul.f32 %v2087, 2.0
    %v2096 = vmul.f32 %v2088, 2.0
    %v2097 = vsub.f32 %v2033, %v2089
    %v2098 = vsub.f32 %v2034, %v2090
    %v2099 = vsub.f32 %v2035, %v2091
    %v2100 = vsub.f32 %v2036, %v2092
    %v2101 = vsub.f32 %v2037, %v2093
    %v2102 = vsub.f32 %v2038, %v2094
    %v2103 = vsub.f32 %v2039, %v2095
    %v2104 = vsub.f32 %v2040, %v2096
    %vm2105 = vcmp.gt.f32.partialorder %v2097, 1.0
    %vm2106 = vcmp.gt.f32.partialorder %v2098, 1.0
    %vm2107 = vcmp.gt.f32.partialorder %v2099, 1.0
    %vm2108 = vcmp.gt.f32.partialorder %v2100, 1.0
    %vm2109 = vcmp.gt.f32.partialorder %v2101, 1.0
    %vm2110 = vcmp.gt.f32.partialorder %v2102, 1.0
    %vm2111 = vcmp.gt.f32.partialorder %v2103, 1.0
    %vm2112 = vcmp.gt.f32.partialorder %v2104, 1.0
    %v2113 = vsub.f32 2.0, %v2097
    %v2114 = vsub.f32 2.0, %v2098
    %v2115 = vsub.f32 2.0, %v2099
    %v2116 = vsub.f32 2.0, %v2100
    %v2117 = vsub.f32 2.0, %v2101
    %v2118 = vsub.f32 2.0, %v2102
    %v2119 = vsub.f32 2.0, %v2103
    %v2120 = vsub.f32 2.0, %v2104
    %v2121 = vsel %vm2105, %v2113, %v2097
    %v2122 = vsel %vm2106, %v2114, %v2098
    %v2123 = vsel %vm2107, %v2115, %v2099
    %v2124 = vsel %vm2108, %v2116, %v2100
    %v2125 = vsel %vm2109, %v2117, %v2101
    %v2126 = vsel %vm2110, %v2118, %v2102
    %v2127 = vsel %vm2111, %v2119, %v2103
    %v2128 = vsel %vm2112, %v2120, %v2104
    %v2129 = vld [vmem:[#allocation15] sm:$0xff]
    %v2130 = vld [vmem:[#allocation15 + $0x8] sm:$0xff]
    %v2131 = vld [vmem:[#allocation15 + $0x10] sm:$0xff]
    %v2132 = vld [vmem:[#allocation15 + $0x18] sm:$0xff]
    %v2133 = vld [vmem:[#allocation15 + $0x20] sm:$0xff]
    %v2134 = vld [vmem:[#allocation15 + $0x28] sm:$0xff]
    %v2135 = vld [vmem:[#allocation15 + $0x30] sm:$0xff]
    %v2136 = vld [vmem:[#allocation15 + $0x38] sm:$0xff]
    %v2137 = vmul.f32 %v2065, %v2129
    %v2138 = vmul.f32 %v2066, %v2130
    %v2139 = vmul.f32 %v2067, %v2131
    %v2140 = vmul.f32 %v2068, %v2132
    %v2141 = vmul.f32 %v2069, %v2133
    %v2142 = vmul.f32 %v2070, %v2134
    %v2143 = vmul.f32 %v2071, %v2135
    %v2144 = vmul.f32 %v2072, %v2136
    %v2145 = vadd.f32 %v2121, %v2137
    %v2146 = vadd.f32 %v2122, %v2138
    %v2147 = vadd.f32 %v2123, %v2139
    %v2148 = vadd.f32 %v2124, %v2140
    %v2149 = vadd.f32 %v2125, %v2141
    %v2150 = vadd.f32 %v2126, %v2142
    %v2151 = vadd.f32 %v2127, %v2143
    %v2152 = vadd.f32 %v2128, %v2144
    %2153 = vst [vmem:[#allocation17] sm:$0xff] %v2145
    %2154 = vst [vmem:[#allocation17 + $0x8] sm:$0xff] %v2146
    %2155 = vst [vmem:[#allocation17 + $0x10] sm:$0xff] %v2147
    %2156 = vst [vmem:[#allocation17 + $0x18] sm:$0xff] %v2148
    %2157 = vst [vmem:[#allocation17 + $0x20] sm:$0xff] %v2149
    %2158 = vst [vmem:[#allocation17 + $0x28] sm:$0xff] %v2150
    %2159 = vst [vmem:[#allocation17 + $0x30] sm:$0xff] %v2151
    %2160 = vst [vmem:[#allocation17 + $0x38] sm:$0xff] %v2152
    %v2161 = vmul.f32 %v2041, 0.5
    %v2162 = vmul.f32 %v2042, 0.5
    %v2163 = vmul.f32 %v2043, 0.5
    %v2164 = vmul.f32 %v2044, 0.5
    %v2165 = vmul.f32 %v2045, 0.5
    %v2166 = vmul.f32 %v2046, 0.5
    %v2167 = vmul.f32 %v2047, 0.5
    %v2168 = vmul.f32 %v2048, 0.5
    %v2169 = vfloor.f32 %v2161
    %v2170 = vfloor.f32 %v2162
    %v2171 = vfloor.f32 %v2163
    %v2172 = vfloor.f32 %v2164
    %v2173 = vfloor.f32 %v2165
    %v2174 = vfloor.f32 %v2166
    %v2175 = vfloor.f32 %v2167
    %v2176 = vfloor.f32 %v2168
    %v2177 = vmul.f32 %v2169, 2.0
    %v2178 = vmul.f32 %v2170, 2.0
    %v2179 = vmul.f32 %v2171, 2.0
    %v2180 = vmul.f32 %v2172, 2.0
    %v2181 = vmul.f32 %v2173, 2.0
    %v2182 = vmul.f32 %v2174, 2.0
    %v2183 = vmul.f32 %v2175, 2.0
    %v2184 = vmul.f32 %v2176, 2.0
    %v2185 = vsub.f32 %v2041, %v2177
    %v2186 = vsub.f32 %v2042, %v2178
    %v2187 = vsub.f32 %v2043, %v2179
    %v2188 = vsub.f32 %v2044, %v2180
    %v2189 = vsub.f32 %v2045, %v2181
    %v2190 = vsub.f32 %v2046, %v2182
    %v2191 = vsub.f32 %v2047, %v2183
    %v2192 = vsub.f32 %v2048, %v2184
    %vm2193 = vcmp.gt.f32.partialorder %v2185, 1.0
    %vm2194 = vcmp.gt.f32.partialorder %v2186, 1.0
    %vm2195 = vcmp.gt.f32.partialorder %v2187, 1.0
    %vm2196 = vcmp.gt.f32.partialorder %v2188, 1.0
    %vm2197 = vcmp.gt.f32.partialorder %v2189, 1.0
    %vm2198 = vcmp.gt.f32.partialorder %v2190, 1.0
    %vm2199 = vcmp.gt.f32.partialorder %v2191, 1.0
    %vm2200 = vcmp.gt.f32.partialorder %v2192, 1.0
    %v2201 = vsub.f32 2.0, %v2185
    %v2202 = vsub.f32 2.0, %v2186
    %v2203 = vsub.f32 2.0, %v2187
    %v2204 = vsub.f32 2.0, %v2188
    %v2205 = vsub.f32 2.0, %v2189
    %v2206 = vsub.f32 2.0, %v2190
    %v2207 = vsub.f32 2.0, %v2191
    %v2208 = vsub.f32 2.0, %v2192
    %v2209 = vsel %vm2193, %v2201, %v2185
    %v2210 = vsel %vm2194, %v2202, %v2186
    %v2211 = vsel %vm2195, %v2203, %v2187
    %v2212 = vsel %vm2196, %v2204, %v2188
    %v2213 = vsel %vm2197, %v2205, %v2189
    %v2214 = vsel %vm2198, %v2206, %v2190
    %v2215 = vsel %vm2199, %v2207, %v2191
    %v2216 = vsel %vm2200, %v2208, %v2192
    %s2217 = scalar_lea.vmem [#allocation15], 64
    %v2218 = vld [vmem:[%s2217] sm:$0xff]
    %v2219 = vld [vmem:[%s2217 + $0x8] sm:$0xff]
    %v2220 = vld [vmem:[%s2217 + $0x10] sm:$0xff]
    %v2221 = vld [vmem:[%s2217 + $0x18] sm:$0xff]
    %v2222 = vld [vmem:[%s2217 + $0x20] sm:$0xff]
    %v2223 = vld [vmem:[%s2217 + $0x28] sm:$0xff]
    %v2224 = vld [vmem:[%s2217 + $0x30] sm:$0xff]
    %v2225 = vld [vmem:[%s2217 + $0x38] sm:$0xff]
    %v2226 = vmul.f32 %v2065, %v2218
    %v2227 = vmul.f32 %v2066, %v2219
    %v2228 = vmul.f32 %v2067, %v2220
    %v2229 = vmul.f32 %v2068, %v2221
    %v2230 = vmul.f32 %v2069, %v2222
    %v2231 = vmul.f32 %v2070, %v2223
    %v2232 = vmul.f32 %v2071, %v2224
    %v2233 = vmul.f32 %v2072, %v2225
    %v2234 = vadd.f32 %v2209, %v2226
    %v2235 = vadd.f32 %v2210, %v2227
    %v2236 = vadd.f32 %v2211, %v2228
    %v2237 = vadd.f32 %v2212, %v2229
    %v2238 = vadd.f32 %v2213, %v2230
    %v2239 = vadd.f32 %v2214, %v2231
    %v2240 = vadd.f32 %v2215, %v2232
    %v2241 = vadd.f32 %v2216, %v2233
    %s2242 = scalar_lea.vmem [#allocation17], 64
    %2243 = vst [vmem:[%s2242] sm:$0xff] %v2234
    %2244 = vst [vmem:[%s2242 + $0x8] sm:$0xff] %v2235
    %2245 = vst [vmem:[%s2242 + $0x10] sm:$0xff] %v2236
    %2246 = vst [vmem:[%s2242 + $0x18] sm:$0xff] %v2237
    %2247 = vst [vmem:[%s2242 + $0x20] sm:$0xff] %v2238
    %2248 = vst [vmem:[%s2242 + $0x28] sm:$0xff] %v2239
    %2249 = vst [vmem:[%s2242 + $0x30] sm:$0xff] %v2240
    %2250 = vst [vmem:[%s2242 + $0x38] sm:$0xff] %v2241
    %v2251 = vmul.f32 %v2049, 0.5
    %v2252 = vmul.f32 %v2050, 0.5
    %v2253 = vmul.f32 %v2051, 0.5
    %v2254 = vmul.f32 %v2052, 0.5
    %v2255 = vmul.f32 %v2053, 0.5
    %v2256 = vmul.f32 %v2054, 0.5
    %v2257 = vmul.f32 %v2055, 0.5
    %v2258 = vmul.f32 %v2056, 0.5
    %v2259 = vfloor.f32 %v2251
    %v2260 = vfloor.f32 %v2252
    %v2261 = vfloor.f32 %v2253
    %v2262 = vfloor.f32 %v2254
    %v2263 = vfloor.f32 %v2255
    %v2264 = vfloor.f32 %v2256
    %v2265 = vfloor.f32 %v2257
    %v2266 = vfloor.f32 %v2258
    %v2267 = vmul.f32 %v2259, 2.0
    %v2268 = vmul.f32 %v2260, 2.0
    %v2269 = vmul.f32 %v2261, 2.0
    %v2270 = vmul.f32 %v2262, 2.0
    %v2271 = vmul.f32 %v2263, 2.0
    %v2272 = vmul.f32 %v2264, 2.0
    %v2273 = vmul.f32 %v2265, 2.0
    %v2274 = vmul.f32 %v2266, 2.0
    %v2275 = vsub.f32 %v2049, %v2267
    %v2276 = vsub.f32 %v2050, %v2268
    %v2277 = vsub.f32 %v2051, %v2269
    %v2278 = vsub.f32 %v2052, %v2270
    %v2279 = vsub.f32 %v2053, %v2271
    %v2280 = vsub.f32 %v2054, %v2272
    %v2281 = vsub.f32 %v2055, %v2273
    %v2282 = vsub.f32 %v2056, %v2274
    %vm2283 = vcmp.gt.f32.partialorder %v2275, 1.0
    %vm2284 = vcmp.gt.f32.partialorder %v2276, 1.0
    %vm2285 = vcmp.gt.f32.partialorder %v2277, 1.0
    %vm2286 = vcmp.gt.f32.partialorder %v2278, 1.0
    %vm2287 = vcmp.gt.f32.partialorder %v2279, 1.0
    %vm2288 = vcmp.gt.f32.partialorder %v2280, 1.0
    %vm2289 = vcmp.gt.f32.partialorder %v2281, 1.0
    %vm2290 = vcmp.gt.f32.partialorder %v2282, 1.0
    %v2291 = vsub.f32 2.0, %v2275
    %v2292 = vsub.f32 2.0, %v2276
    %v2293 = vsub.f32 2.0, %v2277
    %v2294 = vsub.f32 2.0, %v2278
    %v2295 = vsub.f32 2.0, %v2279
    %v2296 = vsub.f32 2.0, %v2280
    %v2297 = vsub.f32 2.0, %v2281
    %v2298 = vsub.f32 2.0, %v2282
    %v2299 = vsel %vm2283, %v2291, %v2275
    %v2300 = vsel %vm2284, %v2292, %v2276
    %v2301 = vsel %vm2285, %v2293, %v2277
    %v2302 = vsel %vm2286, %v2294, %v2278
    %v2303 = vsel %vm2287, %v2295, %v2279
    %v2304 = vsel %vm2288, %v2296, %v2280
    %v2305 = vsel %vm2289, %v2297, %v2281
    %v2306 = vsel %vm2290, %v2298, %v2282
    %s2307 = scalar_lea.vmem [#allocation15], 128
    %v2308 = vld [vmem:[%s2307] sm:$0xff]
    %v2309 = vld [vmem:[%s2307 + $0x8] sm:$0xff]
    %v2310 = vld [vmem:[%s2307 + $0x10] sm:$0xff]
    %v2311 = vld [vmem:[%s2307 + $0x18] sm:$0xff]
    %v2312 = vld [vmem:[%s2307 + $0x20] sm:$0xff]
    %v2313 = vld [vmem:[%s2307 + $0x28] sm:$0xff]
    %v2314 = vld [vmem:[%s2307 + $0x30] sm:$0xff]
    %v2315 = vld [vmem:[%s2307 + $0x38] sm:$0xff]
    %v2316 = vmul.f32 %v2065, %v2308
    %v2317 = vmul.f32 %v2066, %v2309
    %v2318 = vmul.f32 %v2067, %v2310
    %v2319 = vmul.f32 %v2068, %v2311
    %v2320 = vmul.f32 %v2069, %v2312
    %v2321 = vmul.f32 %v2070, %v2313
    %v2322 = vmul.f32 %v2071, %v2314
    %v2323 = vmul.f32 %v2072, %v2315
    %v2324 = vadd.f32 %v2299, %v2316
    %v2325 = vadd.f32 %v2300, %v2317
    %v2326 = vadd.f32 %v2301, %v2318
    %v2327 = vadd.f32 %v2302, %v2319
    %v2328 = vadd.f32 %v2303, %v2320
    %v2329 = vadd.f32 %v2304, %v2321
    %v2330 = vadd.f32 %v2305, %v2322
    %v2331 = vadd.f32 %v2306, %v2323
    %s2332 = scalar_lea.vmem [#allocation17], 128
    %2333 = vst [vmem:[%s2332] sm:$0xff] %v2324
    %2334 = vst [vmem:[%s2332 + $0x8] sm:$0xff] %v2325
    %2335 = vst [vmem:[%s2332 + $0x10] sm:$0xff] %v2326
    %2336 = vst [vmem:[%s2332 + $0x18] sm:$0xff] %v2327
    %2337 = vst [vmem:[%s2332 + $0x20] sm:$0xff] %v2328
    %2338 = vst [vmem:[%s2332 + $0x28] sm:$0xff] %v2329
    %2339 = vst [vmem:[%s2332 + $0x30] sm:$0xff] %v2330
    %2340 = vst [vmem:[%s2332 + $0x38] sm:$0xff] %v2331
    // Predicated region
    $region66: #{tpu_custom_call.1} parent=1 // pred_check
      _
    $region67: #{tpu_custom_call.1} parent=1 // pred_check_branch
      %2342 = sbr.rel (0) target = $region69
    $region68: #{tpu_custom_call.1} parent=1 // pred_region
      %s2344 = ssub.s32 3072, 3072
      %2345 = vsyncadd [#allocation4], %s2344
      %s2346 = sshll.u32 [#allocation17], 4
      %s2347 = int_to_ptr.vmem [resolvable:$true] %s2346
      %2352 = dma.vmem_to_hbm [thread:$0]  %s2347, 3072, %s8, [#allocation4], 128, 128, 8
    $region69: #{tpu_custom_call.1} parent=1 // pred_fallthru
      _
    // Predicated region
    $region70: #{tpu_custom_call.1} parent=1 // pred_check
      _
    $region71: #{tpu_custom_call.1} parent=1 // pred_check_branch
      %2354 = sbr.rel (0) target = $region73
    $region72: #{tpu_custom_call.1} parent=1 // pred_region
      %2355 = dma.done [#allocation4], 3072
    $region73: #{tpu_custom_call.1} parent=1 // pred_fallthru
      _
    %2356 = vsyncpa [#allocation3], 1
    %2357 = vsyncpa [#allocation10], 1
    %2358 = vsyncpa [#allocation13], 1
    %2359 = vsyncpa [#allocation16], 1
    %2360 = vsyncpa [#allocation4], 1
    %2361 = vsyncpa [#allocation5], 1
    %2362 = vsyncpa [#allocation6], 1

</llo_original>
